<compile_context>
chip_gen: v7x
topology: tpu7x:2x2x1
jax: 0.10.0
libtpu: 0.0.40
codegen_flags: <defaults>
</compile_context>

<pallas_src>
import jax
import jax.numpy as jnp
from jax import lax
from jax.experimental import pallas as pl
from jax.experimental.pallas import tpu as pltpu


_LANE = 128
# Explicit scoped-VMEM budget: above v5e's 16 MiB default, below v7x's 64 MiB physical.
# v6e/v5e (128 MiB physical) can afford larger batch tiles — retune per generation.
_VMEM_LIMIT_BYTES = 48 * 1024 * 1024


# --------------------------------- kernel ------------------------------------
def _conv3x3_kfused(x, w_ref):
    """Batched 3x3, stride-1, pad-1 conv with the kw taps K-fused into the matmul.

    x     : (B, H, W, C) bf16 activation value (C a multiple of 128, W a multiple of 8).
    w_ref : (3, 3*C, Cout) weight ref; row kh holds the kh-th tap row with (kw, C)
            flattened into the matmul K dim.
    Returns f32 (B*H*W, Cout).
    """
    B, H, W, C = x.shape
    Cout = w_ref.shape[-1]

    # W-direction shifts: XLU sublane rotate + one VPU select per shift (no unaligned
    # sublane slices -> no relayout copies).  jnp.roll semantics: roll(+1)[w] = x[w-1].
    x32 = x.astype(jnp.float32)
    w_idx = lax.broadcasted_iota(jnp.int32, (1, 1, W, C), 2)
    xm1 = jnp.where(w_idx == 0, 0.0,
                    pltpu.roll(x32, shift=1, axis=2)).astype(x.dtype)      # x[:, :, w-1]
    xp1 = jnp.where(w_idx == W - 1, 0.0,
                    pltpu.roll(x32, shift=W - 1, axis=2)).astype(x.dtype)  # x[:, :, w+1]

    # Fold the 3 kw taps into the K dim (single W-im2col per conv).  With C padded to a
    # multiple of 128 this lane concat is tile-aligned, so K-fusion is kept unconditionally.
    xw = jnp.concatenate([xm1, x, xp1], axis=-1)                    # (B, H, W, 3*C)

    # H-direction zero padding on a leading axis: each image gets its own zero rows and
    # every kh tap becomes a cheap leading-dim slice.
    zrow = jnp.zeros((B, 1, W, 3 * C), x.dtype)
    xw = jnp.concatenate([zrow, xw, zrow], axis=1)                  # (B, H+2, W, 3*C)

    # One matmul per kh tap with the whole batch tile folded into the MXU M dimension.
    acc = jnp.zeros((B * H * W, Cout), jnp.float32)
    for kh in range(3):
        patch = xw[:, kh:kh + H].reshape(B * H * W, 3 * C)
        acc = acc + jnp.dot(patch, w_ref[kh], preferred_element_type=jnp.float32)
    return acc


def _basic_block_body(x_ref, w1_ref, w2_ref, wd_ref, bias_ref, out_ref):
    B, H, W, Cout = out_ref.shape
    Cin = x_ref.shape[-1]

    x = x_ref[...]                                            # (B, H, W, Cin) bf16

    # conv1 (3x3, s=1, p=1) + ReLU  (f32 accumulate / f32 relu)
    y = jnp.maximum(_conv3x3_kfused(x, w1_ref), 0.0)          # (B*H*W, Cout) f32

    # conv2 (3x3, s=1, p=1) on bf16 activations
    y = y.reshape(B, H, W, Cout).astype(jnp.bfloat16)
    out = _conv3x3_kfused(y, w2_ref)                          # (B*H*W, Cout) f32

    # identity / downsample (1x1 conv; BN scale pre-folded into the weight wrapper-side).
    if wd_ref is not None:
        ident = jnp.dot(x.reshape(B * H * W, Cin), wd_ref[...],
                        preferred_element_type=jnp.float32)
        ident = ident + bias_ref[0, :]                        # bias broadcast once per block
    else:
        ident = x.reshape(B * H * W, Cin).astype(jnp.float32)

    out = jnp.maximum(out + ident, 0.0)
    out_ref[...] = out.reshape(B, H, W, Cout).astype(out_ref.dtype)


def _kernel_downsample(x_ref, w1_ref, w2_ref, wd_ref, bias_ref, out_ref):
    _basic_block_body(x_ref, w1_ref, w2_ref, wd_ref, bias_ref, out_ref)


def _kernel_identity(x_ref, w1_ref, w2_ref, out_ref):
    _basic_block_body(x_ref, w1_ref, w2_ref, None, None, out_ref)


# --------------------------------- wrappers -----------------------------------
def _round_up(c, m):
    return ((c + m - 1) // m) * m


def _auto_b_tile(n, h, w, cpi, cpo, budget_bytes):
    """Largest batch tile whose per-step working set fits the VMEM budget while keeping
    >= 2 grid steps, so the 'parallel' batch axis actually spans v7x's 2 TensorCores."""
    cmax = max(cpi, cpo)
    per_img = (2 * h * w * cpi * 2                 # double-buffered bf16 input block
               + 2 * h * w * cpo * 4               # double-buffered output block
               + 2 * (h + 2) * w * 3 * cmax * 2    # K-fused activations (both convs)
               + 3 * h * w * cmax * 4)             # f32 roll temporaries + accumulator
    best = 1
    for cand in range(1, n + 1):
        if n % cand:
            continue
        if n >= 2 and n // cand < 2:
            continue
        if cand * per_img > budget_bytes:
            continue
        best = cand
    return best


def quantizable_basic_block_nhwc(x_nhwc, w1_hwio, w2_hwio,
                                 wd_io=None, bn_gamma=None, bn_beta=None,
                                 bn_mean=None, bn_var=None, bn_eps=1e-5,
                                 b_tile=None, out_dtype=jnp.bfloat16):
    """Fused QuantizableBasicBlock on NHWC activations.

    x_nhwc : (N, H, W, Cin); cast to bf16 for the MXU (accumulation stays f32).
    wd_io  : (Cin, Cout) downsample 1x1-conv weight, or None for the identity skip.
    Returns (N, H, W, Cout) in out_dtype (bf16 by default so chained blocks avoid the
    f32 writeback and NCHW<->NHWC relayouts between blocks).
    """
    N, H, W, Cin = x_nhwc.shape
    Cout = w1_hwio.shape[-1]
    cpi, cpo = _round_up(Cin, _LANE), _round_up(Cout, _LANE)

    if b_tile is None:
        b_tile = _auto_b_tile(N, H, W, cpi, cpo, _VMEM_LIMIT_BYTES // 2)
    assert N % b_tile == 0, "b_tile must divide the batch"

    # Zero-pad channels to lane multiples of 128: lane-dense (unmasked vst) epilogue
    # stores, tile-aligned K-fusion concat, exact MXU K tiles.  Padded channels stay
    # exactly zero end-to-end and are sliced off after the kernel.
    x_p = jnp.pad(x_nhwc, ((0, 0), (0, 0), (0, 0), (0, cpi - Cin))).astype(jnp.bfloat16)

    # (kh, kw, Cin, Cout) -> (kh, kw*Cin_pad, Cout_pad): per-kh-tap K-fused weights.
    w1 = jnp.pad(w1_hwio.astype(jnp.float32),
                 ((0, 0), (0, 0), (0, cpi - Cin), (0, cpo - Cout)))
    w1 = w1.reshape(3, 3 * cpi, cpo).astype(jnp.bfloat16)
    w2 = jnp.pad(w2_hwio.astype(jnp.float32),
                 ((0, 0), (0, 0), (0, cpo - Cout), (0, cpo - Cout)))
    w2 = w2.reshape(3, 3 * cpo, cpo).astype(jnp.bfloat16)

    # NOTE: the weight index_maps are constant across the grid; on v7x (64 MiB VMEM)
    # add pipeline_mode=pl.Buffered(1) to these specs to single-buffer the weight slabs.
    in_specs = [
        pl.BlockSpec((b_tile, H, W, cpi), lambda n: (n, 0, 0, 0)),
        pl.BlockSpec((3, 3 * cpi, cpo), lambda n: (0, 0, 0)),
        pl.BlockSpec((3, 3 * cpo, cpo), lambda n: (0, 0, 0)),
    ]

    if wd_io is not None:
        # downsample = Conv1x1(no bias) + BatchNorm(eval): fold the BN scale into the
        # weight (wrapper-side) so the kernel only adds the f32 bias.
        s = (bn_gamma / jnp.sqrt(bn_var + bn_eps)).astype(jnp.float32)
        wd = jnp.pad(wd_io.astype(jnp.float32) * s[None, :],
                     ((0, cpi - Cin), (0, cpo - Cout))).astype(jnp.bfloat16)
        bias = jnp.pad((bn_beta - bn_mean * s).astype(jnp.float32),
                       (0, cpo - Cout)).reshape(1, cpo)
        kernel = _kernel_downsample
        inputs = (x_p, w1, w2, wd, bias)
        in_specs = in_specs + [
            pl.BlockSpec((cpi, cpo), lambda n: (0, 0)),
            pl.BlockSpec((1, cpo), lambda n: (0, 0)),
        ]
    else:
        assert Cin == Cout, "identity skip requires Cin == Cout"
        kernel = _kernel_identity
        inputs = (x_p, w1, w2)

    grid_spec = pltpu.PrefetchScalarGridSpec(
        num_scalar_prefetch=0,
        grid=(N // b_tile,),
        in_specs=in_specs,
        out_specs=pl.BlockSpec((b_tile, H, W, cpo), lambda n: (n, 0, 0, 0)),
    )

    out_p = pl.pallas_call(
        kernel,
        out_shape=jax.ShapeDtypeStruct((N, H, W, cpo), out_dtype),
        grid_spec=grid_spec,
        compiler_params=pltpu.CompilerParams(
            # Batch tiles are independent -> shard the grid across v7x's 2 TensorCores.
            dimension_semantics=("parallel",),
            vmem_limit_bytes=_VMEM_LIMIT_BYTES),
    )(*inputs)

    # For a chained network you would keep the padded channels (the next block re-uses
    # them); here slice back to the logical channel count.
    return out_p[..., :Cout]


def quantizable_basic_block(x_nchw, w1_hwio, w2_hwio,
                            wd_io=None, bn_gamma=None, bn_beta=None,
                            bn_mean=None, bn_var=None, bn_eps=1e-5,
                            b_tile=None, out_dtype=jnp.float32):
    """PyTorch-layout convenience wrapper: (N, Cin, H, W) f32 -> (N, Cout, H, W)."""
    x_nhwc = jnp.transpose(x_nchw, (0, 2, 3, 1))
    out = quantizable_basic_block_nhwc(
        x_nhwc, w1_hwio, w2_hwio, wd_io, bn_gamma, bn_beta, bn_mean, bn_var,
        bn_eps=bn_eps, b_tile=b_tile, out_dtype=out_dtype)
    return jnp.transpose(out, (0, 3, 1, 2))


# ---------------------------- pure-JAX references ----------------------------
def _conv3x3_ref(x_nhwc, w_hwio):
    return lax.conv_general_dilated(
        x_nhwc, w_hwio, window_strides=(1, 1), padding=((1, 1), (1, 1)),
        dimension_numbers=("NHWC", "HWIO", "NHWC"),
        preferred_element_type=jnp.float32)


def _reference(x_nchw, w1, w2, wd=None, gamma=None, beta=None, mean=None, var=None,
               eps=1e-5, matmul_dtype=jnp.float32):
    """matmul_dtype=bf16 mirrors the kernel's MXU quantization; f32 is the exact module."""
    x = jnp.transpose(x_nchw, (0, 2, 3, 1))
    xm = x.astype(matmul_dtype)
    out = jax.nn.relu(_conv3x3_ref(xm, w1.astype(matmul_dtype)))
    out = _conv3x3_ref(out.astype(matmul_dtype), w2.astype(matmul_dtype))
    if wd is not None:
        s = gamma / jnp.sqrt(var + eps)
        wds = (wd * s[None, :]).astype(matmul_dtype)
        ident = jnp.einsum("nhwc,co->nhwo", xm, wds,
                           preferred_element_type=jnp.float32)
        ident = ident + (beta - mean * s)
    else:
        ident = xm.astype(jnp.float32)
    out = jax.nn.relu(out + ident)
    return jnp.transpose(out, (0, 3, 1, 2))


if __name__ == "__main__":
    key = jax.random.PRNGKey(0)
    (k_x, k_w1, k_w2, k_wd, k_g, k_b, k_m, k_v,
     k_x2, k_u1, k_u2) = jax.random.split(key, 11)

    # Case 1: channel-changing block (Cin != Cout), stride 1, 1x1-conv + BN downsample,
    # PyTorch NCHW/f32 layout.  Auto b_tile=1 -> grid=(2,) so both v7x TCs get work.
    N, Cin, Cout, H, W = 2, 4, 8, 16, 16
    x = jax.random.normal(k_x, (N, Cin, H, W), jnp.float32)               # NCHW input
    w1 = jax.random.normal(k_w1, (3, 3, Cin, Cout), jnp.float32) * 0.2    # conv1, no bias
    w2 = jax.random.normal(k_w2, (3, 3, Cout, Cout), jnp.float32) * 0.2   # conv2, no bias
    wd = jax.random.normal(k_wd, (Cin, Cout), jnp.float32) * 0.3          # downsample 1x1
    gamma = jax.random.normal(k_g, (Cout,), jnp.float32) * 0.1 + 1.0      # BN weight
    beta = jax.random.normal(k_b, (Cout,), jnp.float32) * 0.1             # BN bias
    mean = jax.random.normal(k_m, (Cout,), jnp.float32) * 0.1             # BN running_mean
    var = jnp.abs(jax.random.normal(k_v, (Cout,), jnp.float32)) * 0.5 + 0.5

    out = quantizable_basic_block(x, w1, w2, wd, gamma, beta, mean, var)
    out = jax.block_until_ready(out)
    assert out.shape == (N, Cout, H, W)

    ref_b = _reference(x, w1, w2, wd, gamma, beta, mean, var, matmul_dtype=jnp.bfloat16)
    ref_f = _reference(x, w1, w2, wd, gamma, beta, mean, var)
    assert jnp.allclose(out, ref_b, atol=1e-2, rtol=1e-2), (
        f"bf16-matched max err = {jnp.max(jnp.abs(out - ref_b))}")
    assert jnp.allclose(out, ref_f, atol=2.5e-1, rtol=1e-1), (
        f"f32 max err = {jnp.max(jnp.abs(out - ref_f))}")

    # Case 2: plain block (identity skip, Cin == Cout), NHWC/bf16 chained-layer path.
    # N=4 -> auto b_tile=2, grid=(2,): the batch tile is folded into the MXU M dim.
    N2, C2 = 4, 8
    x2 = jax.random.normal(k_x2, (N2, C2, H, W), jnp.float32)
    u1 = jax.random.normal(k_u1, (3, 3, C2, C2), jnp.float32) * 0.2
    u2 = jax.random.normal(k_u2, (3, 3, C2, C2), jnp.float32) * 0.2

    out2 = quantizable_basic_block_nhwc(jnp.transpose(x2, (0, 2, 3, 1)), u1, u2,
                                        out_dtype=jnp.bfloat16)
    out2 = jax.block_until_ready(out2)
    assert out2.shape == (N2, H, W, C2) and out2.dtype == jnp.bfloat16
    out2_nchw = jnp.transpose(out2.astype(jnp.float32), (0, 3, 1, 2))

    ref2_b = _reference(x2, u1, u2, matmul_dtype=jnp.bfloat16)
    ref2_f = _reference(x2, u1, u2)
    assert jnp.allclose(out2_nchw, ref2_b, atol=1.5e-1, rtol=5e-2), (
        f"bf16-matched max err = {jnp.max(jnp.abs(out2_nchw - ref2_b))}")
    assert jnp.allclose(out2_nchw, ref2_f, atol=3e-1, rtol=1e-1), (
        f"f32 max err = {jnp.max(jnp.abs(out2_nchw - ref2_f))}")

    print("KERNEL_OK")
</pallas_src>

<mosaic_0001>
module attributes {stable_mosaic.version = 11 : i64} {
  func.func @_kernel_downsample(%arg0: i32, %arg1: memref<1x16x16x128xbf16, #tpu.memory_space<vmem>>, %arg2: memref<3x384x128xbf16, #tpu.memory_space<vmem>>, %arg3: memref<3x384x128xbf16, #tpu.memory_space<vmem>>, %arg4: memref<128x128xbf16, #tpu.memory_space<vmem>>, %arg5: memref<1x128xf32, #tpu.memory_space<vmem>>, %arg6: memref<1x16x16x128xf32, #tpu.memory_space<vmem>>) attributes {dimension_semantics = [#tpu.dimension_semantics<parallel>], iteration_bounds = array<i64: 2>, scalar_prefetch = 0 : i64, scratch_operands = 0 : i64, tpu.core_type = #tpu.core_type<tc>, window_params = [{transform_indices = @transform_0, window_bounds = array<i64: 1, 16, 16, 128>}, {pipeline_mode = #tpu.pipeline_mode<synchronous>, transform_indices = @transform_1, window_bounds = array<i64: 3, 384, 128>}, {pipeline_mode = #tpu.pipeline_mode<synchronous>, transform_indices = @transform_2, window_bounds = array<i64: 3, 384, 128>}, {pipeline_mode = #tpu.pipeline_mode<synchronous>, transform_indices = @transform_3, window_bounds = array<i64: 128, 128>}, {pipeline_mode = #tpu.pipeline_mode<synchronous>, transform_indices = @transform_4, window_bounds = array<i64: 1, 128>}, {transform_indices = @transform_5, window_bounds = array<i64: 1, 16, 16, 128>}]} {
    %c0 = arith.constant 0 : index
    %c0_0 = arith.constant 0 : index
    %c0_1 = arith.constant 0 : index
    %c0_2 = arith.constant 0 : index
    %0 = vector.load %arg1[%c0, %c0_0, %c0_1, %c0_2] : memref<1x16x16x128xbf16, #tpu.memory_space<vmem>>, vector<1x16x16x128xbf16>
    %1 = arith.extf %0 : vector<1x16x16x128xbf16> to vector<1x16x16x128xf32>
    %2 = tpu.iota {dimensions = array<i32: 2>} : vector<1x1x16x128xi32>
    %c0_i32 = arith.constant 0 : i32
    %3 = vector.broadcast %c0_i32 : i32 to vector<1x1x16x128xi32>
    %4 = arith.cmpi eq, %2, %3 : vector<1x1x16x128xi32>
    %c1_i32 = arith.constant 1 : i32
    %5 = tpu.dynamic_rotate %1 by %c1_i32 dim 2 : vector<1x16x16x128xf32>, i32 -> vector<1x16x16x128xf32>
    %cst = arith.constant 0.000000e+00 : f32
    %6 = vector.shape_cast %4 : vector<1x1x16x128xi1> to vector<1x1x16x128xi1>
    %7 = vector.broadcast %6 : vector<1x1x16x128xi1> to vector<1x16x16x128xi1>
    %8 = vector.broadcast %cst : f32 to vector<1x16x16x128xf32>
    %9 = arith.select %7, %8, %5 : vector<1x16x16x128xi1>, vector<1x16x16x128xf32>
    %10 = arith.truncf %9 : vector<1x16x16x128xf32> to vector<1x16x16x128xbf16>
    %c15_i32 = arith.constant 15 : i32
    %11 = vector.broadcast %c15_i32 : i32 to vector<1x1x16x128xi32>
    %12 = arith.cmpi eq, %2, %11 : vector<1x1x16x128xi32>
    %c15_i32_3 = arith.constant 15 : i32
    %13 = tpu.dynamic_rotate %1 by %c15_i32_3 dim 2 : vector<1x16x16x128xf32>, i32 -> vector<1x16x16x128xf32>
    %cst_4 = arith.constant 0.000000e+00 : f32
    %14 = vector.shape_cast %12 : vector<1x1x16x128xi1> to vector<1x1x16x128xi1>
    %15 = vector.broadcast %14 : vector<1x1x16x128xi1> to vector<1x16x16x128xi1>
    %16 = vector.broadcast %cst_4 : f32 to vector<1x16x16x128xf32>
    %17 = arith.select %15, %16, %13 : vector<1x16x16x128xi1>, vector<1x16x16x128xf32>
    %18 = arith.truncf %17 : vector<1x16x16x128xf32> to vector<1x16x16x128xbf16>
    %19 = tpu.concatenate %10, %0, %18 in 3 : vector<1x16x16x128xbf16>, vector<1x16x16x128xbf16>, vector<1x16x16x128xbf16> -> vector<1x16x16x384xbf16>
    %cst_5 = arith.constant 0.000000e+00 : bf16
    %20 = vector.broadcast %cst_5 : bf16 to vector<1x1x16x384xbf16>
    %21 = tpu.concatenate %20, %19, %20 in 1 : vector<1x1x16x384xbf16>, vector<1x16x16x384xbf16>, vector<1x1x16x384xbf16> -> vector<1x18x16x384xbf16>
    %cst_6 = arith.constant 0.000000e+00 : f32
    %22 = vector.broadcast %cst_6 : f32 to vector<256x128xf32>
    %23 = vector.extract_strided_slice %21 {offsets = [0, 0, 0, 0], sizes = [1, 16, 16, 384], strides = [1, 1, 1, 1]} : vector<1x18x16x384xbf16> to vector<1x16x16x384xbf16>
    %24 = vector.shape_cast %23 : vector<1x16x16x384xbf16> to vector<256x384xbf16>
    %c0_7 = arith.constant 0 : index
    %c0_8 = arith.constant 0 : index
    %c0_9 = arith.constant 0 : index
    %25 = vector.load %arg2[%c0_7, %c0_8, %c0_9] : memref<3x384x128xbf16, #tpu.memory_space<vmem>>, vector<1x384x128xbf16>
    %26 = vector.shape_cast %25 : vector<1x384x128xbf16> to vector<384x128xbf16>
    %cst_10 = arith.constant dense<0.000000e+00> : vector<256x128xf32>
    %27 = tpu.matmul %24, %26, %cst_10 {dimension_numbers = #tpu.dot_dimension_numbers<[1], [0], [0], [1], [0, 0, 1, 1], [], []>} : vector<256x384xbf16>, vector<384x128xbf16>, vector<256x128xf32> -> vector<256x128xf32>
    %28 = arith.addf %22, %27 : vector<256x128xf32>
    %29 = vector.extract_strided_slice %21 {offsets = [0, 1, 0, 0], sizes = [1, 16, 16, 384], strides = [1, 1, 1, 1]} : vector<1x18x16x384xbf16> to vector<1x16x16x384xbf16>
    %30 = vector.shape_cast %29 : vector<1x16x16x384xbf16> to vector<256x384xbf16>
    %c1 = arith.constant 1 : index
    %c0_11 = arith.constant 0 : index
    %c0_12 = arith.constant 0 : index
    %31 = vector.load %arg2[%c1, %c0_11, %c0_12] : memref<3x384x128xbf16, #tpu.memory_space<vmem>>, vector<1x384x128xbf16>
    %32 = vector.shape_cast %31 : vector<1x384x128xbf16> to vector<384x128xbf16>
    %cst_13 = arith.constant dense<0.000000e+00> : vector<256x128xf32>
    %33 = tpu.matmul %30, %32, %cst_13 {dimension_numbers = #tpu.dot_dimension_numbers<[1], [0], [0], [1], [0, 0, 1, 1], [], []>} : vector<256x384xbf16>, vector<384x128xbf16>, vector<256x128xf32> -> vector<256x128xf32>
    %34 = arith.addf %28, %33 : vector<256x128xf32>
    %35 = vector.extract_strided_slice %21 {offsets = [0, 2, 0, 0], sizes = [1, 16, 16, 384], strides = [1, 1, 1, 1]} : vector<1x18x16x384xbf16> to vector<1x16x16x384xbf16>
    %36 = vector.shape_cast %35 : vector<1x16x16x384xbf16> to vector<256x384xbf16>
    %c2 = arith.constant 2 : index
    %c0_14 = arith.constant 0 : index
    %c0_15 = arith.constant 0 : index
    %37 = vector.load %arg2[%c2, %c0_14, %c0_15] : memref<3x384x128xbf16, #tpu.memory_space<vmem>>, vector<1x384x128xbf16>
    %38 = vector.shape_cast %37 : vector<1x384x128xbf16> to vector<384x128xbf16>
    %cst_16 = arith.constant dense<0.000000e+00> : vector<256x128xf32>
    %39 = tpu.matmul %36, %38, %cst_16 {dimension_numbers = #tpu.dot_dimension_numbers<[1], [0], [0], [1], [0, 0, 1, 1], [], []>} : vector<256x384xbf16>, vector<384x128xbf16>, vector<256x128xf32> -> vector<256x128xf32>
    %40 = arith.addf %34, %39 : vector<256x128xf32>
    %cst_17 = arith.constant 0.000000e+00 : f32
    %41 = vector.broadcast %cst_17 : f32 to vector<256x128xf32>
    %42 = arith.maximumf %40, %41 : vector<256x128xf32>
    %43 = vector.shape_cast %42 : vector<256x128xf32> to vector<1x16x16x128xf32>
    %44 = arith.truncf %43 : vector<1x16x16x128xf32> to vector<1x16x16x128xbf16>
    %45 = arith.extf %44 : vector<1x16x16x128xbf16> to vector<1x16x16x128xf32>
    %46 = tpu.iota {dimensions = array<i32: 2>} : vector<1x1x16x128xi32>
    %c0_i32_18 = arith.constant 0 : i32
    %47 = vector.broadcast %c0_i32_18 : i32 to vector<1x1x16x128xi32>
    %48 = arith.cmpi eq, %46, %47 : vector<1x1x16x128xi32>
    %c1_i32_19 = arith.constant 1 : i32
    %49 = tpu.dynamic_rotate %45 by %c1_i32_19 dim 2 : vector<1x16x16x128xf32>, i32 -> vector<1x16x16x128xf32>
    %cst_20 = arith.constant 0.000000e+00 : f32
    %50 = vector.shape_cast %48 : vector<1x1x16x128xi1> to vector<1x1x16x128xi1>
    %51 = vector.broadcast %50 : vector<1x1x16x128xi1> to vector<1x16x16x128xi1>
    %52 = vector.broadcast %cst_20 : f32 to vector<1x16x16x128xf32>
    %53 = arith.select %51, %52, %49 : vector<1x16x16x128xi1>, vector<1x16x16x128xf32>
    %54 = arith.truncf %53 : vector<1x16x16x128xf32> to vector<1x16x16x128xbf16>
    %c15_i32_21 = arith.constant 15 : i32
    %55 = vector.broadcast %c15_i32_21 : i32 to vector<1x1x16x128xi32>
    %56 = arith.cmpi eq, %46, %55 : vector<1x1x16x128xi32>
    %c15_i32_22 = arith.constant 15 : i32
    %57 = tpu.dynamic_rotate %45 by %c15_i32_22 dim 2 : vector<1x16x16x128xf32>, i32 -> vector<1x16x16x128xf32>
    %cst_23 = arith.constant 0.000000e+00 : f32
    %58 = vector.shape_cast %56 : vector<1x1x16x128xi1> to vector<1x1x16x128xi1>
    %59 = vector.broadcast %58 : vector<1x1x16x128xi1> to vector<1x16x16x128xi1>
    %60 = vector.broadcast %cst_23 : f32 to vector<1x16x16x128xf32>
    %61 = arith.select %59, %60, %57 : vector<1x16x16x128xi1>, vector<1x16x16x128xf32>
    %62 = arith.truncf %61 : vector<1x16x16x128xf32> to vector<1x16x16x128xbf16>
    %63 = tpu.concatenate %54, %44, %62 in 3 : vector<1x16x16x128xbf16>, vector<1x16x16x128xbf16>, vector<1x16x16x128xbf16> -> vector<1x16x16x384xbf16>
    %cst_24 = arith.constant 0.000000e+00 : bf16
    %64 = vector.broadcast %cst_24 : bf16 to vector<1x1x16x384xbf16>
    %65 = tpu.concatenate %64, %63, %64 in 1 : vector<1x1x16x384xbf16>, vector<1x16x16x384xbf16>, vector<1x1x16x384xbf16> -> vector<1x18x16x384xbf16>
    %cst_25 = arith.constant 0.000000e+00 : f32
    %66 = vector.broadcast %cst_25 : f32 to vector<256x128xf32>
    %67 = vector.extract_strided_slice %65 {offsets = [0, 0, 0, 0], sizes = [1, 16, 16, 384], strides = [1, 1, 1, 1]} : vector<1x18x16x384xbf16> to vector<1x16x16x384xbf16>
    %68 = vector.shape_cast %67 : vector<1x16x16x384xbf16> to vector<256x384xbf16>
    %c0_26 = arith.constant 0 : index
    %c0_27 = arith.constant 0 : index
    %c0_28 = arith.constant 0 : index
    %69 = vector.load %arg3[%c0_26, %c0_27, %c0_28] : memref<3x384x128xbf16, #tpu.memory_space<vmem>>, vector<1x384x128xbf16>
    %70 = vector.shape_cast %69 : vector<1x384x128xbf16> to vector<384x128xbf16>
    %cst_29 = arith.constant dense<0.000000e+00> : vector<256x128xf32>
    %71 = tpu.matmul %68, %70, %cst_29 {dimension_numbers = #tpu.dot_dimension_numbers<[1], [0], [0], [1], [0, 0, 1, 1], [], []>} : vector<256x384xbf16>, vector<384x128xbf16>, vector<256x128xf32> -> vector<256x128xf32>
    %72 = arith.addf %66, %71 : vector<256x128xf32>
    %73 = vector.extract_strided_slice %65 {offsets = [0, 1, 0, 0], sizes = [1, 16, 16, 384], strides = [1, 1, 1, 1]} : vector<1x18x16x384xbf16> to vector<1x16x16x384xbf16>
    %74 = vector.shape_cast %73 : vector<1x16x16x384xbf16> to vector<256x384xbf16>
    %c1_30 = arith.constant 1 : index
    %c0_31 = arith.constant 0 : index
    %c0_32 = arith.constant 0 : index
    %75 = vector.load %arg3[%c1_30, %c0_31, %c0_32] : memref<3x384x128xbf16, #tpu.memory_space<vmem>>, vector<1x384x128xbf16>
    %76 = vector.shape_cast %75 : vector<1x384x128xbf16> to vector<384x128xbf16>
    %cst_33 = arith.constant dense<0.000000e+00> : vector<256x128xf32>
    %77 = tpu.matmul %74, %76, %cst_33 {dimension_numbers = #tpu.dot_dimension_numbers<[1], [0], [0], [1], [0, 0, 1, 1], [], []>} : vector<256x384xbf16>, vector<384x128xbf16>, vector<256x128xf32> -> vector<256x128xf32>
    %78 = arith.addf %72, %77 : vector<256x128xf32>
    %79 = vector.extract_strided_slice %65 {offsets = [0, 2, 0, 0], sizes = [1, 16, 16, 384], strides = [1, 1, 1, 1]} : vector<1x18x16x384xbf16> to vector<1x16x16x384xbf16>
    %80 = vector.shape_cast %79 : vector<1x16x16x384xbf16> to vector<256x384xbf16>
    %c2_34 = arith.constant 2 : index
    %c0_35 = arith.constant 0 : index
    %c0_36 = arith.constant 0 : index
    %81 = vector.load %arg3[%c2_34, %c0_35, %c0_36] : memref<3x384x128xbf16, #tpu.memory_space<vmem>>, vector<1x384x128xbf16>
    %82 = vector.shape_cast %81 : vector<1x384x128xbf16> to vector<384x128xbf16>
    %cst_37 = arith.constant dense<0.000000e+00> : vector<256x128xf32>
    %83 = tpu.matmul %80, %82, %cst_37 {dimension_numbers = #tpu.dot_dimension_numbers<[1], [0], [0], [1], [0, 0, 1, 1], [], []>} : vector<256x384xbf16>, vector<384x128xbf16>, vector<256x128xf32> -> vector<256x128xf32>
    %84 = arith.addf %78, %83 : vector<256x128xf32>
    %85 = vector.shape_cast %0 : vector<1x16x16x128xbf16> to vector<256x128xbf16>
    %c0_38 = arith.constant 0 : index
    %c0_39 = arith.constant 0 : index
    %86 = vector.load %arg4[%c0_38, %c0_39] : memref<128x128xbf16, #tpu.memory_space<vmem>>, vector<128x128xbf16>
    %cst_40 = arith.constant dense<0.000000e+00> : vector<256x128xf32>
    %87 = tpu.matmul %85, %86, %cst_40 {dimension_numbers = #tpu.dot_dimension_numbers<[1], [0], [0], [1], [0, 0, 1, 1], [], []>} : vector<256x128xbf16>, vector<128x128xbf16>, vector<256x128xf32> -> vector<256x128xf32>
    %c0_41 = arith.constant 0 : index
    %c0_42 = arith.constant 0 : index
    %88 = vector.load %arg5[%c0_41, %c0_42] : memref<1x128xf32, #tpu.memory_space<vmem>>, vector<1x128xf32>
    %89 = vector.shape_cast %88 : vector<1x128xf32> to vector<128xf32>
    %90 = vector.shape_cast %89 : vector<128xf32> to vector<1x128xf32>
    %91 = vector.broadcast %90 : vector<1x128xf32> to vector<256x128xf32>
    %92 = arith.addf %87, %91 : vector<256x128xf32>
    %93 = arith.addf %84, %92 : vector<256x128xf32>
    %cst_43 = arith.constant 0.000000e+00 : f32
    %94 = vector.broadcast %cst_43 : f32 to vector<256x128xf32>
    %95 = arith.maximumf %93, %94 : vector<256x128xf32>
    %96 = vector.shape_cast %95 : vector<256x128xf32> to vector<1x16x16x128xf32>
    %c0_44 = arith.constant 0 : index
    %c0_45 = arith.constant 0 : index
    %c0_46 = arith.constant 0 : index
    %c0_47 = arith.constant 0 : index
    %97 = vector.load %arg6[%c0_44, %c0_45, %c0_46, %c0_47] : memref<1x16x16x128xf32, #tpu.memory_space<vmem>>, vector<1x16x16x128xf32>
    tpu.vector_store %arg6[%c0_44, %c0_45, %c0_46, %c0_47], %96 {strides = array<i32>} : memref<1x16x16x128xf32, #tpu.memory_space<vmem>>, vector<1x16x16x128xf32>,
    return
  }
  func.func @transform_0(%arg0: i32) -> (i32, i32, i32, i32) {
    %c0_i32 = arith.constant 0 : i32
    %c0_i32_0 = arith.constant 0 : i32
    %c0_i32_1 = arith.constant 0 : i32
    %c0_i32_2 = arith.constant 0 : i32
    return %arg0, %c0_i32, %c0_i32_0, %c0_i32_1 : i32, i32, i32, i32
  }
  func.func @transform_1(%arg0: i32) -> (i32, i32, i32) {
    %c0_i32 = arith.constant 0 : i32
    %c0_i32_0 = arith.constant 0 : i32
    %c0_i32_1 = arith.constant 0 : i32
    %c0_i32_2 = arith.constant 0 : i32
    return %c0_i32, %c0_i32_0, %c0_i32_1 : i32, i32, i32
  }
  func.func @transform_2(%arg0: i32) -> (i32, i32, i32) {
    %c0_i32 = arith.constant 0 : i32
    %c0_i32_0 = arith.constant 0 : i32
    %c0_i32_1 = arith.constant 0 : i32
    %c0_i32_2 = arith.constant 0 : i32
    return %c0_i32, %c0_i32_0, %c0_i32_1 : i32, i32, i32
  }
  func.func @transform_3(%arg0: i32) -> (i32, i32) {
    %c0_i32 = arith.constant 0 : i32
    %c0_i32_0 = arith.constant 0 : i32
    %c0_i32_1 = arith.constant 0 : i32
    return %c0_i32, %c0_i32_0 : i32, i32
  }
  func.func @transform_4(%arg0: i32) -> (i32, i32) {
    %c0_i32 = arith.constant 0 : i32
    %c0_i32_0 = arith.constant 0 : i32
    %c0_i32_1 = arith.constant 0 : i32
    return %c0_i32, %c0_i32_0 : i32, i32
  }
  func.func @transform_5(%arg0: i32) -> (i32, i32, i32, i32) {
    %c0_i32 = arith.constant 0 : i32
    %c0_i32_0 = arith.constant 0 : i32
    %c0_i32_1 = arith.constant 0 : i32
    %c0_i32_2 = arith.constant 0 : i32
    return %arg0, %c0_i32, %c0_i32_0, %c0_i32_1 : i32, i32, i32, i32
  }
}

</mosaic_0001>

<llo_original>
// kernel: tpu_custom_call.1
$region0: #{tpu_custom_call.1}
  #allocation0 [shape = 'u32[]', space=smem, size = 0x4, offset = 0x4, fixed_abs, tag = 'smem constant byte address 0x4 - core index']
  #allocation1 [shape = 'u32[144,128]{1,0:T(1,128)}', space=vmem, size = 0x12000, scoped, tag = 'internal scratch']
  %s0 = inlined_call_operand.hbm [shape: bf16[2,16,16,128], index: 0, kind: input, shape index: {}]
  %s1 = inlined_call_operand.hbm [shape: bf16[3,384,128], index: 1, kind: input, shape index: {}]
  %s2 = inlined_call_operand.hbm [shape: bf16[3,384,128], index: 2, kind: input, shape index: {}]
  %s3 = inlined_call_operand.hbm [shape: bf16[128,128], index: 3, kind: input, shape index: {}]
  %s4 = inlined_call_operand.vmem [shape: f32[1,128], index: 4, kind: input, shape index: {}]
  %s5 = inlined_call_operand.hbm [shape: f32[2,16,16,128], index: 5, kind: output, shape index: {}]
  %s6 = sld [smem:[#allocation0]]
  $region69: #{tpu_custom_call.1} parent=0
    _
  %s8 = ssub.s32 1, %s6
  %s9 = scalar_select 0, %s8, %s6
  $region1: #{tpu_custom_call.1} parent=0
    #allocation2 [shape = 'u8[131072]{0}', space=vmem, size = 0x20000, scoped, tag = 'input window, operand 0']
    #allocation3 [shape = 's32[2]{0}', space=sflag, size = 0x8, scoped, tag = 'scoped memory for tpu_custom_call.1']
    #allocation4 [shape = 's32[2]{0}', space=sflag, size = 0x8, scoped, tag = 'scoped memory for tpu_custom_call.1']
    #allocation5 [shape = 'u8[294912]{0}', space=vmem, size = 0x48000, scoped, tag = 'input window, operand 1, single buffered']
    #allocation6 [shape = 's32[1]{0}', space=sflag, size = 0x4, scoped, tag = 'scoped memory for tpu_custom_call.1']
    #allocation7 [shape = 'u8[294912]{0}', space=vmem, size = 0x48000, scoped, tag = 'input window, operand 2, single buffered']
    #allocation8 [shape = 'u8[32768]{0}', space=vmem, size = 0x8000, scoped, tag = 'input window, operand 3, single buffered']
    #allocation9 [shape = 's32[1]{0}', space=sflag, size = 0x4, scoped, tag = 'scoped memory for tpu_custom_call.1']
    #allocation10 [shape = 'u8[262144]{0}', space=vmem, size = 0x40000, scoped, tag = 'output window, operand 0']
    %10 = vsyncpa [#allocation3], 0
    %s11 = scalar_lea.sflag [#allocation3], 1
    %12 = vsyncpa %s11, 0
    %13 = vsyncpa [#allocation6], 0
    %14 = vsyncpa [#allocation9], 0
    %15 = vsyncpa [#allocation4], 0
    %s16 = scalar_lea.sflag [#allocation4], 1
    %17 = vsyncpa %s16, 0
    loop: start=0, step=1, limit=4
    $region2: #{tpu_custom_call.1} parent=1 // loop_pre_header
      _
    $region3: #{tpu_custom_call.1} parent=1 // loop_header
      %s19 = sphi 0, %s23
      %p20 = scmp.ge.s32.totalorder %s19, 4
      %s29 = sphi 0, %s31
      %s32 = sphi 0, %s29
      %s33 = sphi 0, %s32
      %s49 = sphi 0, %s33
      %s53 = sphi 0, %s53
      %s55 = sphi 0, %s53
      %s56 = sphi 0, %s55
      %s70 = sphi 0, %s56
      %s74 = sphi 0, %s74
      %s76 = sphi 0, %s74
      %s77 = sphi 0, %s76
      %s91 = sphi 0, %s77
      %s95 = sphi 0, %s95
      %s97 = sphi 0, %s95
      %s98 = sphi 0, %s97
      %s112 = sphi 0, %s98
      %s116 = sphi 0, %s116
      %s118 = sphi 0, %s116
      %s119 = sphi 0, %s118
      %s133 = sphi 0, %s119
      %s139 = sphi 0, %s141
      %s142 = sphi 0, %s139
      %s143 = sphi 0, %s142
      %s159 = sphi 0, %s143
    $region4: #{tpu_custom_call.1} parent=1 // loop_header_branch
      %22 = sbr.rel (%p20) target = $region8
    $region5: #{tpu_custom_call.1} parent=1 // loop_body
      %s24 = ssub.s32 %s19, 1
      %s25 = ssub.s32 %s19, 2
      %s26 = sadd.s32 %s19, 1
      %s27 = ssub.s32 %s19, %s26
      %p28 = scmp.eq.s32.totalorder %s27, 0
      %s30 = sadd.s32 %s29, 1
      %s31 = scalar_select %p28, %s29, %s30
      %p34 = pneg %p28
      %p35 = scmp.eq.s32.totalorder %s19, 1
      %p36 = por %p34, %p35
      %p37 = scmp.ne.s32.totalorder %s29, %s32
      %p38 = scmp.eq.s32.totalorder %s19, 0
      %p39 = por %p37, %p38
      %p40 = scmp.ne.s32.totalorder %s29, %s32
      %p41 = scmp.eq.s32.totalorder %s24, 1
      %p42 = por %p40, %p41
      %p43 = scmp.ne.s32.totalorder %s32, %s33
      %p44 = scmp.eq.s32.totalorder %s24, 0
      %p45 = por %p43, %p44
      %p46 = scmp.ne.s32.totalorder %s32, %s33
      %p47 = scmp.eq.s32.totalorder %s25, 1
      %p48 = por %p46, %p47
      %p50 = scmp.ne.s32.totalorder %s33, %s49
      %p51 = scmp.eq.s32.totalorder %s25, 0
      %p52 = por %p50, %p51
      %s54 = sadd.s32 %s53, 1
      %p57 = scmp.eq.s32.totalorder %s19, 1
      %p58 = scmp.ne.s32.totalorder %s53, %s55
      %p59 = scmp.eq.s32.totalorder %s19, 0
      %p60 = por %p58, %p59
      %p61 = scmp.ne.s32.totalorder %s53, %s55
      %p62 = scmp.eq.s32.totalorder %s24, 1
      %p63 = por %p61, %p62
      %p64 = scmp.ne.s32.totalorder %s55, %s56
      %p65 = scmp.eq.s32.totalorder %s24, 0
      %p66 = por %p64, %p65
      %p67 = scmp.ne.s32.totalorder %s55, %s56
      %p68 = scmp.eq.s32.totalorder %s25, 1
      %p69 = por %p67, %p68
      %p71 = scmp.ne.s32.totalorder %s56, %s70
      %p72 = scmp.eq.s32.totalorder %s25, 0
      %p73 = por %p71, %p72
      %s75 = sadd.s32 %s74, 1
      %p78 = scmp.eq.s32.totalorder %s19, 1
      %p79 = scmp.ne.s32.totalorder %s74, %s76
      %p80 = scmp.eq.s32.totalorder %s19, 0
      %p81 = por %p79, %p80
      %p82 = scmp.ne.s32.totalorder %s74, %s76
      %p83 = scmp.eq.s32.totalorder %s24, 1
      %p84 = por %p82, %p83
      %p85 = scmp.ne.s32.totalorder %s76, %s77
      %p86 = scmp.eq.s32.totalorder %s24, 0
      %p87 = por %p85, %p86
      %p88 = scmp.ne.s32.totalorder %s76, %s77
      %p89 = scmp.eq.s32.totalorder %s25, 1
      %p90 = por %p88, %p89
      %p92 = scmp.ne.s32.totalorder %s77, %s91
      %p93 = scmp.eq.s32.totalorder %s25, 0
      %p94 = por %p92, %p93
      %s96 = sadd.s32 %s95, 1
      %p99 = scmp.eq.s32.totalorder %s19, 1
      %p100 = scmp.ne.s32.totalorder %s95, %s97
      %p101 = scmp.eq.s32.totalorder %s19, 0
      %p102 = por %p100, %p101
      %p103 = scmp.ne.s32.totalorder %s95, %s97
      %p104 = scmp.eq.s32.totalorder %s24, 1
      %p105 = por %p103, %p104
      %p106 = scmp.ne.s32.totalorder %s97, %s98
      %p107 = scmp.eq.s32.totalorder %s24, 0
      %p108 = por %p106, %p107
      %p109 = scmp.ne.s32.totalorder %s97, %s98
      %p110 = scmp.eq.s32.totalorder %s25, 1
      %p111 = por %p109, %p110
      %p113 = scmp.ne.s32.totalorder %s98, %s112
      %p114 = scmp.eq.s32.totalorder %s25, 0
      %p115 = por %p113, %p114
      %s117 = sadd.s32 %s116, 1
      %p120 = scmp.eq.s32.totalorder %s19, 1
      %p121 = scmp.ne.s32.totalorder %s116, %s118
      %p122 = scmp.eq.s32.totalorder %s19, 0
      %p123 = por %p121, %p122
      %p124 = scmp.ne.s32.totalorder %s116, %s118
      %p125 = scmp.eq.s32.totalorder %s24, 1
      %p126 = por %p124, %p125
      %p127 = scmp.ne.s32.totalorder %s118, %s119
      %p128 = scmp.eq.s32.totalorder %s24, 0
      %p129 = por %p127, %p128
      %p130 = scmp.ne.s32.totalorder %s118, %s119
      %p131 = scmp.eq.s32.totalorder %s25, 1
      %p132 = por %p130, %p131
      %p134 = scmp.ne.s32.totalorder %s119, %s133
      %p135 = scmp.eq.s32.totalorder %s25, 0
      %p136 = por %p134, %p135
      %s137 = ssub.s32 %s19, %s26
      %p138 = scmp.eq.s32.totalorder %s137, 0
      %s140 = sadd.s32 %s139, 1
      %s141 = scalar_select %p138, %s139, %s140
      %p144 = pneg %p138
      %p145 = scmp.eq.s32.totalorder %s19, 1
      %p146 = por %p144, %p145
      %p147 = scmp.ne.s32.totalorder %s139, %s142
      %p148 = scmp.eq.s32.totalorder %s19, 0
      %p149 = por %p147, %p148
      %p150 = scmp.ne.s32.totalorder %s139, %s142
      %p151 = scmp.eq.s32.totalorder %s24, 1
      %p152 = por %p150, %p151
      %p153 = scmp.ne.s32.totalorder %s142, %s143
      %p154 = scmp.eq.s32.totalorder %s24, 0
      %p155 = por %p153, %p154
      %p156 = scmp.ne.s32.totalorder %s142, %s143
      %p157 = scmp.eq.s32.totalorder %s25, 1
      %p158 = por %p156, %p157
      %p160 = scmp.ne.s32.totalorder %s143, %s159
      %p161 = scmp.eq.s32.totalorder %s25, 0
      %p162 = por %p160, %p161
      %p163 = scmp.le.s32.totalorder 1, %s19
      %p164 = scmp.lt.s32.totalorder %s19, 3
      %p165 = pnand %p163, %p164
      %p166 = pneg %p165
      // Predicated region
      $region9: #{tpu_custom_call.1} parent=5 // pred_check
        _
      $region10: #{tpu_custom_call.1} parent=5 // pred_check_branch
        %168 = sbr.rel (%p165) target = $region12
      $region11: #{tpu_custom_call.1} parent=5 // pred_region
        %s169 = ssub.s32 %s19, 1
        // Predicated region
        $region13: #{tpu_custom_call.1} parent=11 // pred_check
          %p170 = pneg %p66
        $region14: #{tpu_custom_call.1} parent=11 // pred_check_branch
          %172 = sbr.rel (%p170) target = $region16
        $region15: #{tpu_custom_call.1} parent=11 // pred_region
          %s174 = ssub.s32 9216, 9216
          %175 = vsyncadd [#allocation6], %s174
          %s176 = sshll.u32 [#allocation5], 4
          %s177 = int_to_ptr.vmem [resolvable:$true] %s176
          %182 = dma.hbm_to_vmem [thread:$0]  %s1, 9216, %s177, [#allocation6], 64, 64, 4
        $region16: #{tpu_custom_call.1} parent=11 // pred_fallthru
          _
        // Predicated region
        $region17: #{tpu_custom_call.1} parent=11 // pred_check
          %p183 = pneg %p87
        $region18: #{tpu_custom_call.1} parent=11 // pred_check_branch
          %185 = sbr.rel (%p183) target = $region20
        $region19: #{tpu_custom_call.1} parent=11 // pred_region
          %s187 = ssub.s32 9216, 9216
          %188 = vsyncadd [#allocation6], %s187
          %s189 = sshll.u32 [#allocation7], 4
          %s190 = int_to_ptr.vmem [resolvable:$true] %s189
          %195 = dma.hbm_to_vmem [thread:$0]  %s2, 9216, %s190, [#allocation6], 64, 64, 4
        $region20: #{tpu_custom_call.1} parent=11 // pred_fallthru
          _
        // Predicated region
        $region21: #{tpu_custom_call.1} parent=11 // pred_check
          %p196 = pneg %p108
        $region22: #{tpu_custom_call.1} parent=11 // pred_check_branch
          %198 = sbr.rel (%p196) target = $region24
        $region23: #{tpu_custom_call.1} parent=11 // pred_region
          %s200 = ssub.s32 1024, 1024
          %201 = vsyncadd [#allocation9], %s200
          %s202 = sshll.u32 [#allocation8], 4
          %s203 = int_to_ptr.vmem [resolvable:$true] %s202
          %208 = dma.hbm_to_vmem [thread:$0]  %s3, 1024, %s203, [#allocation9], 64, 64, 4
        $region24: #{tpu_custom_call.1} parent=11 // pred_fallthru
          _
        // Predicated region
        $region25: #{tpu_custom_call.1} parent=11 // pred_check
          %p209 = pneg %p129
        $region26: #{tpu_custom_call.1} parent=11 // pred_check_branch
          %211 = sbr.rel (%p209) target = $region28
        $region27: #{tpu_custom_call.1} parent=11 // pred_region
          _
        $region28: #{tpu_custom_call.1} parent=11 // pred_fallthru
          _
      $region12: #{tpu_custom_call.1} parent=5 // pred_fallthru
        _
      %p212 = scmp.lt.s32.totalorder %s19, 2
      // Predicated region
      $region29: #{tpu_custom_call.1} parent=5 // pred_check
        %p213 = pneg %p212
      $region30: #{tpu_custom_call.1} parent=5 // pred_check_branch
        %215 = sbr.rel (%p213) target = $region32
      $region31: #{tpu_custom_call.1} parent=5 // pred_region
        // Predicated region
        $region33: #{tpu_custom_call.1} parent=31 // pred_check
          %p216 = pneg %p39
        $region34: #{tpu_custom_call.1} parent=31 // pred_check_branch
          %218 = sbr.rel (%p216) target = $region36
        $region35: #{tpu_custom_call.1} parent=31 // pred_region
          %s219 = sand.u32 %s29, 1
          %s220 = scalar_lea.sflag [#allocation3], %s219
          %s221 = sand.u32 %s29, 1
          %s222 = smul.addr %s221, 128
          %s223 = scalar_lea.vmem [#allocation2], %s222
          %s225 = ssub.s32 2048, 2048
          %226 = vsyncadd %s220, %s225
          %s227 = smul.addr %s19, 32
          %s228 = smul.addr %s227, 64
          %s229 = scalar_lea.hbm %s0, %s228
          %s230 = sshll.u32 %s223, 4
          %s231 = int_to_ptr.vmem [resolvable:$true] %s230
          %236 = dma.hbm_to_vmem [thread:$0]  %s229, 2048, %s231, %s220, 64, 64, 4
        $region36: #{tpu_custom_call.1} parent=31 // pred_fallthru
          _
      $region32: #{tpu_custom_call.1} parent=5 // pred_fallthru
        _
      %p237 = scmp.le.s32.totalorder 1, %s19
      %p238 = scmp.lt.s32.totalorder %s19, 3
      %p239 = pnand %p237, %p238
      %p240 = pneg %p239
      // Predicated region
      $region37: #{tpu_custom_call.1} parent=5 // pred_check
        _
      $region38: #{tpu_custom_call.1} parent=5 // pred_check_branch
        %242 = sbr.rel (%p239) target = $region40
      $region39: #{tpu_custom_call.1} parent=5 // pred_region
        %s243 = ssub.s32 %s19, 1
        %s244 = sand.u32 %s32, 1
        %s245 = scalar_lea.sflag [#allocation3], %s244
        %s246 = sand.u32 %s32, 1
        %s247 = smul.addr %s246, 128
        %s248 = scalar_lea.vmem [#allocation2], %s247
        // Predicated region
        $region41: #{tpu_custom_call.1} parent=39 // pred_check
          %p249 = pneg %p45
        $region42: #{tpu_custom_call.1} parent=39 // pred_check_branch
          %251 = sbr.rel (%p249) target = $region44
        $region43: #{tpu_custom_call.1} parent=39 // pred_region
          %252 = dma.done %s245, 2048
        $region44: #{tpu_custom_call.1} parent=39 // pred_fallthru
          _
        // Predicated region
        $region45: #{tpu_custom_call.1} parent=39 // pred_check
          %p253 = pneg %p66
        $region46: #{tpu_custom_call.1} parent=39 // pred_check_branch
          %255 = sbr.rel (%p253) target = $region48
        $region47: #{tpu_custom_call.1} parent=39 // pred_region
          %256 = dma.done [#allocation6], 9216
        $region48: #{tpu_custom_call.1} parent=39 // pred_fallthru
          _
        // Predicated region
        $region49: #{tpu_custom_call.1} parent=39 // pred_check
          %p257 = pneg %p87
        $region50: #{tpu_custom_call.1} parent=39 // pred_check_branch
          %259 = sbr.rel (%p257) target = $region52
        $region51: #{tpu_custom_call.1} parent=39 // pred_region
          %260 = dma.done [#allocation6], 9216
        $region52: #{tpu_custom_call.1} parent=39 // pred_fallthru
          _
        // Predicated region
        $region53: #{tpu_custom_call.1} parent=39 // pred_check
          %p261 = pneg %p108
        $region54: #{tpu_custom_call.1} parent=39 // pred_check_branch
          %263 = sbr.rel (%p261) target = $region56
        $region55: #{tpu_custom_call.1} parent=39 // pred_region
          %264 = dma.done [#allocation9], 1024
        $region56: #{tpu_custom_call.1} parent=39 // pred_fallthru
          _
        %s265 = sand.u32 %s32, 1
        %s266 = scalar_lea.sflag [#allocation3], %s265
        %s267 = sand.u32 %s32, 1
        %s268 = smul.addr %s267, 128
        %s269 = scalar_lea.vmem [#allocation2], %s268
        %p270 = pneg %p45
        %p271 = pneg %p42
        %p272 = pneg %p66
        %p273 = pneg %p63
        %p274 = pneg %p87
        %p275 = pneg %p84
        %p276 = pneg %p108
        %p277 = pneg %p105
        %p278 = pneg %p129
        %p279 = pneg %p126
        %p280 = pneg %p155
        %p281 = pneg %p152
        %s282 = sand.u32 %s142, 1
        %s283 = scalar_lea.sflag [#allocation4], %s282
        %s284 = sand.u32 %s142, 1
        %s285 = smul.addr %s284, 256
        %s286 = scalar_lea.vmem [#allocation10], %s285
        %v288 = vld [vmem:[%s248] sm:$0xf]
        %v289 = vld [vmem:[%s248 + $0x4] sm:$0xf]
        %v290 = vld [vmem:[%s248 + $0x8] sm:$0xf]
        %v291 = vld [vmem:[%s248 + $0xc] sm:$0xf]
        %v292 = vld [vmem:[%s248 + $0x10] sm:$0xf]
        %v293 = vld [vmem:[%s248 + $0x14] sm:$0xf]
        %v294 = vld [vmem:[%s248 + $0x18] sm:$0xf]
        %v295 = vld [vmem:[%s248 + $0x1c] sm:$0xf]
        %v296 = vld [vmem:[%s248 + $0x20] sm:$0xf]
        %v297 = vld [vmem:[%s248 + $0x24] sm:$0xf]
        %v298 = vld [vmem:[%s248 + $0x28] sm:$0xf]
        %v299 = vld [vmem:[%s248 + $0x2c] sm:$0xf]
        %v300 = vld [vmem:[%s248 + $0x30] sm:$0xf]
        %v301 = vld [vmem:[%s248 + $0x34] sm:$0xf]
        %v302 = vld [vmem:[%s248 + $0x38] sm:$0xf]
        %v303 = vld [vmem:[%s248 + $0x3c] sm:$0xf]
        %v304 = vld [vmem:[%s248 + $0x40] sm:$0xf]
        %v305 = vld [vmem:[%s248 + $0x44] sm:$0xf]
        %v306 = vld [vmem:[%s248 + $0x48] sm:$0xf]
        %v307 = vld [vmem:[%s248 + $0x4c] sm:$0xf]
        %v308 = vld [vmem:[%s248 + $0x50] sm:$0xf]
        %v309 = vld [vmem:[%s248 + $0x54] sm:$0xf]
        %v310 = vld [vmem:[%s248 + $0x58] sm:$0xf]
        %v311 = vld [vmem:[%s248 + $0x5c] sm:$0xf]
        %v312 = vld [vmem:[%s248 + $0x60] sm:$0xf]
        %v313 = vld [vmem:[%s248 + $0x64] sm:$0xf]
        %v314 = vld [vmem:[%s248 + $0x68] sm:$0xf]
        %v315 = vld [vmem:[%s248 + $0x6c] sm:$0xf]
        %v316 = vld [vmem:[%s248 + $0x70] sm:$0xf]
        %v317 = vld [vmem:[%s248 + $0x74] sm:$0xf]
        %v318 = vld [vmem:[%s248 + $0x78] sm:$0xf]
        %v319 = vld [vmem:[%s248 + $0x7c] sm:$0xf]
        %v320 = vunpack.c.l.bf16 %v288
        %v321 = vunpack.c.l.bf16 %v289
        %v322 = vunpack.c.l.bf16 %v290
        %v323 = vunpack.c.l.bf16 %v291
        %v324 = vunpack.c.l.bf16 %v292
        %v325 = vunpack.c.l.bf16 %v293
        %v326 = vunpack.c.l.bf16 %v294
        %v327 = vunpack.c.l.bf16 %v295
        %v328 = vunpack.c.l.bf16 %v296
        %v329 = vunpack.c.l.bf16 %v297
        %v330 = vunpack.c.l.bf16 %v298
        %v331 = vunpack.c.l.bf16 %v299
        %v332 = vunpack.c.l.bf16 %v300
        %v333 = vunpack.c.l.bf16 %v301
        %v334 = vunpack.c.l.bf16 %v302
        %v335 = vunpack.c.l.bf16 %v303
        %v336 = vunpack.c.l.bf16 %v304
        %v337 = vunpack.c.l.bf16 %v305
        %v338 = vunpack.c.l.bf16 %v306
        %v339 = vunpack.c.l.bf16 %v307
        %v340 = vunpack.c.l.bf16 %v308
        %v341 = vunpack.c.l.bf16 %v309
        %v342 = vunpack.c.l.bf16 %v310
        %v343 = vunpack.c.l.bf16 %v311
        %v344 = vunpack.c.l.bf16 %v312
        %v345 = vunpack.c.l.bf16 %v313
        %v346 = vunpack.c.l.bf16 %v314
        %v347 = vunpack.c.l.bf16 %v315
        %v348 = vunpack.c.l.bf16 %v316
        %v349 = vunpack.c.l.bf16 %v317
        %v350 = vunpack.c.l.bf16 %v318
        %v351 = vunpack.c.l.bf16 %v319
        %v352 = vlaneseq
        %v353 = vshrl.u32 %v352, 7
        %v354 = vadd.s32 %v353, 8
        %vm355 = vcmp.eq.s32.totalorder %v353, 0
        %vm356 = vcmp.eq.s32.totalorder %v354, 0
        %v357 = vrot.slane %v320, 7
        %v358 = vrot.slane %v322, 7
        %v359 = vrot.slane %v324, 7
        %v360 = vrot.slane %v326, 7
        %v361 = vrot.slane %v328, 7
        %v362 = vrot.slane %v330, 7
        %v363 = vrot.slane %v332, 7
        %v364 = vrot.slane %v334, 7
        %v365 = vrot.slane %v336, 7
        %v366 = vrot.slane %v338, 7
        %v367 = vrot.slane %v340, 7
        %v368 = vrot.slane %v342, 7
        %v369 = vrot.slane %v344, 7
        %v370 = vrot.slane %v346, 7
        %v371 = vrot.slane %v348, 7
        %v372 = vrot.slane %v350, 7
        %v373 = vrot.slane %v321, 7
        %v374 = vrot.slane %v323, 7
        %v375 = vrot.slane %v325, 7
        %v376 = vrot.slane %v327, 7
        %v377 = vrot.slane %v329, 7
        %v378 = vrot.slane %v331, 7
        %v379 = vrot.slane %v333, 7
        %v380 = vrot.slane %v335, 7
        %v381 = vrot.slane %v337, 7
        %v382 = vrot.slane %v339, 7
        %v383 = vrot.slane %v341, 7
        %v384 = vrot.slane %v343, 7
        %v385 = vrot.slane %v345, 7
        %v386 = vrot.slane %v347, 7
        %v387 = vrot.slane %v349, 7
        %v388 = vrot.slane %v351, 7
        %vm389 = vcmp.lt.s32.totalorder %v353, 1
        %v390 = vsel %vm389, %v357, %v373
        %v391 = vsel %vm389, %v358, %v374
        %v392 = vsel %vm389, %v359, %v375
        %v393 = vsel %vm389, %v360, %v376
        %v394 = vsel %vm389, %v361, %v377
        %v395 = vsel %vm389, %v362, %v378
        %v396 = vsel %vm389, %v363, %v379
        %v397 = vsel %vm389, %v364, %v380
        %v398 = vsel %vm389, %v365, %v381
        %v399 = vsel %vm389, %v366, %v382
        %v400 = vsel %vm389, %v367, %v383
        %v401 = vsel %vm389, %v368, %v384
        %v402 = vsel %vm389, %v369, %v385
        %v403 = vsel %vm389, %v370, %v386
        %v404 = vsel %vm389, %v371, %v387
        %v405 = vsel %vm389, %v372, %v388
        %v406 = vsel %vm389, %v373, %v357
        %v407 = vsel %vm389, %v374, %v358
        %v408 = vsel %vm389, %v375, %v359
        %v409 = vsel %vm389, %v376, %v360
        %v410 = vsel %vm389, %v377, %v361
        %v411 = vsel %vm389, %v378, %v362
        %v412 = vsel %vm389, %v379, %v363
        %v413 = vsel %vm389, %v380, %v364
        %v414 = vsel %vm389, %v381, %v365
        %v415 = vsel %vm389, %v382, %v366
        %v416 = vsel %vm389, %v383, %v367
        %v417 = vsel %vm389, %v384, %v368
        %v418 = vsel %vm389, %v385, %v369
        %v419 = vsel %vm389, %v386, %v370
        %v420 = vsel %vm389, %v387, %v371
        %v421 = vsel %vm389, %v388, %v372
        %v422 = vsel %vm355, 1, 0
        %v423 = vsel %vm356, 1, 0
        %vm424 = vcmp.eq.s32.totalorder %v422, 1
        %vm425 = vcmp.eq.s32.totalorder %v423, 1
        %v426 = vsel %vm424, 0.0, %v406
        %v427 = vsel %vm425, 0.0, %v390
        %v428 = vsel %vm424, 0.0, %v407
        %v429 = vsel %vm425, 0.0, %v391
        %v430 = vsel %vm424, 0.0, %v408
        %v431 = vsel %vm425, 0.0, %v392
        %v432 = vsel %vm424, 0.0, %v409
        %v433 = vsel %vm425, 0.0, %v393
        %v434 = vsel %vm424, 0.0, %v410
        %v435 = vsel %vm425, 0.0, %v394
        %v436 = vsel %vm424, 0.0, %v411
        %v437 = vsel %vm425, 0.0, %v395
        %v438 = vsel %vm424, 0.0, %v412
        %v439 = vsel %vm425, 0.0, %v396
        %v440 = vsel %vm424, 0.0, %v413
        %v441 = vsel %vm425, 0.0, %v397
        %v442 = vsel %vm424, 0.0, %v414
        %v443 = vsel %vm425, 0.0, %v398
        %v444 = vsel %vm424, 0.0, %v415
        %v445 = vsel %vm425, 0.0, %v399
        %v446 = vsel %vm424, 0.0, %v416
        %v447 = vsel %vm425, 0.0, %v400
        %v448 = vsel %vm424, 0.0, %v417
        %v449 = vsel %vm425, 0.0, %v401
        %v450 = vsel %vm424, 0.0, %v418
        %v451 = vsel %vm425, 0.0, %v402
        %v452 = vsel %vm424, 0.0, %v419
        %v453 = vsel %vm425, 0.0, %v403
        %v454 = vsel %vm424, 0.0, %v420
        %v455 = vsel %vm425, 0.0, %v404
        %v456 = vsel %vm424, 0.0, %v421
        %v457 = vsel %vm425, 0.0, %v405
        %v458 = vpack.c.bf16 %v427, %v426
        %v459 = vpack.c.bf16 %v429, %v428
        %v460 = vpack.c.bf16 %v431, %v430
        %v461 = vpack.c.bf16 %v433, %v432
        %v462 = vpack.c.bf16 %v435, %v434
        %v463 = vpack.c.bf16 %v437, %v436
        %v464 = vpack.c.bf16 %v439, %v438
        %v465 = vpack.c.bf16 %v441, %v440
        %v466 = vpack.c.bf16 %v443, %v442
        %v467 = vpack.c.bf16 %v445, %v444
        %v468 = vpack.c.bf16 %v447, %v446
        %v469 = vpack.c.bf16 %v449, %v448
        %v470 = vpack.c.bf16 %v451, %v450
        %v471 = vpack.c.bf16 %v453, %v452
        %v472 = vpack.c.bf16 %v455, %v454
        %v473 = vpack.c.bf16 %v457, %v456
        %vm474 = vcmp.eq.s32.totalorder %v353, 15
        %vm475 = vcmp.eq.s32.totalorder %v354, 15
        %v476 = vrot.slane %v320, 1
        %v477 = vrot.slane %v322, 1
        %v478 = vrot.slane %v324, 1
        %v479 = vrot.slane %v326, 1
        %v480 = vrot.slane %v328, 1
        %v481 = vrot.slane %v330, 1
        %v482 = vrot.slane %v332, 1
        %v483 = vrot.slane %v334, 1
        %v484 = vrot.slane %v336, 1
        %v485 = vrot.slane %v338, 1
        %v486 = vrot.slane %v340, 1
        %v487 = vrot.slane %v342, 1
        %v488 = vrot.slane %v344, 1
        %v489 = vrot.slane %v346, 1
        %v490 = vrot.slane %v348, 1
        %v491 = vrot.slane %v350, 1
        %v492 = vrot.slane %v321, 1
        %v493 = vrot.slane %v323, 1
        %v494 = vrot.slane %v325, 1
        %v495 = vrot.slane %v327, 1
        %v496 = vrot.slane %v329, 1
        %v497 = vrot.slane %v331, 1
        %v498 = vrot.slane %v333, 1
        %v499 = vrot.slane %v335, 1
        %v500 = vrot.slane %v337, 1
        %v501 = vrot.slane %v339, 1
        %v502 = vrot.slane %v341, 1
        %v503 = vrot.slane %v343, 1
        %v504 = vrot.slane %v345, 1
        %v505 = vrot.slane %v347, 1
        %v506 = vrot.slane %v349, 1
        %v507 = vrot.slane %v351, 1
        %vm508 = vcmp.lt.s32.totalorder %v353, 7
        %v509 = vsel %vm508, %v476, %v492
        %v510 = vsel %vm508, %v477, %v493
        %v511 = vsel %vm508, %v478, %v494
        %v512 = vsel %vm508, %v479, %v495
        %v513 = vsel %vm508, %v480, %v496
        %v514 = vsel %vm508, %v481, %v497
        %v515 = vsel %vm508, %v482, %v498
        %v516 = vsel %vm508, %v483, %v499
        %v517 = vsel %vm508, %v484, %v500
        %v518 = vsel %vm508, %v485, %v501
        %v519 = vsel %vm508, %v486, %v502
        %v520 = vsel %vm508, %v487, %v503
        %v521 = vsel %vm508, %v488, %v504
        %v522 = vsel %vm508, %v489, %v505
        %v523 = vsel %vm508, %v490, %v506
        %v524 = vsel %vm508, %v491, %v507
        %v525 = vsel %vm508, %v492, %v476
        %v526 = vsel %vm508, %v493, %v477
        %v527 = vsel %vm508, %v494, %v478
        %v528 = vsel %vm508, %v495, %v479
        %v529 = vsel %vm508, %v496, %v480
        %v530 = vsel %vm508, %v497, %v481
        %v531 = vsel %vm508, %v498, %v482
        %v532 = vsel %vm508, %v499, %v483
        %v533 = vsel %vm508, %v500, %v484
        %v534 = vsel %vm508, %v501, %v485
        %v535 = vsel %vm508, %v502, %v486
        %v536 = vsel %vm508, %v503, %v487
        %v537 = vsel %vm508, %v504, %v488
        %v538 = vsel %vm508, %v505, %v489
        %v539 = vsel %vm508, %v506, %v490
        %v540 = vsel %vm508, %v507, %v491
        %v541 = vsel %vm474, 1, 0
        %v542 = vsel %vm475, 1, 0
        %vm543 = vcmp.eq.s32.totalorder %v541, 1
        %vm544 = vcmp.eq.s32.totalorder %v542, 1
        %v545 = vsel %vm543, 0.0, %v509
        %v546 = vsel %vm544, 0.0, %v525
        %v547 = vsel %vm543, 0.0, %v510
        %v548 = vsel %vm544, 0.0, %v526
        %v549 = vsel %vm543, 0.0, %v511
        %v550 = vsel %vm544, 0.0, %v527
        %v551 = vsel %vm543, 0.0, %v512
        %v552 = vsel %vm544, 0.0, %v528
        %v553 = vsel %vm543, 0.0, %v513
        %v554 = vsel %vm544, 0.0, %v529
        %v555 = vsel %vm543, 0.0, %v514
        %v556 = vsel %vm544, 0.0, %v530
        %v557 = vsel %vm543, 0.0, %v515
        %v558 = vsel %vm544, 0.0, %v531
        %v559 = vsel %vm543, 0.0, %v516
        %v560 = vsel %vm544, 0.0, %v532
        %v561 = vsel %vm543, 0.0, %v517
        %v562 = vsel %vm544, 0.0, %v533
        %v563 = vsel %vm543, 0.0, %v518
        %v564 = vsel %vm544, 0.0, %v534
        %v565 = vsel %vm543, 0.0, %v519
        %v566 = vsel %vm544, 0.0, %v535
        %v567 = vsel %vm543, 0.0, %v520
        %v568 = vsel %vm544, 0.0, %v536
        %v569 = vsel %vm543, 0.0, %v521
        %v570 = vsel %vm544, 0.0, %v537
        %v571 = vsel %vm543, 0.0, %v522
        %v572 = vsel %vm544, 0.0, %v538
        %v573 = vsel %vm543, 0.0, %v523
        %v574 = vsel %vm544, 0.0, %v539
        %v575 = vsel %vm543, 0.0, %v524
        %v576 = vsel %vm544, 0.0, %v540
        %v577 = vpack.c.bf16 %v546, %v545
        %v578 = vpack.c.bf16 %v548, %v547
        %v579 = vpack.c.bf16 %v550, %v549
        %v580 = vpack.c.bf16 %v552, %v551
        %v581 = vpack.c.bf16 %v554, %v553
        %v582 = vpack.c.bf16 %v556, %v555
        %v583 = vpack.c.bf16 %v558, %v557
        %v584 = vpack.c.bf16 %v560, %v559
        %v585 = vpack.c.bf16 %v562, %v561
        %v586 = vpack.c.bf16 %v564, %v563
        %v587 = vpack.c.bf16 %v566, %v565
        %v588 = vpack.c.bf16 %v568, %v567
        %v589 = vpack.c.bf16 %v570, %v569
        %v590 = vpack.c.bf16 %v572, %v571
        %v591 = vpack.c.bf16 %v574, %v573
        %v592 = vpack.c.bf16 %v576, %v575
        %v625 = vunpack.c.l.b16 %v288
        %v626 = vunpack.c.l.b16 %v289
        %v627 = vunpack.c.l.b16 %v290
        %v628 = vunpack.c.l.b16 %v291
        %v629 = vunpack.c.l.b16 %v292
        %v630 = vunpack.c.l.b16 %v293
        %v631 = vunpack.c.l.b16 %v294
        %v632 = vunpack.c.l.b16 %v295
        %v633 = vunpack.c.l.b16 %v296
        %v634 = vunpack.c.l.b16 %v297
        %v635 = vunpack.c.l.b16 %v298
        %v636 = vunpack.c.l.b16 %v299
        %v637 = vunpack.c.l.b16 %v300
        %v638 = vunpack.c.l.b16 %v301
        %v639 = vunpack.c.l.b16 %v302
        %v640 = vunpack.c.l.b16 %v303
        %v641 = vunpack.c.l.b16 %v304
        %v642 = vunpack.c.l.b16 %v305
        %v643 = vunpack.c.l.b16 %v306
        %v644 = vunpack.c.l.b16 %v307
        %v645 = vunpack.c.l.b16 %v308
        %v646 = vunpack.c.l.b16 %v309
        %v647 = vunpack.c.l.b16 %v310
        %v648 = vunpack.c.l.b16 %v311
        %v649 = vunpack.c.l.b16 %v312
        %v650 = vunpack.c.l.b16 %v313
        %v651 = vunpack.c.l.b16 %v314
        %v652 = vunpack.c.l.b16 %v315
        %v653 = vunpack.c.l.b16 %v316
        %v654 = vunpack.c.l.b16 %v317
        %v655 = vunpack.c.l.b16 %v318
        %v656 = vunpack.c.l.b16 %v319
        %v657 = vpack.c.b16 %v626, %v625
        %v658 = vpack.c.b16 %v628, %v627
        %v659 = vpack.c.b16 %v630, %v629
        %v660 = vpack.c.b16 %v632, %v631
        %v661 = vpack.c.b16 %v634, %v633
        %v662 = vpack.c.b16 %v636, %v635
        %v663 = vpack.c.b16 %v638, %v637
        %v664 = vpack.c.b16 %v640, %v639
        %v665 = vpack.c.b16 %v642, %v641
        %v666 = vpack.c.b16 %v644, %v643
        %v667 = vpack.c.b16 %v646, %v645
        %v668 = vpack.c.b16 %v648, %v647
        %v669 = vpack.c.b16 %v650, %v649
        %v670 = vpack.c.b16 %v652, %v651
        %v671 = vpack.c.b16 %v654, %v653
        %v672 = vpack.c.b16 %v656, %v655
        %v689 = vld [vmem:[#allocation5] sm:$0xf]
        %v690 = vld [vmem:[#allocation5 + $0x4] sm:$0xf]
        %v691 = vld [vmem:[#allocation5 + $0x8] sm:$0xf]
        %v692 = vld [vmem:[#allocation5 + $0xc] sm:$0xf]
        %v693 = vld [vmem:[#allocation5 + $0x10] sm:$0xf]
        %v694 = vld [vmem:[#allocation5 + $0x14] sm:$0xf]
        %v695 = vld [vmem:[#allocation5 + $0x18] sm:$0xf]
        %v696 = vld [vmem:[#allocation5 + $0x1c] sm:$0xf]
        %v697 = vld [vmem:[#allocation5 + $0x20] sm:$0xf]
        %v698 = vld [vmem:[#allocation5 + $0x24] sm:$0xf]
        %v699 = vld [vmem:[#allocation5 + $0x28] sm:$0xf]
        %v700 = vld [vmem:[#allocation5 + $0x2c] sm:$0xf]
        %v701 = vld [vmem:[#allocation5 + $0x30] sm:$0xf]
        %v702 = vld [vmem:[#allocation5 + $0x34] sm:$0xf]
        %v703 = vld [vmem:[#allocation5 + $0x38] sm:$0xf]
        %v704 = vld [vmem:[#allocation5 + $0x3c] sm:$0xf]
        %v705 = vld [vmem:[#allocation5 + $0x40] sm:$0xf]
        %v706 = vld [vmem:[#allocation5 + $0x44] sm:$0xf]
        %v707 = vld [vmem:[#allocation5 + $0x48] sm:$0xf]
        %v708 = vld [vmem:[#allocation5 + $0x4c] sm:$0xf]
        %v709 = vld [vmem:[#allocation5 + $0x50] sm:$0xf]
        %v710 = vld [vmem:[#allocation5 + $0x54] sm:$0xf]
        %v711 = vld [vmem:[#allocation5 + $0x58] sm:$0xf]
        %v712 = vld [vmem:[#allocation5 + $0x5c] sm:$0xf]
        %v713 = vld [vmem:[#allocation5 + $0x60] sm:$0xf]
        %v714 = vld [vmem:[#allocation5 + $0x64] sm:$0xf]
        %v715 = vld [vmem:[#allocation5 + $0x68] sm:$0xf]
        %v716 = vld [vmem:[#allocation5 + $0x6c] sm:$0xf]
        %v717 = vld [vmem:[#allocation5 + $0x70] sm:$0xf]
        %v718 = vld [vmem:[#allocation5 + $0x74] sm:$0xf]
        %v719 = vld [vmem:[#allocation5 + $0x78] sm:$0xf]
        %v720 = vld [vmem:[#allocation5 + $0x7c] sm:$0xf]
        %v721 = vld [vmem:[#allocation5 + $0x80] sm:$0xf]
        %v722 = vld [vmem:[#allocation5 + $0x84] sm:$0xf]
        %v723 = vld [vmem:[#allocation5 + $0x88] sm:$0xf]
        %v724 = vld [vmem:[#allocation5 + $0x8c] sm:$0xf]
        %v725 = vld [vmem:[#allocation5 + $0x90] sm:$0xf]
        %v726 = vld [vmem:[#allocation5 + $0x94] sm:$0xf]
        %v727 = vld [vmem:[#allocation5 + $0x98] sm:$0xf]
        %v728 = vld [vmem:[#allocation5 + $0x9c] sm:$0xf]
        %v729 = vld [vmem:[#allocation5 + $0xa0] sm:$0xf]
        %v730 = vld [vmem:[#allocation5 + $0xa4] sm:$0xf]
        %v731 = vld [vmem:[#allocation5 + $0xa8] sm:$0xf]
        %v732 = vld [vmem:[#allocation5 + $0xac] sm:$0xf]
        %v733 = vld [vmem:[#allocation5 + $0xb0] sm:$0xf]
        %v734 = vld [vmem:[#allocation5 + $0xb4] sm:$0xf]
        %v735 = vld [vmem:[#allocation5 + $0xb8] sm:$0xf]
        %v736 = vld [vmem:[#allocation5 + $0xbc] sm:$0xf]
        %s737 = scalar_lea.vmem [#allocation5], 192
        %v738 = vld [vmem:[%s737] sm:$0xf]
        %v739 = vld [vmem:[%s737 + $0x4] sm:$0xf]
        %v740 = vld [vmem:[%s737 + $0x8] sm:$0xf]
        %v741 = vld [vmem:[%s737 + $0xc] sm:$0xf]
        %v742 = vld [vmem:[%s737 + $0x10] sm:$0xf]
        %v743 = vld [vmem:[%s737 + $0x14] sm:$0xf]
        %v744 = vld [vmem:[%s737 + $0x18] sm:$0xf]
        %v745 = vld [vmem:[%s737 + $0x1c] sm:$0xf]
        %v746 = vld [vmem:[%s737 + $0x20] sm:$0xf]
        %v747 = vld [vmem:[%s737 + $0x24] sm:$0xf]
        %v748 = vld [vmem:[%s737 + $0x28] sm:$0xf]
        %v749 = vld [vmem:[%s737 + $0x2c] sm:$0xf]
        %v750 = vld [vmem:[%s737 + $0x30] sm:$0xf]
        %v751 = vld [vmem:[%s737 + $0x34] sm:$0xf]
        %v752 = vld [vmem:[%s737 + $0x38] sm:$0xf]
        %v753 = vld [vmem:[%s737 + $0x3c] sm:$0xf]
        %v754 = vld [vmem:[%s737 + $0x40] sm:$0xf]
        %v755 = vld [vmem:[%s737 + $0x44] sm:$0xf]
        %v756 = vld [vmem:[%s737 + $0x48] sm:$0xf]
        %v757 = vld [vmem:[%s737 + $0x4c] sm:$0xf]
        %v758 = vld [vmem:[%s737 + $0x50] sm:$0xf]
        %v759 = vld [vmem:[%s737 + $0x54] sm:$0xf]
        %v760 = vld [vmem:[%s737 + $0x58] sm:$0xf]
        %v761 = vld [vmem:[%s737 + $0x5c] sm:$0xf]
        %v762 = vld [vmem:[%s737 + $0x60] sm:$0xf]
        %v763 = vld [vmem:[%s737 + $0x64] sm:$0xf]
        %v764 = vld [vmem:[%s737 + $0x68] sm:$0xf]
        %v765 = vld [vmem:[%s737 + $0x6c] sm:$0xf]
        %v766 = vld [vmem:[%s737 + $0x70] sm:$0xf]
        %v767 = vld [vmem:[%s737 + $0x74] sm:$0xf]
        %v768 = vld [vmem:[%s737 + $0x78] sm:$0xf]
        %v769 = vld [vmem:[%s737 + $0x7c] sm:$0xf]
        %v770 = vld [vmem:[%s737 + $0x80] sm:$0xf]
        %v771 = vld [vmem:[%s737 + $0x84] sm:$0xf]
        %v772 = vld [vmem:[%s737 + $0x88] sm:$0xf]
        %v773 = vld [vmem:[%s737 + $0x8c] sm:$0xf]
        %v774 = vld [vmem:[%s737 + $0x90] sm:$0xf]
        %v775 = vld [vmem:[%s737 + $0x94] sm:$0xf]
        %v776 = vld [vmem:[%s737 + $0x98] sm:$0xf]
        %v777 = vld [vmem:[%s737 + $0x9c] sm:$0xf]
        %v778 = vld [vmem:[%s737 + $0xa0] sm:$0xf]
        %v779 = vld [vmem:[%s737 + $0xa4] sm:$0xf]
        %v780 = vld [vmem:[%s737 + $0xa8] sm:$0xf]
        %v781 = vld [vmem:[%s737 + $0xac] sm:$0xf]
        %v782 = vld [vmem:[%s737 + $0xb0] sm:$0xf]
        %v783 = vld [vmem:[%s737 + $0xb4] sm:$0xf]
        %v784 = vld [vmem:[%s737 + $0xb8] sm:$0xf]
        %v785 = vld [vmem:[%s737 + $0xbc] sm:$0xf]
        %v834 = vunpack.c.l.b16 %v738
        %v835 = vunpack.c.l.b16 %v739
        %v836 = vunpack.c.l.b16 %v740
        %v837 = vunpack.c.l.b16 %v741
        %v838 = vunpack.c.l.b16 %v742
        %v839 = vunpack.c.l.b16 %v743
        %v840 = vunpack.c.l.b16 %v744
        %v841 = vunpack.c.l.b16 %v745
        %v842 = vunpack.c.l.b16 %v746
        %v843 = vunpack.c.l.b16 %v747
        %v844 = vunpack.c.l.b16 %v748
        %v845 = vunpack.c.l.b16 %v749
        %v846 = vunpack.c.l.b16 %v750
        %v847 = vunpack.c.l.b16 %v751
        %v848 = vunpack.c.l.b16 %v752
        %v849 = vunpack.c.l.b16 %v753
        %v850 = vunpack.c.l.b16 %v754
        %v851 = vunpack.c.l.b16 %v755
        %v852 = vunpack.c.l.b16 %v756
        %v853 = vunpack.c.l.b16 %v757
        %v854 = vunpack.c.l.b16 %v758
        %v855 = vunpack.c.l.b16 %v759
        %v856 = vunpack.c.l.b16 %v760
        %v857 = vunpack.c.l.b16 %v761
        %v858 = vunpack.c.l.b16 %v762
        %v859 = vunpack.c.l.b16 %v763
        %v860 = vunpack.c.l.b16 %v764
        %v861 = vunpack.c.l.b16 %v765
        %v862 = vunpack.c.l.b16 %v766
        %v863 = vunpack.c.l.b16 %v767
        %v864 = vunpack.c.l.b16 %v768
        %v865 = vunpack.c.l.b16 %v769
        %v866 = vunpack.c.l.b16 %v770
        %v867 = vunpack.c.l.b16 %v771
        %v868 = vunpack.c.l.b16 %v772
        %v869 = vunpack.c.l.b16 %v773
        %v870 = vunpack.c.l.b16 %v774
        %v871 = vunpack.c.l.b16 %v775
        %v872 = vunpack.c.l.b16 %v776
        %v873 = vunpack.c.l.b16 %v777
        %v874 = vunpack.c.l.b16 %v778
        %v875 = vunpack.c.l.b16 %v779
        %v876 = vunpack.c.l.b16 %v780
        %v877 = vunpack.c.l.b16 %v781
        %v878 = vunpack.c.l.b16 %v782
        %v879 = vunpack.c.l.b16 %v783
        %v880 = vunpack.c.l.b16 %v784
        %v881 = vunpack.c.l.b16 %v785
        %v882 = vpack.c.b16 %v835, %v834
        %v883 = vpack.c.b16 %v837, %v836
        %v884 = vpack.c.b16 %v839, %v838
        %v885 = vpack.c.b16 %v841, %v840
        %v886 = vpack.c.b16 %v843, %v842
        %v887 = vpack.c.b16 %v845, %v844
        %v888 = vpack.c.b16 %v847, %v846
        %v889 = vpack.c.b16 %v849, %v848
        %v890 = vpack.c.b16 %v851, %v850
        %v891 = vpack.c.b16 %v853, %v852
        %v892 = vpack.c.b16 %v855, %v854
        %v893 = vpack.c.b16 %v857, %v856
        %v894 = vpack.c.b16 %v859, %v858
        %v895 = vpack.c.b16 %v861, %v860
        %v896 = vpack.c.b16 %v863, %v862
        %v897 = vpack.c.b16 %v865, %v864
        %v898 = vpack.c.b16 %v867, %v866
        %v899 = vpack.c.b16 %v869, %v868
        %v900 = vpack.c.b16 %v871, %v870
        %v901 = vpack.c.b16 %v873, %v872
        %v902 = vpack.c.b16 %v875, %v874
        %v903 = vpack.c.b16 %v877, %v876
        %v904 = vpack.c.b16 %v879, %v878
        %v905 = vpack.c.b16 %v881, %v880
        %930 = vmatprep.subr.bf16.mxu0 0
        %931 = vmatpush1.bf16.msra.mxu0 %v882
        %932 = vmatprep.subr.bf16.mxu0 0
        %933 = vmatpush1.bf16.msra.mxu0 %v883
        %934 = vmatprep.subr.bf16.mxu0 0
        %935 = vmatpush1.bf16.msra.mxu0 %v884
        %936 = vmatprep.subr.bf16.mxu0 0
        %937 = vmatpush1.bf16.msra.mxu0 %v885
        %938 = vmatprep.subr.bf16.mxu0 0
        %939 = vmatpush1.bf16.msra.mxu0 %v886
        %940 = vmatprep.subr.bf16.mxu0 0
        %941 = vmatpush1.bf16.msra.mxu0 %v887
        %942 = vmatprep.subr.bf16.mxu0 0
        %943 = vmatpush1.bf16.msra.mxu0 %v888
        %944 = vmatprep.subr.bf16.mxu0 0
        %945 = vmatpush1.bf16.msra.mxu0 %v889
        %946 = vmatprep.subr.bf16.mxu0 0
        %947 = vmatpush1.bf16.msra.mxu0 %v890
        %948 = vmatprep.subr.bf16.mxu0 0
        %949 = vmatpush1.bf16.msra.mxu0 %v891
        %950 = vmatprep.subr.bf16.mxu0 0
        %951 = vmatpush1.bf16.msra.mxu0 %v892
        %952 = vmatprep.subr.bf16.mxu0 0
        %953 = vmatpush1.bf16.msra.mxu0 %v893
        %954 = vmatprep.subr.bf16.mxu0 0
        %955 = vmatpush1.bf16.msra.mxu0 %v894
        %956 = vmatprep.subr.bf16.mxu0 0
        %957 = vmatpush1.bf16.msra.mxu0 %v895
        %958 = vmatprep.subr.bf16.mxu0 0
        %959 = vmatpush1.bf16.msra.mxu0 %v896
        %960 = vmatprep.subr.bf16.mxu0 0
        %961 = vmatpush1.bf16.msra.mxu0 %v897
        %962 = vmatprep.mubr.bf16.mxu0 %v657
        %963 = vmatmul.mubr.bf16.gmra.mrb[0].mxu0 %v458
        %v964 = vpop.f32.mrb[0].mxu0
        %v965 = vadd.f32 0.0, %v964
        %v966 = vpop.f32.mrb[0].mxu0
        %v967 = vpop.f32.mrb[0].mxu0
        %v968 = vadd.f32 0.0, %v967
        %v969 = vpop.f32.mrb[0].mxu0
        %970 = vmatprep.mubr.bf16.mxu0 %v658
        %971 = vmatmul.mubr.bf16.gmra.mrb[0].mxu0 %v459
        %v972 = vpop.f32.mrb[0].mxu0
        %v973 = vadd.f32 0.0, %v972
        %v974 = vpop.f32.mrb[0].mxu0
        %v975 = vpop.f32.mrb[0].mxu0
        %v976 = vadd.f32 0.0, %v975
        %v977 = vpop.f32.mrb[0].mxu0
        %978 = vmatprep.mubr.bf16.mxu0 %v659
        %979 = vmatmul.mubr.bf16.gmra.mrb[0].mxu0 %v460
        %v980 = vpop.f32.mrb[0].mxu0
        %v981 = vadd.f32 0.0, %v980
        %v982 = vpop.f32.mrb[0].mxu0
        %v983 = vpop.f32.mrb[0].mxu0
        %v984 = vadd.f32 0.0, %v983
        %v985 = vpop.f32.mrb[0].mxu0
        %986 = vmatprep.mubr.bf16.mxu0 %v660
        %987 = vmatmul.mubr.bf16.gmra.mrb[0].mxu0 %v461
        %v988 = vpop.f32.mrb[0].mxu0
        %v989 = vadd.f32 0.0, %v988
        %v990 = vpop.f32.mrb[0].mxu0
        %v991 = vpop.f32.mrb[0].mxu0
        %v992 = vadd.f32 0.0, %v991
        %v993 = vpop.f32.mrb[0].mxu0
        %994 = vmatprep.mubr.bf16.mxu0 %v661
        %995 = vmatmul.mubr.bf16.gmra.mrb[0].mxu0 %v462
        %v996 = vpop.f32.mrb[0].mxu0
        %v997 = vadd.f32 0.0, %v996
        %v998 = vpop.f32.mrb[0].mxu0
        %v999 = vpop.f32.mrb[0].mxu0
        %v1000 = vadd.f32 0.0, %v999
        %v1001 = vpop.f32.mrb[0].mxu0
        %1002 = vmatprep.mubr.bf16.mxu0 %v662
        %1003 = vmatmul.mubr.bf16.gmra.mrb[0].mxu0 %v463
        %v1004 = vpop.f32.mrb[0].mxu0
        %v1005 = vadd.f32 0.0, %v1004
        %v1006 = vpop.f32.mrb[0].mxu0
        %v1007 = vpop.f32.mrb[0].mxu0
        %v1008 = vadd.f32 0.0, %v1007
        %v1009 = vpop.f32.mrb[0].mxu0
        %1010 = vmatprep.mubr.bf16.mxu0 %v663
        %1011 = vmatmul.mubr.bf16.gmra.mrb[0].mxu0 %v464
        %v1012 = vpop.f32.mrb[0].mxu0
        %v1013 = vadd.f32 0.0, %v1012
        %v1014 = vpop.f32.mrb[0].mxu0
        %v1015 = vpop.f32.mrb[0].mxu0
        %v1016 = vadd.f32 0.0, %v1015
        %v1017 = vpop.f32.mrb[0].mxu0
        %1018 = vmatprep.mubr.bf16.mxu0 %v664
        %1019 = vmatmul.mubr.bf16.gmra.mrb[0].mxu0 %v465
        %v1020 = vpop.f32.mrb[0].mxu0
        %v1021 = vadd.f32 0.0, %v1020
        %v1022 = vpop.f32.mrb[0].mxu0
        %v1023 = vpop.f32.mrb[0].mxu0
        %v1024 = vadd.f32 0.0, %v1023
        %v1025 = vpop.f32.mrb[0].mxu0
        %1026 = vmatprep.mubr.bf16.mxu0 %v665
        %1027 = vmatmul.mubr.bf16.gmra.mrb[0].mxu0 %v466
        %v1028 = vpop.f32.mrb[0].mxu0
        %v1029 = vadd.f32 0.0, %v1028
        %v1030 = vpop.f32.mrb[0].mxu0
        %v1031 = vpop.f32.mrb[0].mxu0
        %v1032 = vadd.f32 0.0, %v1031
        %v1033 = vpop.f32.mrb[0].mxu0
        %1034 = vmatprep.mubr.bf16.mxu0 %v666
        %1035 = vmatmul.mubr.bf16.gmra.mrb[0].mxu0 %v467
        %v1036 = vpop.f32.mrb[0].mxu0
        %v1037 = vadd.f32 0.0, %v1036
        %v1038 = vpop.f32.mrb[0].mxu0
        %v1039 = vpop.f32.mrb[0].mxu0
        %v1040 = vadd.f32 0.0, %v1039
        %v1041 = vpop.f32.mrb[0].mxu0
        %1042 = vmatprep.mubr.bf16.mxu0 %v667
        %1043 = vmatmul.mubr.bf16.gmra.mrb[0].mxu0 %v468
        %v1044 = vpop.f32.mrb[0].mxu0
        %v1045 = vadd.f32 0.0, %v1044
        %v1046 = vpop.f32.mrb[0].mxu0
        %v1047 = vpop.f32.mrb[0].mxu0
        %v1048 = vadd.f32 0.0, %v1047
        %v1049 = vpop.f32.mrb[0].mxu0
        %1050 = vmatprep.mubr.bf16.mxu0 %v668
        %1051 = vmatmul.mubr.bf16.gmra.mrb[0].mxu0 %v469
        %v1052 = vpop.f32.mrb[0].mxu0
        %v1053 = vadd.f32 0.0, %v1052
        %v1054 = vpop.f32.mrb[0].mxu0
        %v1055 = vpop.f32.mrb[0].mxu0
        %v1056 = vadd.f32 0.0, %v1055
        %v1057 = vpop.f32.mrb[0].mxu0
        %1058 = vmatprep.mubr.bf16.mxu0 %v669
        %1059 = vmatmul.mubr.bf16.gmra.mrb[0].mxu0 %v470
        %v1060 = vpop.f32.mrb[0].mxu0
        %v1061 = vadd.f32 0.0, %v1060
        %v1062 = vpop.f32.mrb[0].mxu0
        %v1063 = vpop.f32.mrb[0].mxu0
        %v1064 = vadd.f32 0.0, %v1063
        %v1065 = vpop.f32.mrb[0].mxu0
        %1066 = vmatprep.mubr.bf16.mxu0 %v670
        %1067 = vmatmul.mubr.bf16.gmra.mrb[0].mxu0 %v471
        %v1068 = vpop.f32.mrb[0].mxu0
        %v1069 = vadd.f32 0.0, %v1068
        %v1070 = vpop.f32.mrb[0].mxu0
        %v1071 = vpop.f32.mrb[0].mxu0
        %v1072 = vadd.f32 0.0, %v1071
        %v1073 = vpop.f32.mrb[0].mxu0
        %1074 = vmatprep.mubr.bf16.mxu0 %v671
        %1075 = vmatmul.mubr.bf16.gmra.mrb[0].mxu0 %v472
        %v1076 = vpop.f32.mrb[0].mxu0
        %v1077 = vadd.f32 0.0, %v1076
        %v1078 = vpop.f32.mrb[0].mxu0
        %v1079 = vpop.f32.mrb[0].mxu0
        %v1080 = vadd.f32 0.0, %v1079
        %v1081 = vpop.f32.mrb[0].mxu0
        %1082 = vmatprep.mubr.bf16.mxu0 %v672
        %1083 = vmatmul.mubr.bf16.gmra.mrb[0].mxu0 %v473
        %v1084 = vpop.f32.mrb[0].mxu0
        %v1085 = vadd.f32 0.0, %v1084
        %v1086 = vpop.f32.mrb[0].mxu0
        %v1087 = vpop.f32.mrb[0].mxu0
        %v1088 = vadd.f32 0.0, %v1087
        %v1089 = vpop.f32.mrb[0].mxu0
        %1090 = vdwg.mxu0
        %1091 = vmatprep.subr.bf16.mxu0 0
        %1092 = vmatpush1.bf16.msra.mxu0 %v898
        %1093 = vmatprep.subr.bf16.mxu0 0
        %1094 = vmatpush1.bf16.msra.mxu0 %v899
        %1095 = vmatprep.subr.bf16.mxu0 0
        %1096 = vmatpush1.bf16.msra.mxu0 %v900
        %1097 = vmatprep.subr.bf16.mxu0 0
        %1098 = vmatpush1.bf16.msra.mxu0 %v901
        %1099 = vmatprep.subr.bf16.mxu0 0
        %1100 = vmatpush1.bf16.msra.mxu0 %v902
        %1101 = vmatprep.subr.bf16.mxu0 0
        %1102 = vmatpush1.bf16.msra.mxu0 %v903
        %1103 = vmatprep.subr.bf16.mxu0 0
        %1104 = vmatpush1.bf16.msra.mxu0 %v904
        %1105 = vmatprep.subr.bf16.mxu0 0
        %1106 = vmatpush1.bf16.msra.mxu0 %v905
        %1107 = vmatprep.subr.bf16.mxu0 0
        %1108 = vmatpush1.bf16.msra.mxu0 0
        %1109 = vmatprep.subr.bf16.mxu0 0
        %1110 = vmatpush1.bf16.msra.mxu0 0
        %1111 = vmatprep.subr.bf16.mxu0 0
        %1112 = vmatpush1.bf16.msra.mxu0 0
        %1113 = vmatprep.subr.bf16.mxu0 0
        %1114 = vmatpush1.bf16.msra.mxu0 0
        %1115 = vmatprep.subr.bf16.mxu0 0
        %1116 = vmatpush1.bf16.msra.mxu0 0
        %1117 = vmatprep.subr.bf16.mxu0 0
        %1118 = vmatpush1.bf16.msra.mxu0 0
        %1119 = vmatprep.subr.bf16.mxu0 0
        %1120 = vmatpush1.bf16.msra.mxu0 0
        %1121 = vmatprep.subr.bf16.mxu0 0
        %1122 = vmatpush1.bf16.msra.mxu0 0
        %1123 = vmatprep.mubr.bf16.mxu0 0
        %1124 = vmatmul.mubr.bf16.gmra.mrb[0].mxu0 %v577
        %v1125 = vpop.f32.mrb[0].mxu0
        %v1126 = vadd.f32 %v965, %v1125
        %v1127 = vpop.f32.mrb[0].mxu0
        %v1128 = vpop.f32.mrb[0].mxu0
        %v1129 = vadd.f32 %v968, %v1128
        %v1130 = vpop.f32.mrb[0].mxu0
        %1131 = vmatprep.mubr.bf16.mxu0 0
        %1132 = vmatmul.mubr.bf16.gmra.mrb[0].mxu0 %v578
        %v1133 = vpop.f32.mrb[0].mxu0
        %v1134 = vadd.f32 %v973, %v1133
        %v1135 = vpop.f32.mrb[0].mxu0
        %v1136 = vpop.f32.mrb[0].mxu0
        %v1137 = vadd.f32 %v976, %v1136
        %v1138 = vpop.f32.mrb[0].mxu0
        %1139 = vmatprep.mubr.bf16.mxu0 0
        %1140 = vmatmul.mubr.bf16.gmra.mrb[0].mxu0 %v579
        %v1141 = vpop.f32.mrb[0].mxu0
        %v1142 = vadd.f32 %v981, %v1141
        %v1143 = vpop.f32.mrb[0].mxu0
        %v1144 = vpop.f32.mrb[0].mxu0
        %v1145 = vadd.f32 %v984, %v1144
        %v1146 = vpop.f32.mrb[0].mxu0
        %1147 = vmatprep.mubr.bf16.mxu0 0
        %1148 = vmatmul.mubr.bf16.gmra.mrb[0].mxu0 %v580
        %v1149 = vpop.f32.mrb[0].mxu0
        %v1150 = vadd.f32 %v989, %v1149
        %v1151 = vpop.f32.mrb[0].mxu0
        %v1152 = vpop.f32.mrb[0].mxu0
        %v1153 = vadd.f32 %v992, %v1152
        %v1154 = vpop.f32.mrb[0].mxu0
        %1155 = vmatprep.mubr.bf16.mxu0 0
        %1156 = vmatmul.mubr.bf16.gmra.mrb[0].mxu0 %v581
        %v1157 = vpop.f32.mrb[0].mxu0
        %v1158 = vadd.f32 %v997, %v1157
        %v1159 = vpop.f32.mrb[0].mxu0
        %v1160 = vpop.f32.mrb[0].mxu0
        %v1161 = vadd.f32 %v1000, %v1160
        %v1162 = vpop.f32.mrb[0].mxu0
        %1163 = vmatprep.mubr.bf16.mxu0 0
        %1164 = vmatmul.mubr.bf16.gmra.mrb[0].mxu0 %v582
        %v1165 = vpop.f32.mrb[0].mxu0
        %v1166 = vadd.f32 %v1005, %v1165
        %v1167 = vpop.f32.mrb[0].mxu0
        %v1168 = vpop.f32.mrb[0].mxu0
        %v1169 = vadd.f32 %v1008, %v1168
        %v1170 = vpop.f32.mrb[0].mxu0
        %1171 = vmatprep.mubr.bf16.mxu0 0
        %1172 = vmatmul.mubr.bf16.gmra.mrb[0].mxu0 %v583
        %v1173 = vpop.f32.mrb[0].mxu0
        %v1174 = vadd.f32 %v1013, %v1173
        %v1175 = vpop.f32.mrb[0].mxu0
        %v1176 = vpop.f32.mrb[0].mxu0
        %v1177 = vadd.f32 %v1016, %v1176
        %v1178 = vpop.f32.mrb[0].mxu0
        %1179 = vmatprep.mubr.bf16.mxu0 0
        %1180 = vmatmul.mubr.bf16.gmra.mrb[0].mxu0 %v584
        %v1181 = vpop.f32.mrb[0].mxu0
        %v1182 = vadd.f32 %v1021, %v1181
        %v1183 = vpop.f32.mrb[0].mxu0
        %v1184 = vpop.f32.mrb[0].mxu0
        %v1185 = vadd.f32 %v1024, %v1184
        %v1186 = vpop.f32.mrb[0].mxu0
        %1187 = vmatprep.mubr.bf16.mxu0 0
        %1188 = vmatmul.mubr.bf16.gmra.mrb[0].mxu0 %v585
        %v1189 = vpop.f32.mrb[0].mxu0
        %v1190 = vadd.f32 %v1029, %v1189
        %v1191 = vpop.f32.mrb[0].mxu0
        %v1192 = vpop.f32.mrb[0].mxu0
        %v1193 = vadd.f32 %v1032, %v1192
        %v1194 = vpop.f32.mrb[0].mxu0
        %1195 = vmatprep.mubr.bf16.mxu0 0
        %1196 = vmatmul.mubr.bf16.gmra.mrb[0].mxu0 %v586
        %v1197 = vpop.f32.mrb[0].mxu0
        %v1198 = vadd.f32 %v1037, %v1197
        %v1199 = vpop.f32.mrb[0].mxu0
        %v1200 = vpop.f32.mrb[0].mxu0
        %v1201 = vadd.f32 %v1040, %v1200
        %v1202 = vpop.f32.mrb[0].mxu0
        %1203 = vmatprep.mubr.bf16.mxu0 0
        %1204 = vmatmul.mubr.bf16.gmra.mrb[0].mxu0 %v587
        %v1205 = vpop.f32.mrb[0].mxu0
        %v1206 = vadd.f32 %v1045, %v1205
        %v1207 = vpop.f32.mrb[0].mxu0
        %v1208 = vpop.f32.mrb[0].mxu0
        %v1209 = vadd.f32 %v1048, %v1208
        %v1210 = vpop.f32.mrb[0].mxu0
        %1211 = vmatprep.mubr.bf16.mxu0 0
        %1212 = vmatmul.mubr.bf16.gmra.mrb[0].mxu0 %v588
        %v1213 = vpop.f32.mrb[0].mxu0
        %v1214 = vadd.f32 %v1053, %v1213
        %v1215 = vpop.f32.mrb[0].mxu0
        %v1216 = vpop.f32.mrb[0].mxu0
        %v1217 = vadd.f32 %v1056, %v1216
        %v1218 = vpop.f32.mrb[0].mxu0
        %1219 = vmatprep.mubr.bf16.mxu0 0
        %1220 = vmatmul.mubr.bf16.gmra.mrb[0].mxu0 %v589
        %v1221 = vpop.f32.mrb[0].mxu0
        %v1222 = vadd.f32 %v1061, %v1221
        %v1223 = vpop.f32.mrb[0].mxu0
        %v1224 = vpop.f32.mrb[0].mxu0
        %v1225 = vadd.f32 %v1064, %v1224
        %v1226 = vpop.f32.mrb[0].mxu0
        %1227 = vmatprep.mubr.bf16.mxu0 0
        %1228 = vmatmul.mubr.bf16.gmra.mrb[0].mxu0 %v590
        %v1229 = vpop.f32.mrb[0].mxu0
        %v1230 = vadd.f32 %v1069, %v1229
        %v1231 = vpop.f32.mrb[0].mxu0
        %v1232 = vpop.f32.mrb[0].mxu0
        %v1233 = vadd.f32 %v1072, %v1232
        %v1234 = vpop.f32.mrb[0].mxu0
        %1235 = vmatprep.mubr.bf16.mxu0 0
        %1236 = vmatmul.mubr.bf16.gmra.mrb[0].mxu0 %v591
        %v1237 = vpop.f32.mrb[0].mxu0
        %v1238 = vadd.f32 %v1077, %v1237
        %v1239 = vpop.f32.mrb[0].mxu0
        %v1240 = vpop.f32.mrb[0].mxu0
        %v1241 = vadd.f32 %v1080, %v1240
        %v1242 = vpop.f32.mrb[0].mxu0
        %1243 = vmatprep.mubr.bf16.mxu0 0
        %1244 = vmatmul.mubr.bf16.gmra.mrb[0].mxu0 %v592
        %v1245 = vpop.f32.mrb[0].mxu0
        %v1246 = vadd.f32 %v1085, %v1245
        %v1247 = vpop.f32.mrb[0].mxu0
        %v1248 = vpop.f32.mrb[0].mxu0
        %v1249 = vadd.f32 %v1088, %v1248
        %v1250 = vpop.f32.mrb[0].mxu0
        %1251 = vdwg.mxu0
        %v1300 = vunpack.c.l.b16 %v689
        %v1301 = vunpack.c.l.b16 %v690
        %v1302 = vunpack.c.l.b16 %v691
        %v1303 = vunpack.c.l.b16 %v692
        %v1304 = vunpack.c.l.b16 %v693
        %v1305 = vunpack.c.l.b16 %v694
        %v1306 = vunpack.c.l.b16 %v695
        %v1307 = vunpack.c.l.b16 %v696
        %v1308 = vunpack.c.l.b16 %v697
        %v1309 = vunpack.c.l.b16 %v698
        %v1310 = vunpack.c.l.b16 %v699
        %v1311 = vunpack.c.l.b16 %v700
        %v1312 = vunpack.c.l.b16 %v701
        %v1313 = vunpack.c.l.b16 %v702
        %v1314 = vunpack.c.l.b16 %v703
        %v1315 = vunpack.c.l.b16 %v704
        %v1316 = vunpack.c.l.b16 %v705
        %v1317 = vunpack.c.l.b16 %v706
        %v1318 = vunpack.c.l.b16 %v707
        %v1319 = vunpack.c.l.b16 %v708
        %v1320 = vunpack.c.l.b16 %v709
        %v1321 = vunpack.c.l.b16 %v710
        %v1322 = vunpack.c.l.b16 %v711
        %v1323 = vunpack.c.l.b16 %v712
        %v1324 = vunpack.c.l.b16 %v713
        %v1325 = vunpack.c.l.b16 %v714
        %v1326 = vunpack.c.l.b16 %v715
        %v1327 = vunpack.c.l.b16 %v716
        %v1328 = vunpack.c.l.b16 %v717
        %v1329 = vunpack.c.l.b16 %v718
        %v1330 = vunpack.c.l.b16 %v719
        %v1331 = vunpack.c.l.b16 %v720
        %v1332 = vunpack.c.l.b16 %v721
        %v1333 = vunpack.c.l.b16 %v722
        %v1334 = vunpack.c.l.b16 %v723
        %v1335 = vunpack.c.l.b16 %v724
        %v1336 = vunpack.c.l.b16 %v725
        %v1337 = vunpack.c.l.b16 %v726
        %v1338 = vunpack.c.l.b16 %v727
        %v1339 = vunpack.c.l.b16 %v728
        %v1340 = vunpack.c.l.b16 %v729
        %v1341 = vunpack.c.l.b16 %v730
        %v1342 = vunpack.c.l.b16 %v731
        %v1343 = vunpack.c.l.b16 %v732
        %v1344 = vunpack.c.l.b16 %v733
        %v1345 = vunpack.c.l.b16 %v734
        %v1346 = vunpack.c.l.b16 %v735
        %v1347 = vunpack.c.l.b16 %v736
        %v1348 = vpack.c.b16 %v1301, %v1300
        %v1349 = vpack.c.b16 %v1303, %v1302
        %v1350 = vpack.c.b16 %v1305, %v1304
        %v1351 = vpack.c.b16 %v1307, %v1306
        %v1352 = vpack.c.b16 %v1309, %v1308
        %v1353 = vpack.c.b16 %v1311, %v1310
        %v1354 = vpack.c.b16 %v1313, %v1312
        %v1355 = vpack.c.b16 %v1315, %v1314
        %v1356 = vpack.c.b16 %v1317, %v1316
        %v1357 = vpack.c.b16 %v1319, %v1318
        %v1358 = vpack.c.b16 %v1321, %v1320
        %v1359 = vpack.c.b16 %v1323, %v1322
        %v1360 = vpack.c.b16 %v1325, %v1324
        %v1361 = vpack.c.b16 %v1327, %v1326
        %v1362 = vpack.c.b16 %v1329, %v1328
        %v1363 = vpack.c.b16 %v1331, %v1330
        %v1364 = vpack.c.b16 %v1333, %v1332
        %v1365 = vpack.c.b16 %v1335, %v1334
        %v1366 = vpack.c.b16 %v1337, %v1336
        %v1367 = vpack.c.b16 %v1339, %v1338
        %v1368 = vpack.c.b16 %v1341, %v1340
        %v1369 = vpack.c.b16 %v1343, %v1342
        %v1370 = vpack.c.b16 %v1345, %v1344
        %v1371 = vpack.c.b16 %v1347, %v1346
        %1396 = vmatprep.subr.bf16.mxu0 0
        %1397 = vmatpush1.bf16.msra.mxu0 %v1348
        %1398 = vmatprep.subr.bf16.mxu0 0
        %1399 = vmatpush1.bf16.msra.mxu0 %v1349
        %1400 = vmatprep.subr.bf16.mxu0 0
        %1401 = vmatpush1.bf16.msra.mxu0 %v1350
        %1402 = vmatprep.subr.bf16.mxu0 0
        %1403 = vmatpush1.bf16.msra.mxu0 %v1351
        %1404 = vmatprep.subr.bf16.mxu0 0
        %1405 = vmatpush1.bf16.msra.mxu0 %v1352
        %1406 = vmatprep.subr.bf16.mxu0 0
        %1407 = vmatpush1.bf16.msra.mxu0 %v1353
        %1408 = vmatprep.subr.bf16.mxu0 0
        %1409 = vmatpush1.bf16.msra.mxu0 %v1354
        %1410 = vmatprep.subr.bf16.mxu0 0
        %1411 = vmatpush1.bf16.msra.mxu0 %v1355
        %1412 = vmatprep.subr.bf16.mxu0 0
        %1413 = vmatpush1.bf16.msra.mxu0 %v1356
        %1414 = vmatprep.subr.bf16.mxu0 0
        %1415 = vmatpush1.bf16.msra.mxu0 %v1357
        %1416 = vmatprep.subr.bf16.mxu0 0
        %1417 = vmatpush1.bf16.msra.mxu0 %v1358
        %1418 = vmatprep.subr.bf16.mxu0 0
        %1419 = vmatpush1.bf16.msra.mxu0 %v1359
        %1420 = vmatprep.subr.bf16.mxu0 0
        %1421 = vmatpush1.bf16.msra.mxu0 %v1360
        %1422 = vmatprep.subr.bf16.mxu0 0
        %1423 = vmatpush1.bf16.msra.mxu0 %v1361
        %1424 = vmatprep.subr.bf16.mxu0 0
        %1425 = vmatpush1.bf16.msra.mxu0 %v1362
        %1426 = vmatprep.subr.bf16.mxu0 0
        %1427 = vmatpush1.bf16.msra.mxu0 %v1363
        %1428 = vmatprep.mubr.bf16.mxu0 0
        %1429 = vmatmul.mubr.bf16.gmra.mrb[0].mxu0 0
        %v1430 = vpop.f32.mrb[0].mxu0
        %v1431 = vadd.f32 %v1126, %v1430
        %v1432 = vpop.f32.mrb[0].mxu0
        %v1433 = vpop.f32.mrb[0].mxu0
        %v1434 = vadd.f32 %v1129, %v1433
        %v1435 = vpop.f32.mrb[0].mxu0
        %1436 = vmatprep.mubr.bf16.mxu0 %v657
        %1437 = vmatmul.mubr.bf16.gmra.mrb[0].mxu0 %v458
        %v1438 = vpop.f32.mrb[0].mxu0
        %v1439 = vadd.f32 %v1134, %v1438
        %v1440 = vpop.f32.mrb[0].mxu0
        %v1441 = vpop.f32.mrb[0].mxu0
        %v1442 = vadd.f32 %v1137, %v1441
        %v1443 = vpop.f32.mrb[0].mxu0
        %1444 = vmatprep.mubr.bf16.mxu0 %v658
        %1445 = vmatmul.mubr.bf16.gmra.mrb[0].mxu0 %v459
        %v1446 = vpop.f32.mrb[0].mxu0
        %v1447 = vadd.f32 %v1142, %v1446
        %v1448 = vpop.f32.mrb[0].mxu0
        %v1449 = vpop.f32.mrb[0].mxu0
        %v1450 = vadd.f32 %v1145, %v1449
        %v1451 = vpop.f32.mrb[0].mxu0
        %1452 = vmatprep.mubr.bf16.mxu0 %v659
        %1453 = vmatmul.mubr.bf16.gmra.mrb[0].mxu0 %v460
        %v1454 = vpop.f32.mrb[0].mxu0
        %v1455 = vadd.f32 %v1150, %v1454
        %v1456 = vpop.f32.mrb[0].mxu0
        %v1457 = vpop.f32.mrb[0].mxu0
        %v1458 = vadd.f32 %v1153, %v1457
        %v1459 = vpop.f32.mrb[0].mxu0
        %1460 = vmatprep.mubr.bf16.mxu0 %v660
        %1461 = vmatmul.mubr.bf16.gmra.mrb[0].mxu0 %v461
        %v1462 = vpop.f32.mrb[0].mxu0
        %v1463 = vadd.f32 %v1158, %v1462
        %v1464 = vpop.f32.mrb[0].mxu0
        %v1465 = vpop.f32.mrb[0].mxu0
        %v1466 = vadd.f32 %v1161, %v1465
        %v1467 = vpop.f32.mrb[0].mxu0
        %1468 = vmatprep.mubr.bf16.mxu0 %v661
        %1469 = vmatmul.mubr.bf16.gmra.mrb[0].mxu0 %v462
        %v1470 = vpop.f32.mrb[0].mxu0
        %v1471 = vadd.f32 %v1166, %v1470
        %v1472 = vpop.f32.mrb[0].mxu0
        %v1473 = vpop.f32.mrb[0].mxu0
        %v1474 = vadd.f32 %v1169, %v1473
        %v1475 = vpop.f32.mrb[0].mxu0
        %1476 = vmatprep.mubr.bf16.mxu0 %v662
        %1477 = vmatmul.mubr.bf16.gmra.mrb[0].mxu0 %v463
        %v1478 = vpop.f32.mrb[0].mxu0
        %v1479 = vadd.f32 %v1174, %v1478
        %v1480 = vpop.f32.mrb[0].mxu0
        %v1481 = vpop.f32.mrb[0].mxu0
        %v1482 = vadd.f32 %v1177, %v1481
        %v1483 = vpop.f32.mrb[0].mxu0
        %1484 = vmatprep.mubr.bf16.mxu0 %v663
        %1485 = vmatmul.mubr.bf16.gmra.mrb[0].mxu0 %v464
        %v1486 = vpop.f32.mrb[0].mxu0
        %v1487 = vadd.f32 %v1182, %v1486
        %v1488 = vpop.f32.mrb[0].mxu0
        %v1489 = vpop.f32.mrb[0].mxu0
        %v1490 = vadd.f32 %v1185, %v1489
        %v1491 = vpop.f32.mrb[0].mxu0
        %1492 = vmatprep.mubr.bf16.mxu0 %v664
        %1493 = vmatmul.mubr.bf16.gmra.mrb[0].mxu0 %v465
        %v1494 = vpop.f32.mrb[0].mxu0
        %v1495 = vadd.f32 %v1190, %v1494
        %v1496 = vpop.f32.mrb[0].mxu0
        %v1497 = vpop.f32.mrb[0].mxu0
        %v1498 = vadd.f32 %v1193, %v1497
        %v1499 = vpop.f32.mrb[0].mxu0
        %1500 = vmatprep.mubr.bf16.mxu0 %v665
        %1501 = vmatmul.mubr.bf16.gmra.mrb[0].mxu0 %v466
        %v1502 = vpop.f32.mrb[0].mxu0
        %v1503 = vadd.f32 %v1198, %v1502
        %v1504 = vpop.f32.mrb[0].mxu0
        %v1505 = vpop.f32.mrb[0].mxu0
        %v1506 = vadd.f32 %v1201, %v1505
        %v1507 = vpop.f32.mrb[0].mxu0
        %1508 = vmatprep.mubr.bf16.mxu0 %v666
        %1509 = vmatmul.mubr.bf16.gmra.mrb[0].mxu0 %v467
        %v1510 = vpop.f32.mrb[0].mxu0
        %v1511 = vadd.f32 %v1206, %v1510
        %v1512 = vpop.f32.mrb[0].mxu0
        %v1513 = vpop.f32.mrb[0].mxu0
        %v1514 = vadd.f32 %v1209, %v1513
        %v1515 = vpop.f32.mrb[0].mxu0
        %1516 = vmatprep.mubr.bf16.mxu0 %v667
        %1517 = vmatmul.mubr.bf16.gmra.mrb[0].mxu0 %v468
        %v1518 = vpop.f32.mrb[0].mxu0
        %v1519 = vadd.f32 %v1214, %v1518
        %v1520 = vpop.f32.mrb[0].mxu0
        %v1521 = vpop.f32.mrb[0].mxu0
        %v1522 = vadd.f32 %v1217, %v1521
        %v1523 = vpop.f32.mrb[0].mxu0
        %1524 = vmatprep.mubr.bf16.mxu0 %v668
        %1525 = vmatmul.mubr.bf16.gmra.mrb[0].mxu0 %v469
        %v1526 = vpop.f32.mrb[0].mxu0
        %v1527 = vadd.f32 %v1222, %v1526
        %v1528 = vpop.f32.mrb[0].mxu0
        %v1529 = vpop.f32.mrb[0].mxu0
        %v1530 = vadd.f32 %v1225, %v1529
        %v1531 = vpop.f32.mrb[0].mxu0
        %1532 = vmatprep.mubr.bf16.mxu0 %v669
        %1533 = vmatmul.mubr.bf16.gmra.mrb[0].mxu0 %v470
        %v1534 = vpop.f32.mrb[0].mxu0
        %v1535 = vadd.f32 %v1230, %v1534
        %v1536 = vpop.f32.mrb[0].mxu0
        %v1537 = vpop.f32.mrb[0].mxu0
        %v1538 = vadd.f32 %v1233, %v1537
        %v1539 = vpop.f32.mrb[0].mxu0
        %1540 = vmatprep.mubr.bf16.mxu0 %v670
        %1541 = vmatmul.mubr.bf16.gmra.mrb[0].mxu0 %v471
        %v1542 = vpop.f32.mrb[0].mxu0
        %v1543 = vadd.f32 %v1238, %v1542
        %v1544 = vpop.f32.mrb[0].mxu0
        %v1545 = vpop.f32.mrb[0].mxu0
        %v1546 = vadd.f32 %v1241, %v1545
        %v1547 = vpop.f32.mrb[0].mxu0
        %1548 = vmatprep.mubr.bf16.mxu0 %v671
        %1549 = vmatmul.mubr.bf16.gmra.mrb[0].mxu0 %v472
        %v1550 = vpop.f32.mrb[0].mxu0
        %v1551 = vadd.f32 %v1246, %v1550
        %v1552 = vpop.f32.mrb[0].mxu0
        %v1553 = vpop.f32.mrb[0].mxu0
        %v1554 = vadd.f32 %v1249, %v1553
        %v1555 = vpop.f32.mrb[0].mxu0
        %1556 = vdwg.mxu0
        %1557 = vmatprep.subr.bf16.mxu0 0
        %1558 = vmatpush1.bf16.msra.mxu0 %v1364
        %1559 = vmatprep.subr.bf16.mxu0 0
        %1560 = vmatpush1.bf16.msra.mxu0 %v1365
        %1561 = vmatprep.subr.bf16.mxu0 0
        %1562 = vmatpush1.bf16.msra.mxu0 %v1366
        %1563 = vmatprep.subr.bf16.mxu0 0
        %1564 = vmatpush1.bf16.msra.mxu0 %v1367
        %1565 = vmatprep.subr.bf16.mxu0 0
        %1566 = vmatpush1.bf16.msra.mxu0 %v1368
        %1567 = vmatprep.subr.bf16.mxu0 0
        %1568 = vmatpush1.bf16.msra.mxu0 %v1369
        %1569 = vmatprep.subr.bf16.mxu0 0
        %1570 = vmatpush1.bf16.msra.mxu0 %v1370
        %1571 = vmatprep.subr.bf16.mxu0 0
        %1572 = vmatpush1.bf16.msra.mxu0 %v1371
        %1573 = vmatprep.subr.bf16.mxu0 0
        %1574 = vmatpush1.bf16.msra.mxu0 0
        %1575 = vmatprep.subr.bf16.mxu0 0
        %1576 = vmatpush1.bf16.msra.mxu0 0
        %1577 = vmatprep.subr.bf16.mxu0 0
        %1578 = vmatpush1.bf16.msra.mxu0 0
        %1579 = vmatprep.subr.bf16.mxu0 0
        %1580 = vmatpush1.bf16.msra.mxu0 0
        %1581 = vmatprep.subr.bf16.mxu0 0
        %1582 = vmatpush1.bf16.msra.mxu0 0
        %1583 = vmatprep.subr.bf16.mxu0 0
        %1584 = vmatpush1.bf16.msra.mxu0 0
        %1585 = vmatprep.subr.bf16.mxu0 0
        %1586 = vmatpush1.bf16.msra.mxu0 0
        %1587 = vmatprep.subr.bf16.mxu0 0
        %1588 = vmatpush1.bf16.msra.mxu0 0
        %1589 = vmatprep.mubr.bf16.mxu0 0
        %1590 = vmatmul.mubr.bf16.gmra.mrb[0].mxu0 0
        %v1591 = vpop.f32.mrb[0].mxu0
        %v1592 = vadd.f32 %v1431, %v1591
        %v1593 = vpop.f32.mrb[0].mxu0
        %v1594 = vpop.f32.mrb[0].mxu0
        %v1595 = vadd.f32 %v1434, %v1594
        %v1596 = vpop.f32.mrb[0].mxu0
        %1597 = vmatprep.mubr.bf16.mxu0 0
        %1598 = vmatmul.mubr.bf16.gmra.mrb[0].mxu0 %v577
        %v1599 = vpop.f32.mrb[0].mxu0
        %v1600 = vadd.f32 %v1439, %v1599
        %v1601 = vpop.f32.mrb[0].mxu0
        %v1602 = vpop.f32.mrb[0].mxu0
        %v1603 = vadd.f32 %v1442, %v1602
        %v1604 = vpop.f32.mrb[0].mxu0
        %1605 = vmatprep.mubr.bf16.mxu0 0
        %1606 = vmatmul.mubr.bf16.gmra.mrb[0].mxu0 %v578
        %v1607 = vpop.f32.mrb[0].mxu0
        %v1608 = vadd.f32 %v1447, %v1607
        %v1609 = vpop.f32.mrb[0].mxu0
        %v1610 = vpop.f32.mrb[0].mxu0
        %v1611 = vadd.f32 %v1450, %v1610
        %v1612 = vpop.f32.mrb[0].mxu0
        %1613 = vmatprep.mubr.bf16.mxu0 0
        %1614 = vmatmul.mubr.bf16.gmra.mrb[0].mxu0 %v579
        %v1615 = vpop.f32.mrb[0].mxu0
        %v1616 = vadd.f32 %v1455, %v1615
        %v1617 = vpop.f32.mrb[0].mxu0
        %v1618 = vpop.f32.mrb[0].mxu0
        %v1619 = vadd.f32 %v1458, %v1618
        %v1620 = vpop.f32.mrb[0].mxu0
        %1621 = vmatprep.mubr.bf16.mxu0 0
        %1622 = vmatmul.mubr.bf16.gmra.mrb[0].mxu0 %v580
        %v1623 = vpop.f32.mrb[0].mxu0
        %v1624 = vadd.f32 %v1463, %v1623
        %v1625 = vpop.f32.mrb[0].mxu0
        %v1626 = vpop.f32.mrb[0].mxu0
        %v1627 = vadd.f32 %v1466, %v1626
        %v1628 = vpop.f32.mrb[0].mxu0
        %1629 = vmatprep.mubr.bf16.mxu0 0
        %1630 = vmatmul.mubr.bf16.gmra.mrb[0].mxu0 %v581
        %v1631 = vpop.f32.mrb[0].mxu0
        %v1632 = vadd.f32 %v1471, %v1631
        %v1633 = vpop.f32.mrb[0].mxu0
        %v1634 = vpop.f32.mrb[0].mxu0
        %v1635 = vadd.f32 %v1474, %v1634
        %v1636 = vpop.f32.mrb[0].mxu0
        %1637 = vmatprep.mubr.bf16.mxu0 0
        %1638 = vmatmul.mubr.bf16.gmra.mrb[0].mxu0 %v582
        %v1639 = vpop.f32.mrb[0].mxu0
        %v1640 = vadd.f32 %v1479, %v1639
        %v1641 = vpop.f32.mrb[0].mxu0
        %v1642 = vpop.f32.mrb[0].mxu0
        %v1643 = vadd.f32 %v1482, %v1642
        %v1644 = vpop.f32.mrb[0].mxu0
        %1645 = vmatprep.mubr.bf16.mxu0 0
        %1646 = vmatmul.mubr.bf16.gmra.mrb[0].mxu0 %v583
        %v1647 = vpop.f32.mrb[0].mxu0
        %v1648 = vadd.f32 %v1487, %v1647
        %v1649 = vpop.f32.mrb[0].mxu0
        %v1650 = vpop.f32.mrb[0].mxu0
        %v1651 = vadd.f32 %v1490, %v1650
        %v1652 = vpop.f32.mrb[0].mxu0
        %1653 = vmatprep.mubr.bf16.mxu0 0
        %1654 = vmatmul.mubr.bf16.gmra.mrb[0].mxu0 %v584
        %v1655 = vpop.f32.mrb[0].mxu0
        %v1656 = vadd.f32 %v1495, %v1655
        %v1657 = vpop.f32.mrb[0].mxu0
        %v1658 = vpop.f32.mrb[0].mxu0
        %v1659 = vadd.f32 %v1498, %v1658
        %v1660 = vpop.f32.mrb[0].mxu0
        %1661 = vmatprep.mubr.bf16.mxu0 0
        %1662 = vmatmul.mubr.bf16.gmra.mrb[0].mxu0 %v585
        %v1663 = vpop.f32.mrb[0].mxu0
        %v1664 = vadd.f32 %v1503, %v1663
        %v1665 = vpop.f32.mrb[0].mxu0
        %v1666 = vpop.f32.mrb[0].mxu0
        %v1667 = vadd.f32 %v1506, %v1666
        %v1668 = vpop.f32.mrb[0].mxu0
        %1669 = vmatprep.mubr.bf16.mxu0 0
        %1670 = vmatmul.mubr.bf16.gmra.mrb[0].mxu0 %v586
        %v1671 = vpop.f32.mrb[0].mxu0
        %v1672 = vadd.f32 %v1511, %v1671
        %v1673 = vpop.f32.mrb[0].mxu0
        %v1674 = vpop.f32.mrb[0].mxu0
        %v1675 = vadd.f32 %v1514, %v1674
        %v1676 = vpop.f32.mrb[0].mxu0
        %1677 = vmatprep.mubr.bf16.mxu0 0
        %1678 = vmatmul.mubr.bf16.gmra.mrb[0].mxu0 %v587
        %v1679 = vpop.f32.mrb[0].mxu0
        %v1680 = vadd.f32 %v1519, %v1679
        %v1681 = vpop.f32.mrb[0].mxu0
        %v1682 = vpop.f32.mrb[0].mxu0
        %v1683 = vadd.f32 %v1522, %v1682
        %v1684 = vpop.f32.mrb[0].mxu0
        %1685 = vmatprep.mubr.bf16.mxu0 0
        %1686 = vmatmul.mubr.bf16.gmra.mrb[0].mxu0 %v588
        %v1687 = vpop.f32.mrb[0].mxu0
        %v1688 = vadd.f32 %v1527, %v1687
        %v1689 = vpop.f32.mrb[0].mxu0
        %v1690 = vpop.f32.mrb[0].mxu0
        %v1691 = vadd.f32 %v1530, %v1690
        %v1692 = vpop.f32.mrb[0].mxu0
        %1693 = vmatprep.mubr.bf16.mxu0 0
        %1694 = vmatmul.mubr.bf16.gmra.mrb[0].mxu0 %v589
        %v1695 = vpop.f32.mrb[0].mxu0
        %v1696 = vadd.f32 %v1535, %v1695
        %v1697 = vpop.f32.mrb[0].mxu0
        %v1698 = vpop.f32.mrb[0].mxu0
        %v1699 = vadd.f32 %v1538, %v1698
        %v1700 = vpop.f32.mrb[0].mxu0
        %1701 = vmatprep.mubr.bf16.mxu0 0
        %1702 = vmatmul.mubr.bf16.gmra.mrb[0].mxu0 %v590
        %v1703 = vpop.f32.mrb[0].mxu0
        %v1704 = vadd.f32 %v1543, %v1703
        %v1705 = vpop.f32.mrb[0].mxu0
        %v1706 = vpop.f32.mrb[0].mxu0
        %v1707 = vadd.f32 %v1546, %v1706
        %v1708 = vpop.f32.mrb[0].mxu0
        %1709 = vmatprep.mubr.bf16.mxu0 0
        %1710 = vmatmul.mubr.bf16.gmra.mrb[0].mxu0 %v591
        %v1711 = vpop.f32.mrb[0].mxu0
        %v1712 = vadd.f32 %v1551, %v1711
        %v1713 = vpop.f32.mrb[0].mxu0
        %v1714 = vpop.f32.mrb[0].mxu0
        %v1715 = vadd.f32 %v1554, %v1714
        %v1716 = vpop.f32.mrb[0].mxu0
        %1717 = vdwg.mxu0
        %s1718 = scalar_lea.vmem [#allocation5], 384
        %v1719 = vld [vmem:[%s1718] sm:$0xf]
        %v1720 = vld [vmem:[%s1718 + $0x4] sm:$0xf]
        %v1721 = vld [vmem:[%s1718 + $0x8] sm:$0xf]
        %v1722 = vld [vmem:[%s1718 + $0xc] sm:$0xf]
        %v1723 = vld [vmem:[%s1718 + $0x10] sm:$0xf]
        %v1724 = vld [vmem:[%s1718 + $0x14] sm:$0xf]
        %v1725 = vld [vmem:[%s1718 + $0x18] sm:$0xf]
        %v1726 = vld [vmem:[%s1718 + $0x1c] sm:$0xf]
        %v1727 = vld [vmem:[%s1718 + $0x20] sm:$0xf]
        %v1728 = vld [vmem:[%s1718 + $0x24] sm:$0xf]
        %v1729 = vld [vmem:[%s1718 + $0x28] sm:$0xf]
        %v1730 = vld [vmem:[%s1718 + $0x2c] sm:$0xf]
        %v1731 = vld [vmem:[%s1718 + $0x30] sm:$0xf]
        %v1732 = vld [vmem:[%s1718 + $0x34] sm:$0xf]
        %v1733 = vld [vmem:[%s1718 + $0x38] sm:$0xf]
        %v1734 = vld [vmem:[%s1718 + $0x3c] sm:$0xf]
        %v1735 = vld [vmem:[%s1718 + $0x40] sm:$0xf]
        %v1736 = vld [vmem:[%s1718 + $0x44] sm:$0xf]
        %v1737 = vld [vmem:[%s1718 + $0x48] sm:$0xf]
        %v1738 = vld [vmem:[%s1718 + $0x4c] sm:$0xf]
        %v1739 = vld [vmem:[%s1718 + $0x50] sm:$0xf]
        %v1740 = vld [vmem:[%s1718 + $0x54] sm:$0xf]
        %v1741 = vld [vmem:[%s1718 + $0x58] sm:$0xf]
        %v1742 = vld [vmem:[%s1718 + $0x5c] sm:$0xf]
        %v1743 = vld [vmem:[%s1718 + $0x60] sm:$0xf]
        %v1744 = vld [vmem:[%s1718 + $0x64] sm:$0xf]
        %v1745 = vld [vmem:[%s1718 + $0x68] sm:$0xf]
        %v1746 = vld [vmem:[%s1718 + $0x6c] sm:$0xf]
        %v1747 = vld [vmem:[%s1718 + $0x70] sm:$0xf]
        %v1748 = vld [vmem:[%s1718 + $0x74] sm:$0xf]
        %v1749 = vld [vmem:[%s1718 + $0x78] sm:$0xf]
        %v1750 = vld [vmem:[%s1718 + $0x7c] sm:$0xf]
        %v1751 = vld [vmem:[%s1718 + $0x80] sm:$0xf]
        %v1752 = vld [vmem:[%s1718 + $0x84] sm:$0xf]
        %v1753 = vld [vmem:[%s1718 + $0x88] sm:$0xf]
        %v1754 = vld [vmem:[%s1718 + $0x8c] sm:$0xf]
        %v1755 = vld [vmem:[%s1718 + $0x90] sm:$0xf]
        %v1756 = vld [vmem:[%s1718 + $0x94] sm:$0xf]
        %v1757 = vld [vmem:[%s1718 + $0x98] sm:$0xf]
        %v1758 = vld [vmem:[%s1718 + $0x9c] sm:$0xf]
        %v1759 = vld [vmem:[%s1718 + $0xa0] sm:$0xf]
        %v1760 = vld [vmem:[%s1718 + $0xa4] sm:$0xf]
        %v1761 = vld [vmem:[%s1718 + $0xa8] sm:$0xf]
        %v1762 = vld [vmem:[%s1718 + $0xac] sm:$0xf]
        %v1763 = vld [vmem:[%s1718 + $0xb0] sm:$0xf]
        %v1764 = vld [vmem:[%s1718 + $0xb4] sm:$0xf]
        %v1765 = vld [vmem:[%s1718 + $0xb8] sm:$0xf]
        %v1766 = vld [vmem:[%s1718 + $0xbc] sm:$0xf]
        %v1815 = vunpack.c.l.b16 %v1719
        %v1816 = vunpack.c.l.b16 %v1720
        %v1817 = vunpack.c.l.b16 %v1721
        %v1818 = vunpack.c.l.b16 %v1722
        %v1819 = vunpack.c.l.b16 %v1723
        %v1820 = vunpack.c.l.b16 %v1724
        %v1821 = vunpack.c.l.b16 %v1725
        %v1822 = vunpack.c.l.b16 %v1726
        %v1823 = vunpack.c.l.b16 %v1727
        %v1824 = vunpack.c.l.b16 %v1728
        %v1825 = vunpack.c.l.b16 %v1729
        %v1826 = vunpack.c.l.b16 %v1730
        %v1827 = vunpack.c.l.b16 %v1731
        %v1828 = vunpack.c.l.b16 %v1732
        %v1829 = vunpack.c.l.b16 %v1733
        %v1830 = vunpack.c.l.b16 %v1734
        %v1831 = vunpack.c.l.b16 %v1735
        %v1832 = vunpack.c.l.b16 %v1736
        %v1833 = vunpack.c.l.b16 %v1737
        %v1834 = vunpack.c.l.b16 %v1738
        %v1835 = vunpack.c.l.b16 %v1739
        %v1836 = vunpack.c.l.b16 %v1740
        %v1837 = vunpack.c.l.b16 %v1741
        %v1838 = vunpack.c.l.b16 %v1742
        %v1839 = vunpack.c.l.b16 %v1743
        %v1840 = vunpack.c.l.b16 %v1744
        %v1841 = vunpack.c.l.b16 %v1745
        %v1842 = vunpack.c.l.b16 %v1746
        %v1843 = vunpack.c.l.b16 %v1747
        %v1844 = vunpack.c.l.b16 %v1748
        %v1845 = vunpack.c.l.b16 %v1749
        %v1846 = vunpack.c.l.b16 %v1750
        %v1847 = vunpack.c.l.b16 %v1751
        %v1848 = vunpack.c.l.b16 %v1752
        %v1849 = vunpack.c.l.b16 %v1753
        %v1850 = vunpack.c.l.b16 %v1754
        %v1851 = vunpack.c.l.b16 %v1755
        %v1852 = vunpack.c.l.b16 %v1756
        %v1853 = vunpack.c.l.b16 %v1757
        %v1854 = vunpack.c.l.b16 %v1758
        %v1855 = vunpack.c.l.b16 %v1759
        %v1856 = vunpack.c.l.b16 %v1760
        %v1857 = vunpack.c.l.b16 %v1761
        %v1858 = vunpack.c.l.b16 %v1762
        %v1859 = vunpack.c.l.b16 %v1763
        %v1860 = vunpack.c.l.b16 %v1764
        %v1861 = vunpack.c.l.b16 %v1765
        %v1862 = vunpack.c.l.b16 %v1766
        %v1863 = vpack.c.b16 %v1816, %v1815
        %v1864 = vpack.c.b16 %v1818, %v1817
        %v1865 = vpack.c.b16 %v1820, %v1819
        %v1866 = vpack.c.b16 %v1822, %v1821
        %v1867 = vpack.c.b16 %v1824, %v1823
        %v1868 = vpack.c.b16 %v1826, %v1825
        %v1869 = vpack.c.b16 %v1828, %v1827
        %v1870 = vpack.c.b16 %v1830, %v1829
        %v1871 = vpack.c.b16 %v1832, %v1831
        %v1872 = vpack.c.b16 %v1834, %v1833
        %v1873 = vpack.c.b16 %v1836, %v1835
        %v1874 = vpack.c.b16 %v1838, %v1837
        %v1875 = vpack.c.b16 %v1840, %v1839
        %v1876 = vpack.c.b16 %v1842, %v1841
        %v1877 = vpack.c.b16 %v1844, %v1843
        %v1878 = vpack.c.b16 %v1846, %v1845
        %v1879 = vpack.c.b16 %v1848, %v1847
        %v1880 = vpack.c.b16 %v1850, %v1849
        %v1881 = vpack.c.b16 %v1852, %v1851
        %v1882 = vpack.c.b16 %v1854, %v1853
        %v1883 = vpack.c.b16 %v1856, %v1855
        %v1884 = vpack.c.b16 %v1858, %v1857
        %v1885 = vpack.c.b16 %v1860, %v1859
        %v1886 = vpack.c.b16 %v1862, %v1861
        %1911 = vmatprep.subr.bf16.mxu0 0
        %1912 = vmatpush1.bf16.msra.mxu0 %v1863
        %1913 = vmatprep.subr.bf16.mxu0 0
        %1914 = vmatpush1.bf16.msra.mxu0 %v1864
        %1915 = vmatprep.subr.bf16.mxu0 0
        %1916 = vmatpush1.bf16.msra.mxu0 %v1865
        %1917 = vmatprep.subr.bf16.mxu0 0
        %1918 = vmatpush1.bf16.msra.mxu0 %v1866
        %1919 = vmatprep.subr.bf16.mxu0 0
        %1920 = vmatpush1.bf16.msra.mxu0 %v1867
        %1921 = vmatprep.subr.bf16.mxu0 0
        %1922 = vmatpush1.bf16.msra.mxu0 %v1868
        %1923 = vmatprep.subr.bf16.mxu0 0
        %1924 = vmatpush1.bf16.msra.mxu0 %v1869
        %1925 = vmatprep.subr.bf16.mxu0 0
        %1926 = vmatpush1.bf16.msra.mxu0 %v1870
        %1927 = vmatprep.subr.bf16.mxu0 0
        %1928 = vmatpush1.bf16.msra.mxu0 %v1871
        %1929 = vmatprep.subr.bf16.mxu0 0
        %1930 = vmatpush1.bf16.msra.mxu0 %v1872
        %1931 = vmatprep.subr.bf16.mxu0 0
        %1932 = vmatpush1.bf16.msra.mxu0 %v1873
        %1933 = vmatprep.subr.bf16.mxu0 0
        %1934 = vmatpush1.bf16.msra.mxu0 %v1874
        %1935 = vmatprep.subr.bf16.mxu0 0
        %1936 = vmatpush1.bf16.msra.mxu0 %v1875
        %1937 = vmatprep.subr.bf16.mxu0 0
        %1938 = vmatpush1.bf16.msra.mxu0 %v1876
        %1939 = vmatprep.subr.bf16.mxu0 0
        %1940 = vmatpush1.bf16.msra.mxu0 %v1877
        %1941 = vmatprep.subr.bf16.mxu0 0
        %1942 = vmatpush1.bf16.msra.mxu0 %v1878
        %1943 = vmatprep.mubr.bf16.mxu0 %v658
        %1944 = vmatmul.mubr.bf16.gmra.mrb[0].mxu0 %v459
        %v1945 = vpop.f32.mrb[0].mxu0
        %v1946 = vadd.f32 0.0, %v1945
        %v1947 = vpop.f32.mrb[0].mxu0
        %v1948 = vpop.f32.mrb[0].mxu0
        %v1949 = vadd.f32 0.0, %v1948
        %v1950 = vpop.f32.mrb[0].mxu0
        %1951 = vmatprep.mubr.bf16.mxu0 %v659
        %1952 = vmatmul.mubr.bf16.gmra.mrb[0].mxu0 %v460
        %v1953 = vpop.f32.mrb[0].mxu0
        %v1954 = vadd.f32 0.0, %v1953
        %v1955 = vpop.f32.mrb[0].mxu0
        %v1956 = vpop.f32.mrb[0].mxu0
        %v1957 = vadd.f32 0.0, %v1956
        %v1958 = vpop.f32.mrb[0].mxu0
        %1959 = vmatprep.mubr.bf16.mxu0 %v660
        %1960 = vmatmul.mubr.bf16.gmra.mrb[0].mxu0 %v461
        %v1961 = vpop.f32.mrb[0].mxu0
        %v1962 = vadd.f32 0.0, %v1961
        %v1963 = vpop.f32.mrb[0].mxu0
        %v1964 = vpop.f32.mrb[0].mxu0
        %v1965 = vadd.f32 0.0, %v1964
        %v1966 = vpop.f32.mrb[0].mxu0
        %1967 = vmatprep.mubr.bf16.mxu0 %v661
        %1968 = vmatmul.mubr.bf16.gmra.mrb[0].mxu0 %v462
        %v1969 = vpop.f32.mrb[0].mxu0
        %v1970 = vadd.f32 0.0, %v1969
        %v1971 = vpop.f32.mrb[0].mxu0
        %v1972 = vpop.f32.mrb[0].mxu0
        %v1973 = vadd.f32 0.0, %v1972
        %v1974 = vpop.f32.mrb[0].mxu0
        %1975 = vmatprep.mubr.bf16.mxu0 %v662
        %1976 = vmatmul.mubr.bf16.gmra.mrb[0].mxu0 %v463
        %v1977 = vpop.f32.mrb[0].mxu0
        %v1978 = vadd.f32 0.0, %v1977
        %v1979 = vpop.f32.mrb[0].mxu0
        %v1980 = vpop.f32.mrb[0].mxu0
        %v1981 = vadd.f32 0.0, %v1980
        %v1982 = vpop.f32.mrb[0].mxu0
        %1983 = vmatprep.mubr.bf16.mxu0 %v663
        %1984 = vmatmul.mubr.bf16.gmra.mrb[0].mxu0 %v464
        %v1985 = vpop.f32.mrb[0].mxu0
        %v1986 = vadd.f32 0.0, %v1985
        %v1987 = vpop.f32.mrb[0].mxu0
        %v1988 = vpop.f32.mrb[0].mxu0
        %v1989 = vadd.f32 0.0, %v1988
        %v1990 = vpop.f32.mrb[0].mxu0
        %1991 = vmatprep.mubr.bf16.mxu0 %v664
        %1992 = vmatmul.mubr.bf16.gmra.mrb[0].mxu0 %v465
        %v1993 = vpop.f32.mrb[0].mxu0
        %v1994 = vadd.f32 0.0, %v1993
        %v1995 = vpop.f32.mrb[0].mxu0
        %v1996 = vpop.f32.mrb[0].mxu0
        %v1997 = vadd.f32 0.0, %v1996
        %v1998 = vpop.f32.mrb[0].mxu0
        %1999 = vmatprep.mubr.bf16.mxu0 %v665
        %2000 = vmatmul.mubr.bf16.gmra.mrb[0].mxu0 %v466
        %v2001 = vpop.f32.mrb[0].mxu0
        %v2002 = vadd.f32 0.0, %v2001
        %v2003 = vpop.f32.mrb[0].mxu0
        %v2004 = vpop.f32.mrb[0].mxu0
        %v2005 = vadd.f32 0.0, %v2004
        %v2006 = vpop.f32.mrb[0].mxu0
        %2007 = vmatprep.mubr.bf16.mxu0 %v666
        %2008 = vmatmul.mubr.bf16.gmra.mrb[0].mxu0 %v467
        %v2009 = vpop.f32.mrb[0].mxu0
        %v2010 = vadd.f32 0.0, %v2009
        %v2011 = vpop.f32.mrb[0].mxu0
        %v2012 = vpop.f32.mrb[0].mxu0
        %v2013 = vadd.f32 0.0, %v2012
        %v2014 = vpop.f32.mrb[0].mxu0
        %2015 = vmatprep.mubr.bf16.mxu0 %v667
        %2016 = vmatmul.mubr.bf16.gmra.mrb[0].mxu0 %v468
        %v2017 = vpop.f32.mrb[0].mxu0
        %v2018 = vadd.f32 0.0, %v2017
        %v2019 = vpop.f32.mrb[0].mxu0
        %v2020 = vpop.f32.mrb[0].mxu0
        %v2021 = vadd.f32 0.0, %v2020
        %v2022 = vpop.f32.mrb[0].mxu0
        %2023 = vmatprep.mubr.bf16.mxu0 %v668
        %2024 = vmatmul.mubr.bf16.gmra.mrb[0].mxu0 %v469
        %v2025 = vpop.f32.mrb[0].mxu0
        %v2026 = vadd.f32 0.0, %v2025
        %v2027 = vpop.f32.mrb[0].mxu0
        %v2028 = vpop.f32.mrb[0].mxu0
        %v2029 = vadd.f32 0.0, %v2028
        %v2030 = vpop.f32.mrb[0].mxu0
        %2031 = vmatprep.mubr.bf16.mxu0 %v669
        %2032 = vmatmul.mubr.bf16.gmra.mrb[0].mxu0 %v470
        %v2033 = vpop.f32.mrb[0].mxu0
        %v2034 = vadd.f32 0.0, %v2033
        %v2035 = vpop.f32.mrb[0].mxu0
        %v2036 = vpop.f32.mrb[0].mxu0
        %v2037 = vadd.f32 0.0, %v2036
        %v2038 = vpop.f32.mrb[0].mxu0
        %2039 = vmatprep.mubr.bf16.mxu0 %v670
        %2040 = vmatmul.mubr.bf16.gmra.mrb[0].mxu0 %v471
        %v2041 = vpop.f32.mrb[0].mxu0
        %v2042 = vadd.f32 0.0, %v2041
        %v2043 = vpop.f32.mrb[0].mxu0
        %v2044 = vpop.f32.mrb[0].mxu0
        %v2045 = vadd.f32 0.0, %v2044
        %v2046 = vpop.f32.mrb[0].mxu0
        %2047 = vmatprep.mubr.bf16.mxu0 %v671
        %2048 = vmatmul.mubr.bf16.gmra.mrb[0].mxu0 %v472
        %v2049 = vpop.f32.mrb[0].mxu0
        %v2050 = vadd.f32 0.0, %v2049
        %v2051 = vpop.f32.mrb[0].mxu0
        %v2052 = vpop.f32.mrb[0].mxu0
        %v2053 = vadd.f32 0.0, %v2052
        %v2054 = vpop.f32.mrb[0].mxu0
        %2055 = vmatprep.mubr.bf16.mxu0 %v672
        %2056 = vmatmul.mubr.bf16.gmra.mrb[0].mxu0 %v473
        %v2057 = vpop.f32.mrb[0].mxu0
        %v2058 = vadd.f32 0.0, %v2057
        %v2059 = vpop.f32.mrb[0].mxu0
        %v2060 = vpop.f32.mrb[0].mxu0
        %v2061 = vadd.f32 0.0, %v2060
        %v2062 = vpop.f32.mrb[0].mxu0
        %2063 = vmatprep.mubr.bf16.mxu0 0
        %2064 = vmatmul.mubr.bf16.gmra.mrb[0].mxu0 0
        %v2065 = vpop.f32.mrb[0].mxu0
        %v2066 = vadd.f32 0.0, %v2065
        %v2067 = vpop.f32.mrb[0].mxu0
        %v2068 = vpop.f32.mrb[0].mxu0
        %v2069 = vadd.f32 0.0, %v2068
        %v2070 = vpop.f32.mrb[0].mxu0
        %2071 = vdwg.mxu0
        %2072 = vmatprep.subr.bf16.mxu0 0
        %2073 = vmatpush1.bf16.msra.mxu0 %v1879
        %2074 = vmatprep.subr.bf16.mxu0 0
        %2075 = vmatpush1.bf16.msra.mxu0 %v1880
        %2076 = vmatprep.subr.bf16.mxu0 0
        %2077 = vmatpush1.bf16.msra.mxu0 %v1881
        %2078 = vmatprep.subr.bf16.mxu0 0
        %2079 = vmatpush1.bf16.msra.mxu0 %v1882
        %2080 = vmatprep.subr.bf16.mxu0 0
        %2081 = vmatpush1.bf16.msra.mxu0 %v1883
        %2082 = vmatprep.subr.bf16.mxu0 0
        %2083 = vmatpush1.bf16.msra.mxu0 %v1884
        %2084 = vmatprep.subr.bf16.mxu0 0
        %2085 = vmatpush1.bf16.msra.mxu0 %v1885
        %2086 = vmatprep.subr.bf16.mxu0 0
        %2087 = vmatpush1.bf16.msra.mxu0 %v1886
        %2088 = vmatprep.subr.bf16.mxu0 0
        %2089 = vmatpush1.bf16.msra.mxu0 0
        %2090 = vmatprep.subr.bf16.mxu0 0
        %2091 = vmatpush1.bf16.msra.mxu0 0
        %2092 = vmatprep.subr.bf16.mxu0 0
        %2093 = vmatpush1.bf16.msra.mxu0 0
        %2094 = vmatprep.subr.bf16.mxu0 0
        %2095 = vmatpush1.bf16.msra.mxu0 0
        %2096 = vmatprep.subr.bf16.mxu0 0
        %2097 = vmatpush1.bf16.msra.mxu0 0
        %2098 = vmatprep.subr.bf16.mxu0 0
        %2099 = vmatpush1.bf16.msra.mxu0 0
        %2100 = vmatprep.subr.bf16.mxu0 0
        %2101 = vmatpush1.bf16.msra.mxu0 0
        %2102 = vmatprep.subr.bf16.mxu0 0
        %2103 = vmatpush1.bf16.msra.mxu0 0
        %2104 = vmatprep.mubr.bf16.mxu0 0
        %2105 = vmatmul.mubr.bf16.gmra.mrb[0].mxu0 %v578
        %v2106 = vpop.f32.mrb[0].mxu0
        %v2107 = vadd.f32 %v1946, %v2106
        %v2108 = vpop.f32.mrb[0].mxu0
        %v2109 = vpop.f32.mrb[0].mxu0
        %v2110 = vadd.f32 %v1949, %v2109
        %v2111 = vpop.f32.mrb[0].mxu0
        %2112 = vmatprep.mubr.bf16.mxu0 0
        %2113 = vmatmul.mubr.bf16.gmra.mrb[0].mxu0 %v579
        %v2114 = vpop.f32.mrb[0].mxu0
        %v2115 = vadd.f32 %v1954, %v2114
        %v2116 = vpop.f32.mrb[0].mxu0
        %v2117 = vpop.f32.mrb[0].mxu0
        %v2118 = vadd.f32 %v1957, %v2117
        %v2119 = vpop.f32.mrb[0].mxu0
        %2120 = vmatprep.mubr.bf16.mxu0 0
        %2121 = vmatmul.mubr.bf16.gmra.mrb[0].mxu0 %v580
        %v2122 = vpop.f32.mrb[0].mxu0
        %v2123 = vadd.f32 %v1962, %v2122
        %v2124 = vpop.f32.mrb[0].mxu0
        %v2125 = vpop.f32.mrb[0].mxu0
        %v2126 = vadd.f32 %v1965, %v2125
        %v2127 = vpop.f32.mrb[0].mxu0
        %2128 = vmatprep.mubr.bf16.mxu0 0
        %2129 = vmatmul.mubr.bf16.gmra.mrb[0].mxu0 %v581
        %v2130 = vpop.f32.mrb[0].mxu0
        %v2131 = vadd.f32 %v1970, %v2130
        %v2132 = vpop.f32.mrb[0].mxu0
        %v2133 = vpop.f32.mrb[0].mxu0
        %v2134 = vadd.f32 %v1973, %v2133
        %v2135 = vpop.f32.mrb[0].mxu0
        %2136 = vmatprep.mubr.bf16.mxu0 0
        %2137 = vmatmul.mubr.bf16.gmra.mrb[0].mxu0 %v582
        %v2138 = vpop.f32.mrb[0].mxu0
        %v2139 = vadd.f32 %v1978, %v2138
        %v2140 = vpop.f32.mrb[0].mxu0
        %v2141 = vpop.f32.mrb[0].mxu0
        %v2142 = vadd.f32 %v1981, %v2141
        %v2143 = vpop.f32.mrb[0].mxu0
        %2144 = vmatprep.mubr.bf16.mxu0 0
        %2145 = vmatmul.mubr.bf16.gmra.mrb[0].mxu0 %v583
        %v2146 = vpop.f32.mrb[0].mxu0
        %v2147 = vadd.f32 %v1986, %v2146
        %v2148 = vpop.f32.mrb[0].mxu0
        %v2149 = vpop.f32.mrb[0].mxu0
        %v2150 = vadd.f32 %v1989, %v2149
        %v2151 = vpop.f32.mrb[0].mxu0
        %2152 = vmatprep.mubr.bf16.mxu0 0
        %2153 = vmatmul.mubr.bf16.gmra.mrb[0].mxu0 %v584
        %v2154 = vpop.f32.mrb[0].mxu0
        %v2155 = vadd.f32 %v1994, %v2154
        %v2156 = vpop.f32.mrb[0].mxu0
        %v2157 = vpop.f32.mrb[0].mxu0
        %v2158 = vadd.f32 %v1997, %v2157
        %v2159 = vpop.f32.mrb[0].mxu0
        %2160 = vmatprep.mubr.bf16.mxu0 0
        %2161 = vmatmul.mubr.bf16.gmra.mrb[0].mxu0 %v585
        %v2162 = vpop.f32.mrb[0].mxu0
        %v2163 = vadd.f32 %v2002, %v2162
        %v2164 = vpop.f32.mrb[0].mxu0
        %v2165 = vpop.f32.mrb[0].mxu0
        %v2166 = vadd.f32 %v2005, %v2165
        %v2167 = vpop.f32.mrb[0].mxu0
        %2168 = vmatprep.mubr.bf16.mxu0 0
        %2169 = vmatmul.mubr.bf16.gmra.mrb[0].mxu0 %v586
        %v2170 = vpop.f32.mrb[0].mxu0
        %v2171 = vadd.f32 %v2010, %v2170
        %v2172 = vpop.f32.mrb[0].mxu0
        %v2173 = vpop.f32.mrb[0].mxu0
        %v2174 = vadd.f32 %v2013, %v2173
        %v2175 = vpop.f32.mrb[0].mxu0
        %2176 = vmatprep.mubr.bf16.mxu0 0
        %2177 = vmatmul.mubr.bf16.gmra.mrb[0].mxu0 %v587
        %v2178 = vpop.f32.mrb[0].mxu0
        %v2179 = vadd.f32 %v2018, %v2178
        %v2180 = vpop.f32.mrb[0].mxu0
        %v2181 = vpop.f32.mrb[0].mxu0
        %v2182 = vadd.f32 %v2021, %v2181
        %v2183 = vpop.f32.mrb[0].mxu0
        %2184 = vmatprep.mubr.bf16.mxu0 0
        %2185 = vmatmul.mubr.bf16.gmra.mrb[0].mxu0 %v588
        %v2186 = vpop.f32.mrb[0].mxu0
        %v2187 = vadd.f32 %v2026, %v2186
        %v2188 = vpop.f32.mrb[0].mxu0
        %v2189 = vpop.f32.mrb[0].mxu0
        %v2190 = vadd.f32 %v2029, %v2189
        %v2191 = vpop.f32.mrb[0].mxu0
        %2192 = vmatprep.mubr.bf16.mxu0 0
        %2193 = vmatmul.mubr.bf16.gmra.mrb[0].mxu0 %v589
        %v2194 = vpop.f32.mrb[0].mxu0
        %v2195 = vadd.f32 %v2034, %v2194
        %v2196 = vpop.f32.mrb[0].mxu0
        %v2197 = vpop.f32.mrb[0].mxu0
        %v2198 = vadd.f32 %v2037, %v2197
        %v2199 = vpop.f32.mrb[0].mxu0
        %2200 = vmatprep.mubr.bf16.mxu0 0
        %2201 = vmatmul.mubr.bf16.gmra.mrb[0].mxu0 %v590
        %v2202 = vpop.f32.mrb[0].mxu0
        %v2203 = vadd.f32 %v2042, %v2202
        %v2204 = vpop.f32.mrb[0].mxu0
        %v2205 = vpop.f32.mrb[0].mxu0
        %v2206 = vadd.f32 %v2045, %v2205
        %v2207 = vpop.f32.mrb[0].mxu0
        %2208 = vmatprep.mubr.bf16.mxu0 0
        %2209 = vmatmul.mubr.bf16.gmra.mrb[0].mxu0 %v591
        %v2210 = vpop.f32.mrb[0].mxu0
        %v2211 = vadd.f32 %v2050, %v2210
        %v2212 = vpop.f32.mrb[0].mxu0
        %v2213 = vpop.f32.mrb[0].mxu0
        %v2214 = vadd.f32 %v2053, %v2213
        %v2215 = vpop.f32.mrb[0].mxu0
        %2216 = vmatprep.mubr.bf16.mxu0 0
        %2217 = vmatmul.mubr.bf16.gmra.mrb[0].mxu0 %v592
        %v2218 = vpop.f32.mrb[0].mxu0
        %v2219 = vadd.f32 %v2058, %v2218
        %v2220 = vpop.f32.mrb[0].mxu0
        %v2221 = vpop.f32.mrb[0].mxu0
        %v2222 = vadd.f32 %v2061, %v2221
        %v2223 = vpop.f32.mrb[0].mxu0
        %2224 = vmatprep.mubr.bf16.mxu0 0
        %2225 = vmatmul.mubr.bf16.gmra.mrb[0].mxu0 0
        %v2226 = vpop.f32.mrb[0].mxu0
        %v2227 = vadd.f32 %v2066, %v2226
        %v2228 = vpop.f32.mrb[0].mxu0
        %v2229 = vpop.f32.mrb[0].mxu0
        %v2230 = vadd.f32 %v2069, %v2229
        %v2231 = vpop.f32.mrb[0].mxu0
        %2232 = vdwg.mxu0
        %v2233 = vadd.f32 %v1592, %v2107
        %v2234 = vadd.f32 %v1595, %v2110
        %v2235 = vadd.f32 %v1600, %v2115
        %v2236 = vadd.f32 %v1603, %v2118
        %v2237 = vadd.f32 %v1608, %v2123
        %v2238 = vadd.f32 %v1611, %v2126
        %v2239 = vadd.f32 %v1616, %v2131
        %v2240 = vadd.f32 %v1619, %v2134
        %v2241 = vadd.f32 %v1624, %v2139
        %v2242 = vadd.f32 %v1627, %v2142
        %v2243 = vadd.f32 %v1632, %v2147
        %v2244 = vadd.f32 %v1635, %v2150
        %v2245 = vadd.f32 %v1640, %v2155
        %v2246 = vadd.f32 %v1643, %v2158
        %v2247 = vadd.f32 %v1648, %v2163
        %v2248 = vadd.f32 %v1651, %v2166
        %v2249 = vadd.f32 %v1656, %v2171
        %v2250 = vadd.f32 %v1659, %v2174
        %v2251 = vadd.f32 %v1664, %v2179
        %v2252 = vadd.f32 %v1667, %v2182
        %v2253 = vadd.f32 %v1672, %v2187
        %v2254 = vadd.f32 %v1675, %v2190
        %v2255 = vadd.f32 %v1680, %v2195
        %v2256 = vadd.f32 %v1683, %v2198
        %v2257 = vadd.f32 %v1688, %v2203
        %v2258 = vadd.f32 %v1691, %v2206
        %v2259 = vadd.f32 %v1696, %v2211
        %v2260 = vadd.f32 %v1699, %v2214
        %v2261 = vadd.f32 %v1704, %v2219
        %v2262 = vadd.f32 %v1707, %v2222
        %v2263 = vadd.f32 %v1712, %v2227
        %v2264 = vadd.f32 %v1715, %v2230
        %v2265 = vmax.f32 %v2233, 0.0
        %v2266 = vmax.f32 %v2234, 0.0
        %v2267 = vmax.f32 %v2235, 0.0
        %v2268 = vmax.f32 %v2236, 0.0
        %v2269 = vmax.f32 %v2237, 0.0
        %v2270 = vmax.f32 %v2238, 0.0
        %v2271 = vmax.f32 %v2239, 0.0
        %v2272 = vmax.f32 %v2240, 0.0
        %v2273 = vmax.f32 %v2241, 0.0
        %v2274 = vmax.f32 %v2242, 0.0
        %v2275 = vmax.f32 %v2243, 0.0
        %v2276 = vmax.f32 %v2244, 0.0
        %v2277 = vmax.f32 %v2245, 0.0
        %v2278 = vmax.f32 %v2246, 0.0
        %v2279 = vmax.f32 %v2247, 0.0
        %v2280 = vmax.f32 %v2248, 0.0
        %v2281 = vmax.f32 %v2249, 0.0
        %v2282 = vmax.f32 %v2250, 0.0
        %v2283 = vmax.f32 %v2251, 0.0
        %v2284 = vmax.f32 %v2252, 0.0
        %v2285 = vmax.f32 %v2253, 0.0
        %v2286 = vmax.f32 %v2254, 0.0
        %v2287 = vmax.f32 %v2255, 0.0
        %v2288 = vmax.f32 %v2256, 0.0
        %v2289 = vmax.f32 %v2257, 0.0
        %v2290 = vmax.f32 %v2258, 0.0
        %v2291 = vmax.f32 %v2259, 0.0
        %v2292 = vmax.f32 %v2260, 0.0
        %v2293 = vmax.f32 %v2261, 0.0
        %v2294 = vmax.f32 %v2262, 0.0
        %v2295 = vmax.f32 %v2263, 0.0
        %v2296 = vmax.f32 %v2264, 0.0
        %v2297 = vpack.c.bf16 %v2266, %v2265
        %v2298 = vpack.c.bf16 %v2268, %v2267
        %v2299 = vpack.c.bf16 %v2270, %v2269
        %v2300 = vpack.c.bf16 %v2272, %v2271
        %v2301 = vpack.c.bf16 %v2274, %v2273
        %v2302 = vpack.c.bf16 %v2276, %v2275
        %v2303 = vpack.c.bf16 %v2278, %v2277
        %v2304 = vpack.c.bf16 %v2280, %v2279
        %v2305 = vpack.c.bf16 %v2282, %v2281
        %v2306 = vpack.c.bf16 %v2284, %v2283
        %v2307 = vpack.c.bf16 %v2286, %v2285
        %v2308 = vpack.c.bf16 %v2288, %v2287
        %v2309 = vpack.c.bf16 %v2290, %v2289
        %v2310 = vpack.c.bf16 %v2292, %v2291
        %v2311 = vpack.c.bf16 %v2294, %v2293
        %v2312 = vpack.c.bf16 %v2296, %v2295
        %v2313 = vunpack.c.l.bf16 %v2297
        %v2314 = vunpack.c.h.bf16 %v2297
        %v2315 = vunpack.c.l.bf16 %v2298
        %v2316 = vunpack.c.h.bf16 %v2298
        %v2317 = vunpack.c.l.bf16 %v2299
        %v2318 = vunpack.c.h.bf16 %v2299
        %v2319 = vunpack.c.l.bf16 %v2300
        %v2320 = vunpack.c.h.bf16 %v2300
        %v2321 = vunpack.c.l.bf16 %v2301
        %v2322 = vunpack.c.h.bf16 %v2301
        %v2323 = vunpack.c.l.bf16 %v2302
        %v2324 = vunpack.c.h.bf16 %v2302
        %v2325 = vunpack.c.l.bf16 %v2303
        %v2326 = vunpack.c.h.bf16 %v2303
        %v2327 = vunpack.c.l.bf16 %v2304
        %v2328 = vunpack.c.h.bf16 %v2304
        %v2329 = vunpack.c.l.bf16 %v2305
        %v2330 = vunpack.c.h.bf16 %v2305
        %v2331 = vunpack.c.l.bf16 %v2306
        %v2332 = vunpack.c.h.bf16 %v2306
        %v2333 = vunpack.c.l.bf16 %v2307
        %v2334 = vunpack.c.h.bf16 %v2307
        %v2335 = vunpack.c.l.bf16 %v2308
        %v2336 = vunpack.c.h.bf16 %v2308
        %v2337 = vunpack.c.l.bf16 %v2309
        %v2338 = vunpack.c.h.bf16 %v2309
        %v2339 = vunpack.c.l.bf16 %v2310
        %v2340 = vunpack.c.h.bf16 %v2310
        %v2341 = vunpack.c.l.bf16 %v2311
        %v2342 = vunpack.c.h.bf16 %v2311
        %v2343 = vunpack.c.l.bf16 %v2312
        %v2344 = vunpack.c.h.bf16 %v2312
        %v2345 = vrot.slane %v2313, 7
        %v2346 = vrot.slane %v2315, 7
        %v2347 = vrot.slane %v2317, 7
        %v2348 = vrot.slane %v2319, 7
        %v2349 = vrot.slane %v2321, 7
        %v2350 = vrot.slane %v2323, 7
        %v2351 = vrot.slane %v2325, 7
        %v2352 = vrot.slane %v2327, 7
        %v2353 = vrot.slane %v2329, 7
        %v2354 = vrot.slane %v2331, 7
        %v2355 = vrot.slane %v2333, 7
        %v2356 = vrot.slane %v2335, 7
        %v2357 = vrot.slane %v2337, 7
        %v2358 = vrot.slane %v2339, 7
        %v2359 = vrot.slane %v2341, 7
        %v2360 = vrot.slane %v2343, 7
        %v2361 = vrot.slane %v2314, 7
        %v2362 = vrot.slane %v2316, 7
        %v2363 = vrot.slane %v2318, 7
        %v2364 = vrot.slane %v2320, 7
        %v2365 = vrot.slane %v2322, 7
        %v2366 = vrot.slane %v2324, 7
        %v2367 = vrot.slane %v2326, 7
        %v2368 = vrot.slane %v2328, 7
        %v2369 = vrot.slane %v2330, 7
        %v2370 = vrot.slane %v2332, 7
        %v2371 = vrot.slane %v2334, 7
        %v2372 = vrot.slane %v2336, 7
        %v2373 = vrot.slane %v2338, 7
        %v2374 = vrot.slane %v2340, 7
        %v2375 = vrot.slane %v2342, 7
        %v2376 = vrot.slane %v2344, 7
        %v2377 = vsel %vm389, %v2345, %v2361
        %v2378 = vsel %vm389, %v2346, %v2362
        %v2379 = vsel %vm389, %v2347, %v2363
        %v2380 = vsel %vm389, %v2348, %v2364
        %v2381 = vsel %vm389, %v2349, %v2365
        %v2382 = vsel %vm389, %v2350, %v2366
        %v2383 = vsel %vm389, %v2351, %v2367
        %v2384 = vsel %vm389, %v2352, %v2368
        %v2385 = vsel %vm389, %v2353, %v2369
        %v2386 = vsel %vm389, %v2354, %v2370
        %v2387 = vsel %vm389, %v2355, %v2371
        %v2388 = vsel %vm389, %v2356, %v2372
        %v2389 = vsel %vm389, %v2357, %v2373
        %v2390 = vsel %vm389, %v2358, %v2374
        %v2391 = vsel %vm389, %v2359, %v2375
        %v2392 = vsel %vm389, %v2360, %v2376
        %v2393 = vsel %vm389, %v2361, %v2345
        %v2394 = vsel %vm389, %v2362, %v2346
        %v2395 = vsel %vm389, %v2363, %v2347
        %v2396 = vsel %vm389, %v2364, %v2348
        %v2397 = vsel %vm389, %v2365, %v2349
        %v2398 = vsel %vm389, %v2366, %v2350
        %v2399 = vsel %vm389, %v2367, %v2351
        %v2400 = vsel %vm389, %v2368, %v2352
        %v2401 = vsel %vm389, %v2369, %v2353
        %v2402 = vsel %vm389, %v2370, %v2354
        %v2403 = vsel %vm389, %v2371, %v2355
        %v2404 = vsel %vm389, %v2372, %v2356
        %v2405 = vsel %vm389, %v2373, %v2357
        %v2406 = vsel %vm389, %v2374, %v2358
        %v2407 = vsel %vm389, %v2375, %v2359
        %v2408 = vsel %vm389, %v2376, %v2360
        %v2409 = vsel %vm424, 0.0, %v2393
        %v2410 = vsel %vm425, 0.0, %v2377
        %v2411 = vsel %vm424, 0.0, %v2394
        %v2412 = vsel %vm425, 0.0, %v2378
        %v2413 = vsel %vm424, 0.0, %v2395
        %v2414 = vsel %vm425, 0.0, %v2379
        %v2415 = vsel %vm424, 0.0, %v2396
        %v2416 = vsel %vm425, 0.0, %v2380
        %v2417 = vsel %vm424, 0.0, %v2397
        %v2418 = vsel %vm425, 0.0, %v2381
        %v2419 = vsel %vm424, 0.0, %v2398
        %v2420 = vsel %vm425, 0.0, %v2382
        %v2421 = vsel %vm424, 0.0, %v2399
        %v2422 = vsel %vm425, 0.0, %v2383
        %v2423 = vsel %vm424, 0.0, %v2400
        %v2424 = vsel %vm425, 0.0, %v2384
        %v2425 = vsel %vm424, 0.0, %v2401
        %v2426 = vsel %vm425, 0.0, %v2385
        %v2427 = vsel %vm424, 0.0, %v2402
        %v2428 = vsel %vm425, 0.0, %v2386
        %v2429 = vsel %vm424, 0.0, %v2403
        %v2430 = vsel %vm425, 0.0, %v2387
        %v2431 = vsel %vm424, 0.0, %v2404
        %v2432 = vsel %vm425, 0.0, %v2388
        %v2433 = vsel %vm424, 0.0, %v2405
        %v2434 = vsel %vm425, 0.0, %v2389
        %v2435 = vsel %vm424, 0.0, %v2406
        %v2436 = vsel %vm425, 0.0, %v2390
        %v2437 = vsel %vm424, 0.0, %v2407
        %v2438 = vsel %vm425, 0.0, %v2391
        %v2439 = vsel %vm424, 0.0, %v2408
        %v2440 = vsel %vm425, 0.0, %v2392
        %v2441 = vpack.c.bf16 %v2410, %v2409
        %v2442 = vpack.c.bf16 %v2412, %v2411
        %v2443 = vpack.c.bf16 %v2414, %v2413
        %v2444 = vpack.c.bf16 %v2416, %v2415
        %v2445 = vpack.c.bf16 %v2418, %v2417
        %v2446 = vpack.c.bf16 %v2420, %v2419
        %v2447 = vpack.c.bf16 %v2422, %v2421
        %v2448 = vpack.c.bf16 %v2424, %v2423
        %v2449 = vpack.c.bf16 %v2426, %v2425
        %v2450 = vpack.c.bf16 %v2428, %v2427
        %v2451 = vpack.c.bf16 %v2430, %v2429
        %v2452 = vpack.c.bf16 %v2432, %v2431
        %v2453 = vpack.c.bf16 %v2434, %v2433
        %v2454 = vpack.c.bf16 %v2436, %v2435
        %v2455 = vpack.c.bf16 %v2438, %v2437
        %v2456 = vpack.c.bf16 %v2440, %v2439
        %v2457 = vrot.slane %v2313, 1
        %v2458 = vrot.slane %v2315, 1
        %v2459 = vrot.slane %v2317, 1
        %v2460 = vrot.slane %v2319, 1
        %v2461 = vrot.slane %v2321, 1
        %v2462 = vrot.slane %v2323, 1
        %v2463 = vrot.slane %v2325, 1
        %v2464 = vrot.slane %v2327, 1
        %v2465 = vrot.slane %v2329, 1
        %v2466 = vrot.slane %v2331, 1
        %v2467 = vrot.slane %v2333, 1
        %v2468 = vrot.slane %v2335, 1
        %v2469 = vrot.slane %v2337, 1
        %v2470 = vrot.slane %v2339, 1
        %v2471 = vrot.slane %v2341, 1
        %v2472 = vrot.slane %v2343, 1
        %v2473 = vrot.slane %v2314, 1
        %v2474 = vrot.slane %v2316, 1
        %v2475 = vrot.slane %v2318, 1
        %v2476 = vrot.slane %v2320, 1
        %v2477 = vrot.slane %v2322, 1
        %v2478 = vrot.slane %v2324, 1
        %v2479 = vrot.slane %v2326, 1
        %v2480 = vrot.slane %v2328, 1
        %v2481 = vrot.slane %v2330, 1
        %v2482 = vrot.slane %v2332, 1
        %v2483 = vrot.slane %v2334, 1
        %v2484 = vrot.slane %v2336, 1
        %v2485 = vrot.slane %v2338, 1
        %v2486 = vrot.slane %v2340, 1
        %v2487 = vrot.slane %v2342, 1
        %v2488 = vrot.slane %v2344, 1
        %v2489 = vsel %vm508, %v2457, %v2473
        %v2490 = vsel %vm508, %v2458, %v2474
        %v2491 = vsel %vm508, %v2459, %v2475
        %v2492 = vsel %vm508, %v2460, %v2476
        %v2493 = vsel %vm508, %v2461, %v2477
        %v2494 = vsel %vm508, %v2462, %v2478
        %v2495 = vsel %vm508, %v2463, %v2479
        %v2496 = vsel %vm508, %v2464, %v2480
        %v2497 = vsel %vm508, %v2465, %v2481
        %v2498 = vsel %vm508, %v2466, %v2482
        %v2499 = vsel %vm508, %v2467, %v2483
        %v2500 = vsel %vm508, %v2468, %v2484
        %v2501 = vsel %vm508, %v2469, %v2485
        %v2502 = vsel %vm508, %v2470, %v2486
        %v2503 = vsel %vm508, %v2471, %v2487
        %v2504 = vsel %vm508, %v2472, %v2488
        %v2505 = vsel %vm508, %v2473, %v2457
        %v2506 = vsel %vm508, %v2474, %v2458
        %v2507 = vsel %vm508, %v2475, %v2459
        %v2508 = vsel %vm508, %v2476, %v2460
        %v2509 = vsel %vm508, %v2477, %v2461
        %v2510 = vsel %vm508, %v2478, %v2462
        %v2511 = vsel %vm508, %v2479, %v2463
        %v2512 = vsel %vm508, %v2480, %v2464
        %v2513 = vsel %vm508, %v2481, %v2465
        %v2514 = vsel %vm508, %v2482, %v2466
        %v2515 = vsel %vm508, %v2483, %v2467
        %v2516 = vsel %vm508, %v2484, %v2468
        %v2517 = vsel %vm508, %v2485, %v2469
        %v2518 = vsel %vm508, %v2486, %v2470
        %v2519 = vsel %vm508, %v2487, %v2471
        %v2520 = vsel %vm508, %v2488, %v2472
        %v2521 = vsel %vm543, 0.0, %v2489
        %v2522 = vsel %vm544, 0.0, %v2505
        %v2523 = vsel %vm543, 0.0, %v2490
        %v2524 = vsel %vm544, 0.0, %v2506
        %v2525 = vsel %vm543, 0.0, %v2491
        %v2526 = vsel %vm544, 0.0, %v2507
        %v2527 = vsel %vm543, 0.0, %v2492
        %v2528 = vsel %vm544, 0.0, %v2508
        %v2529 = vsel %vm543, 0.0, %v2493
        %v2530 = vsel %vm544, 0.0, %v2509
        %v2531 = vsel %vm543, 0.0, %v2494
        %v2532 = vsel %vm544, 0.0, %v2510
        %v2533 = vsel %vm543, 0.0, %v2495
        %v2534 = vsel %vm544, 0.0, %v2511
        %v2535 = vsel %vm543, 0.0, %v2496
        %v2536 = vsel %vm544, 0.0, %v2512
        %v2537 = vsel %vm543, 0.0, %v2497
        %v2538 = vsel %vm544, 0.0, %v2513
        %v2539 = vsel %vm543, 0.0, %v2498
        %v2540 = vsel %vm544, 0.0, %v2514
        %v2541 = vsel %vm543, 0.0, %v2499
        %v2542 = vsel %vm544, 0.0, %v2515
        %v2543 = vsel %vm543, 0.0, %v2500
        %v2544 = vsel %vm544, 0.0, %v2516
        %v2545 = vsel %vm543, 0.0, %v2501
        %v2546 = vsel %vm544, 0.0, %v2517
        %v2547 = vsel %vm543, 0.0, %v2502
        %v2548 = vsel %vm544, 0.0, %v2518
        %v2549 = vsel %vm543, 0.0, %v2503
        %v2550 = vsel %vm544, 0.0, %v2519
        %v2551 = vsel %vm543, 0.0, %v2504
        %v2552 = vsel %vm544, 0.0, %v2520
        %v2553 = vpack.c.bf16 %v2522, %v2521
        %v2554 = vpack.c.bf16 %v2524, %v2523
        %v2555 = vpack.c.bf16 %v2526, %v2525
        %v2556 = vpack.c.bf16 %v2528, %v2527
        %v2557 = vpack.c.bf16 %v2530, %v2529
        %v2558 = vpack.c.bf16 %v2532, %v2531
        %v2559 = vpack.c.bf16 %v2534, %v2533
        %v2560 = vpack.c.bf16 %v2536, %v2535
        %v2561 = vpack.c.bf16 %v2538, %v2537
        %v2562 = vpack.c.bf16 %v2540, %v2539
        %v2563 = vpack.c.bf16 %v2542, %v2541
        %v2564 = vpack.c.bf16 %v2544, %v2543
        %v2565 = vpack.c.bf16 %v2546, %v2545
        %v2566 = vpack.c.bf16 %v2548, %v2547
        %v2567 = vpack.c.bf16 %v2550, %v2549
        %v2568 = vpack.c.bf16 %v2552, %v2551
        %v2569 = vld [vmem:[#allocation7] sm:$0xf]
        %v2570 = vld [vmem:[#allocation7 + $0x4] sm:$0xf]
        %v2571 = vld [vmem:[#allocation7 + $0x8] sm:$0xf]
        %v2572 = vld [vmem:[#allocation7 + $0xc] sm:$0xf]
        %v2573 = vld [vmem:[#allocation7 + $0x10] sm:$0xf]
        %v2574 = vld [vmem:[#allocation7 + $0x14] sm:$0xf]
        %v2575 = vld [vmem:[#allocation7 + $0x18] sm:$0xf]
        %v2576 = vld [vmem:[#allocation7 + $0x1c] sm:$0xf]
        %v2577 = vld [vmem:[#allocation7 + $0x20] sm:$0xf]
        %v2578 = vld [vmem:[#allocation7 + $0x24] sm:$0xf]
        %v2579 = vld [vmem:[#allocation7 + $0x28] sm:$0xf]
        %v2580 = vld [vmem:[#allocation7 + $0x2c] sm:$0xf]
        %v2581 = vld [vmem:[#allocation7 + $0x30] sm:$0xf]
        %v2582 = vld [vmem:[#allocation7 + $0x34] sm:$0xf]
        %v2583 = vld [vmem:[#allocation7 + $0x38] sm:$0xf]
        %v2584 = vld [vmem:[#allocation7 + $0x3c] sm:$0xf]
        %v2585 = vld [vmem:[#allocation7 + $0x40] sm:$0xf]
        %v2586 = vld [vmem:[#allocation7 + $0x44] sm:$0xf]
        %v2587 = vld [vmem:[#allocation7 + $0x48] sm:$0xf]
        %v2588 = vld [vmem:[#allocation7 + $0x4c] sm:$0xf]
        %v2589 = vld [vmem:[#allocation7 + $0x50] sm:$0xf]
        %v2590 = vld [vmem:[#allocation7 + $0x54] sm:$0xf]
        %v2591 = vld [vmem:[#allocation7 + $0x58] sm:$0xf]
        %v2592 = vld [vmem:[#allocation7 + $0x5c] sm:$0xf]
        %v2593 = vld [vmem:[#allocation7 + $0x60] sm:$0xf]
        %v2594 = vld [vmem:[#allocation7 + $0x64] sm:$0xf]
        %v2595 = vld [vmem:[#allocation7 + $0x68] sm:$0xf]
        %v2596 = vld [vmem:[#allocation7 + $0x6c] sm:$0xf]
        %v2597 = vld [vmem:[#allocation7 + $0x70] sm:$0xf]
        %v2598 = vld [vmem:[#allocation7 + $0x74] sm:$0xf]
        %v2599 = vld [vmem:[#allocation7 + $0x78] sm:$0xf]
        %v2600 = vld [vmem:[#allocation7 + $0x7c] sm:$0xf]
        %v2601 = vld [vmem:[#allocation7 + $0x80] sm:$0xf]
        %v2602 = vld [vmem:[#allocation7 + $0x84] sm:$0xf]
        %v2603 = vld [vmem:[#allocation7 + $0x88] sm:$0xf]
        %v2604 = vld [vmem:[#allocation7 + $0x8c] sm:$0xf]
        %v2605 = vld [vmem:[#allocation7 + $0x90] sm:$0xf]
        %v2606 = vld [vmem:[#allocation7 + $0x94] sm:$0xf]
        %v2607 = vld [vmem:[#allocation7 + $0x98] sm:$0xf]
        %v2608 = vld [vmem:[#allocation7 + $0x9c] sm:$0xf]
        %v2609 = vld [vmem:[#allocation7 + $0xa0] sm:$0xf]
        %v2610 = vld [vmem:[#allocation7 + $0xa4] sm:$0xf]
        %v2611 = vld [vmem:[#allocation7 + $0xa8] sm:$0xf]
        %v2612 = vld [vmem:[#allocation7 + $0xac] sm:$0xf]
        %v2613 = vld [vmem:[#allocation7 + $0xb0] sm:$0xf]
        %v2614 = vld [vmem:[#allocation7 + $0xb4] sm:$0xf]
        %v2615 = vld [vmem:[#allocation7 + $0xb8] sm:$0xf]
        %v2616 = vld [vmem:[#allocation7 + $0xbc] sm:$0xf]
        %s2617 = scalar_lea.vmem [#allocation7], 192
        %v2618 = vld [vmem:[%s2617] sm:$0xf]
        %v2619 = vld [vmem:[%s2617 + $0x4] sm:$0xf]
        %v2620 = vld [vmem:[%s2617 + $0x8] sm:$0xf]
        %v2621 = vld [vmem:[%s2617 + $0xc] sm:$0xf]
        %v2622 = vld [vmem:[%s2617 + $0x10] sm:$0xf]
        %v2623 = vld [vmem:[%s2617 + $0x14] sm:$0xf]
        %v2624 = vld [vmem:[%s2617 + $0x18] sm:$0xf]
        %v2625 = vld [vmem:[%s2617 + $0x1c] sm:$0xf]
        %v2626 = vld [vmem:[%s2617 + $0x20] sm:$0xf]
        %v2627 = vld [vmem:[%s2617 + $0x24] sm:$0xf]
        %v2628 = vld [vmem:[%s2617 + $0x28] sm:$0xf]
        %v2629 = vld [vmem:[%s2617 + $0x2c] sm:$0xf]
        %v2630 = vld [vmem:[%s2617 + $0x30] sm:$0xf]
        %v2631 = vld [vmem:[%s2617 + $0x34] sm:$0xf]
        %v2632 = vld [vmem:[%s2617 + $0x38] sm:$0xf]
        %v2633 = vld [vmem:[%s2617 + $0x3c] sm:$0xf]
        %v2634 = vld [vmem:[%s2617 + $0x40] sm:$0xf]
        %v2635 = vld [vmem:[%s2617 + $0x44] sm:$0xf]
        %v2636 = vld [vmem:[%s2617 + $0x48] sm:$0xf]
        %v2637 = vld [vmem:[%s2617 + $0x4c] sm:$0xf]
        %v2638 = vld [vmem:[%s2617 + $0x50] sm:$0xf]
        %v2639 = vld [vmem:[%s2617 + $0x54] sm:$0xf]
        %v2640 = vld [vmem:[%s2617 + $0x58] sm:$0xf]
        %v2641 = vld [vmem:[%s2617 + $0x5c] sm:$0xf]
        %v2642 = vld [vmem:[%s2617 + $0x60] sm:$0xf]
        %v2643 = vld [vmem:[%s2617 + $0x64] sm:$0xf]
        %v2644 = vld [vmem:[%s2617 + $0x68] sm:$0xf]
        %v2645 = vld [vmem:[%s2617 + $0x6c] sm:$0xf]
        %v2646 = vld [vmem:[%s2617 + $0x70] sm:$0xf]
        %v2647 = vld [vmem:[%s2617 + $0x74] sm:$0xf]
        %v2648 = vld [vmem:[%s2617 + $0x78] sm:$0xf]
        %v2649 = vld [vmem:[%s2617 + $0x7c] sm:$0xf]
        %v2650 = vld [vmem:[%s2617 + $0x80] sm:$0xf]
        %v2651 = vld [vmem:[%s2617 + $0x84] sm:$0xf]
        %v2652 = vld [vmem:[%s2617 + $0x88] sm:$0xf]
        %v2653 = vld [vmem:[%s2617 + $0x8c] sm:$0xf]
        %v2654 = vld [vmem:[%s2617 + $0x90] sm:$0xf]
        %v2655 = vld [vmem:[%s2617 + $0x94] sm:$0xf]
        %v2656 = vld [vmem:[%s2617 + $0x98] sm:$0xf]
        %v2657 = vld [vmem:[%s2617 + $0x9c] sm:$0xf]
        %v2658 = vld [vmem:[%s2617 + $0xa0] sm:$0xf]
        %v2659 = vld [vmem:[%s2617 + $0xa4] sm:$0xf]
        %v2660 = vld [vmem:[%s2617 + $0xa8] sm:$0xf]
        %v2661 = vld [vmem:[%s2617 + $0xac] sm:$0xf]
        %v2662 = vld [vmem:[%s2617 + $0xb0] sm:$0xf]
        %v2663 = vld [vmem:[%s2617 + $0xb4] sm:$0xf]
        %v2664 = vld [vmem:[%s2617 + $0xb8] sm:$0xf]
        %v2665 = vld [vmem:[%s2617 + $0xbc] sm:$0xf]
        %v2714 = vunpack.c.l.b16 %v2618
        %v2715 = vunpack.c.l.b16 %v2619
        %v2716 = vunpack.c.l.b16 %v2620
        %v2717 = vunpack.c.l.b16 %v2621
        %v2718 = vunpack.c.l.b16 %v2622
        %v2719 = vunpack.c.l.b16 %v2623
        %v2720 = vunpack.c.l.b16 %v2624
        %v2721 = vunpack.c.l.b16 %v2625
        %v2722 = vunpack.c.l.b16 %v2626
        %v2723 = vunpack.c.l.b16 %v2627
        %v2724 = vunpack.c.l.b16 %v2628
        %v2725 = vunpack.c.l.b16 %v2629
        %v2726 = vunpack.c.l.b16 %v2630
        %v2727 = vunpack.c.l.b16 %v2631
        %v2728 = vunpack.c.l.b16 %v2632
        %v2729 = vunpack.c.l.b16 %v2633
        %v2730 = vunpack.c.l.b16 %v2634
        %v2731 = vunpack.c.l.b16 %v2635
        %v2732 = vunpack.c.l.b16 %v2636
        %v2733 = vunpack.c.l.b16 %v2637
        %v2734 = vunpack.c.l.b16 %v2638
        %v2735 = vunpack.c.l.b16 %v2639
        %v2736 = vunpack.c.l.b16 %v2640
        %v2737 = vunpack.c.l.b16 %v2641
        %v2738 = vunpack.c.l.b16 %v2642
        %v2739 = vunpack.c.l.b16 %v2643
        %v2740 = vunpack.c.l.b16 %v2644
        %v2741 = vunpack.c.l.b16 %v2645
        %v2742 = vunpack.c.l.b16 %v2646
        %v2743 = vunpack.c.l.b16 %v2647
        %v2744 = vunpack.c.l.b16 %v2648
        %v2745 = vunpack.c.l.b16 %v2649
        %v2746 = vunpack.c.l.b16 %v2650
        %v2747 = vunpack.c.l.b16 %v2651
        %v2748 = vunpack.c.l.b16 %v2652
        %v2749 = vunpack.c.l.b16 %v2653
        %v2750 = vunpack.c.l.b16 %v2654
        %v2751 = vunpack.c.l.b16 %v2655
        %v2752 = vunpack.c.l.b16 %v2656
        %v2753 = vunpack.c.l.b16 %v2657
        %v2754 = vunpack.c.l.b16 %v2658
        %v2755 = vunpack.c.l.b16 %v2659
        %v2756 = vunpack.c.l.b16 %v2660
        %v2757 = vunpack.c.l.b16 %v2661
        %v2758 = vunpack.c.l.b16 %v2662
        %v2759 = vunpack.c.l.b16 %v2663
        %v2760 = vunpack.c.l.b16 %v2664
        %v2761 = vunpack.c.l.b16 %v2665
        %v2762 = vpack.c.b16 %v2715, %v2714
        %v2763 = vpack.c.b16 %v2717, %v2716
        %v2764 = vpack.c.b16 %v2719, %v2718
        %v2765 = vpack.c.b16 %v2721, %v2720
        %v2766 = vpack.c.b16 %v2723, %v2722
        %v2767 = vpack.c.b16 %v2725, %v2724
        %v2768 = vpack.c.b16 %v2727, %v2726
        %v2769 = vpack.c.b16 %v2729, %v2728
        %v2770 = vpack.c.b16 %v2731, %v2730
        %v2771 = vpack.c.b16 %v2733, %v2732
        %v2772 = vpack.c.b16 %v2735, %v2734
        %v2773 = vpack.c.b16 %v2737, %v2736
        %v2774 = vpack.c.b16 %v2739, %v2738
        %v2775 = vpack.c.b16 %v2741, %v2740
        %v2776 = vpack.c.b16 %v2743, %v2742
        %v2777 = vpack.c.b16 %v2745, %v2744
        %v2778 = vpack.c.b16 %v2747, %v2746
        %v2779 = vpack.c.b16 %v2749, %v2748
        %v2780 = vpack.c.b16 %v2751, %v2750
        %v2781 = vpack.c.b16 %v2753, %v2752
        %v2782 = vpack.c.b16 %v2755, %v2754
        %v2783 = vpack.c.b16 %v2757, %v2756
        %v2784 = vpack.c.b16 %v2759, %v2758
        %v2785 = vpack.c.b16 %v2761, %v2760
        %2810 = vmatprep.subr.bf16.mxu0 0
        %2811 = vmatpush1.bf16.msra.mxu0 %v2762
        %2812 = vmatprep.subr.bf16.mxu0 0
        %2813 = vmatpush1.bf16.msra.mxu0 %v2763
        %2814 = vmatprep.subr.bf16.mxu0 0
        %2815 = vmatpush1.bf16.msra.mxu0 %v2764
        %2816 = vmatprep.subr.bf16.mxu0 0
        %2817 = vmatpush1.bf16.msra.mxu0 %v2765
        %2818 = vmatprep.subr.bf16.mxu0 0
        %2819 = vmatpush1.bf16.msra.mxu0 %v2766
        %2820 = vmatprep.subr.bf16.mxu0 0
        %2821 = vmatpush1.bf16.msra.mxu0 %v2767
        %2822 = vmatprep.subr.bf16.mxu0 0
        %2823 = vmatpush1.bf16.msra.mxu0 %v2768
        %2824 = vmatprep.subr.bf16.mxu0 0
        %2825 = vmatpush1.bf16.msra.mxu0 %v2769
        %2826 = vmatprep.subr.bf16.mxu0 0
        %2827 = vmatpush1.bf16.msra.mxu0 %v2770
        %2828 = vmatprep.subr.bf16.mxu0 0
        %2829 = vmatpush1.bf16.msra.mxu0 %v2771
        %2830 = vmatprep.subr.bf16.mxu0 0
        %2831 = vmatpush1.bf16.msra.mxu0 %v2772
        %2832 = vmatprep.subr.bf16.mxu0 0
        %2833 = vmatpush1.bf16.msra.mxu0 %v2773
        %2834 = vmatprep.subr.bf16.mxu0 0
        %2835 = vmatpush1.bf16.msra.mxu0 %v2774
        %2836 = vmatprep.subr.bf16.mxu0 0
        %2837 = vmatpush1.bf16.msra.mxu0 %v2775
        %2838 = vmatprep.subr.bf16.mxu0 0
        %2839 = vmatpush1.bf16.msra.mxu0 %v2776
        %2840 = vmatprep.subr.bf16.mxu0 0
        %2841 = vmatpush1.bf16.msra.mxu0 %v2777
        %2842 = vmatprep.mubr.bf16.mxu0 %v2297
        %2843 = vmatmul.mubr.bf16.gmra.mrb[0].mxu0 %v2441
        %v2844 = vpop.f32.mrb[0].mxu0
        %v2845 = vadd.f32 0.0, %v2844
        %v2846 = vpop.f32.mrb[0].mxu0
        %v2847 = vpop.f32.mrb[0].mxu0
        %v2848 = vadd.f32 0.0, %v2847
        %v2849 = vpop.f32.mrb[0].mxu0
        %2850 = vmatprep.mubr.bf16.mxu0 %v2298
        %2851 = vmatmul.mubr.bf16.gmra.mrb[0].mxu0 %v2442
        %v2852 = vpop.f32.mrb[0].mxu0
        %v2853 = vadd.f32 0.0, %v2852
        %v2854 = vpop.f32.mrb[0].mxu0
        %v2855 = vpop.f32.mrb[0].mxu0
        %v2856 = vadd.f32 0.0, %v2855
        %v2857 = vpop.f32.mrb[0].mxu0
        %2858 = vmatprep.mubr.bf16.mxu0 %v2299
        %2859 = vmatmul.mubr.bf16.gmra.mrb[0].mxu0 %v2443
        %v2860 = vpop.f32.mrb[0].mxu0
        %v2861 = vadd.f32 0.0, %v2860
        %v2862 = vpop.f32.mrb[0].mxu0
        %v2863 = vpop.f32.mrb[0].mxu0
        %v2864 = vadd.f32 0.0, %v2863
        %v2865 = vpop.f32.mrb[0].mxu0
        %2866 = vmatprep.mubr.bf16.mxu0 %v2300
        %2867 = vmatmul.mubr.bf16.gmra.mrb[0].mxu0 %v2444
        %v2868 = vpop.f32.mrb[0].mxu0
        %v2869 = vadd.f32 0.0, %v2868
        %v2870 = vpop.f32.mrb[0].mxu0
        %v2871 = vpop.f32.mrb[0].mxu0
        %v2872 = vadd.f32 0.0, %v2871
        %v2873 = vpop.f32.mrb[0].mxu0
        %2874 = vmatprep.mubr.bf16.mxu0 %v2301
        %2875 = vmatmul.mubr.bf16.gmra.mrb[0].mxu0 %v2445
        %v2876 = vpop.f32.mrb[0].mxu0
        %v2877 = vadd.f32 0.0, %v2876
        %v2878 = vpop.f32.mrb[0].mxu0
        %v2879 = vpop.f32.mrb[0].mxu0
        %v2880 = vadd.f32 0.0, %v2879
        %v2881 = vpop.f32.mrb[0].mxu0
        %2882 = vmatprep.mubr.bf16.mxu0 %v2302
        %2883 = vmatmul.mubr.bf16.gmra.mrb[0].mxu0 %v2446
        %v2884 = vpop.f32.mrb[0].mxu0
        %v2885 = vadd.f32 0.0, %v2884
        %v2886 = vpop.f32.mrb[0].mxu0
        %v2887 = vpop.f32.mrb[0].mxu0
        %v2888 = vadd.f32 0.0, %v2887
        %v2889 = vpop.f32.mrb[0].mxu0
        %2890 = vmatprep.mubr.bf16.mxu0 %v2303
        %2891 = vmatmul.mubr.bf16.gmra.mrb[0].mxu0 %v2447
        %v2892 = vpop.f32.mrb[0].mxu0
        %v2893 = vadd.f32 0.0, %v2892
        %v2894 = vpop.f32.mrb[0].mxu0
        %v2895 = vpop.f32.mrb[0].mxu0
        %v2896 = vadd.f32 0.0, %v2895
        %v2897 = vpop.f32.mrb[0].mxu0
        %2898 = vmatprep.mubr.bf16.mxu0 %v2304
        %2899 = vmatmul.mubr.bf16.gmra.mrb[0].mxu0 %v2448
        %v2900 = vpop.f32.mrb[0].mxu0
        %v2901 = vadd.f32 0.0, %v2900
        %v2902 = vpop.f32.mrb[0].mxu0
        %v2903 = vpop.f32.mrb[0].mxu0
        %v2904 = vadd.f32 0.0, %v2903
        %v2905 = vpop.f32.mrb[0].mxu0
        %2906 = vmatprep.mubr.bf16.mxu0 %v2305
        %2907 = vmatmul.mubr.bf16.gmra.mrb[0].mxu0 %v2449
        %v2908 = vpop.f32.mrb[0].mxu0
        %v2909 = vadd.f32 0.0, %v2908
        %v2910 = vpop.f32.mrb[0].mxu0
        %v2911 = vpop.f32.mrb[0].mxu0
        %v2912 = vadd.f32 0.0, %v2911
        %v2913 = vpop.f32.mrb[0].mxu0
        %2914 = vmatprep.mubr.bf16.mxu0 %v2306
        %2915 = vmatmul.mubr.bf16.gmra.mrb[0].mxu0 %v2450
        %v2916 = vpop.f32.mrb[0].mxu0
        %v2917 = vadd.f32 0.0, %v2916
        %v2918 = vpop.f32.mrb[0].mxu0
        %v2919 = vpop.f32.mrb[0].mxu0
        %v2920 = vadd.f32 0.0, %v2919
        %v2921 = vpop.f32.mrb[0].mxu0
        %2922 = vmatprep.mubr.bf16.mxu0 %v2307
        %2923 = vmatmul.mubr.bf16.gmra.mrb[0].mxu0 %v2451
        %v2924 = vpop.f32.mrb[0].mxu0
        %v2925 = vadd.f32 0.0, %v2924
        %v2926 = vpop.f32.mrb[0].mxu0
        %v2927 = vpop.f32.mrb[0].mxu0
        %v2928 = vadd.f32 0.0, %v2927
        %v2929 = vpop.f32.mrb[0].mxu0
        %2930 = vmatprep.mubr.bf16.mxu0 %v2308
        %2931 = vmatmul.mubr.bf16.gmra.mrb[0].mxu0 %v2452
        %v2932 = vpop.f32.mrb[0].mxu0
        %v2933 = vadd.f32 0.0, %v2932
        %v2934 = vpop.f32.mrb[0].mxu0
        %v2935 = vpop.f32.mrb[0].mxu0
        %v2936 = vadd.f32 0.0, %v2935
        %v2937 = vpop.f32.mrb[0].mxu0
        %2938 = vmatprep.mubr.bf16.mxu0 %v2309
        %2939 = vmatmul.mubr.bf16.gmra.mrb[0].mxu0 %v2453
        %v2940 = vpop.f32.mrb[0].mxu0
        %v2941 = vadd.f32 0.0, %v2940
        %v2942 = vpop.f32.mrb[0].mxu0
        %v2943 = vpop.f32.mrb[0].mxu0
        %v2944 = vadd.f32 0.0, %v2943
        %v2945 = vpop.f32.mrb[0].mxu0
        %2946 = vmatprep.mubr.bf16.mxu0 %v2310
        %2947 = vmatmul.mubr.bf16.gmra.mrb[0].mxu0 %v2454
        %v2948 = vpop.f32.mrb[0].mxu0
        %v2949 = vadd.f32 0.0, %v2948
        %v2950 = vpop.f32.mrb[0].mxu0
        %v2951 = vpop.f32.mrb[0].mxu0
        %v2952 = vadd.f32 0.0, %v2951
        %v2953 = vpop.f32.mrb[0].mxu0
        %2954 = vmatprep.mubr.bf16.mxu0 %v2311
        %2955 = vmatmul.mubr.bf16.gmra.mrb[0].mxu0 %v2455
        %v2956 = vpop.f32.mrb[0].mxu0
        %v2957 = vadd.f32 0.0, %v2956
        %v2958 = vpop.f32.mrb[0].mxu0
        %v2959 = vpop.f32.mrb[0].mxu0
        %v2960 = vadd.f32 0.0, %v2959
        %v2961 = vpop.f32.mrb[0].mxu0
        %2962 = vmatprep.mubr.bf16.mxu0 %v2312
        %2963 = vmatmul.mubr.bf16.gmra.mrb[0].mxu0 %v2456
        %v2964 = vpop.f32.mrb[0].mxu0
        %v2965 = vadd.f32 0.0, %v2964
        %v2966 = vpop.f32.mrb[0].mxu0
        %v2967 = vpop.f32.mrb[0].mxu0
        %v2968 = vadd.f32 0.0, %v2967
        %v2969 = vpop.f32.mrb[0].mxu0
        %2970 = vdwg.mxu0
        %2971 = vmatprep.subr.bf16.mxu0 0
        %2972 = vmatpush1.bf16.msra.mxu0 %v2778
        %2973 = vmatprep.subr.bf16.mxu0 0
        %2974 = vmatpush1.bf16.msra.mxu0 %v2779
        %2975 = vmatprep.subr.bf16.mxu0 0
        %2976 = vmatpush1.bf16.msra.mxu0 %v2780
        %2977 = vmatprep.subr.bf16.mxu0 0
        %2978 = vmatpush1.bf16.msra.mxu0 %v2781
        %2979 = vmatprep.subr.bf16.mxu0 0
        %2980 = vmatpush1.bf16.msra.mxu0 %v2782
        %2981 = vmatprep.subr.bf16.mxu0 0
        %2982 = vmatpush1.bf16.msra.mxu0 %v2783
        %2983 = vmatprep.subr.bf16.mxu0 0
        %2984 = vmatpush1.bf16.msra.mxu0 %v2784
        %2985 = vmatprep.subr.bf16.mxu0 0
        %2986 = vmatpush1.bf16.msra.mxu0 %v2785
        %2987 = vmatprep.subr.bf16.mxu0 0
        %2988 = vmatpush1.bf16.msra.mxu0 0
        %2989 = vmatprep.subr.bf16.mxu0 0
        %2990 = vmatpush1.bf16.msra.mxu0 0
        %2991 = vmatprep.subr.bf16.mxu0 0
        %2992 = vmatpush1.bf16.msra.mxu0 0
        %2993 = vmatprep.subr.bf16.mxu0 0
        %2994 = vmatpush1.bf16.msra.mxu0 0
        %2995 = vmatprep.subr.bf16.mxu0 0
        %2996 = vmatpush1.bf16.msra.mxu0 0
        %2997 = vmatprep.subr.bf16.mxu0 0
        %2998 = vmatpush1.bf16.msra.mxu0 0
        %2999 = vmatprep.subr.bf16.mxu0 0
        %3000 = vmatpush1.bf16.msra.mxu0 0
        %3001 = vmatprep.subr.bf16.mxu0 0
        %3002 = vmatpush1.bf16.msra.mxu0 0
        %3003 = vmatprep.mubr.bf16.mxu0 0
        %3004 = vmatmul.mubr.bf16.gmra.mrb[0].mxu0 %v2553
        %v3005 = vpop.f32.mrb[0].mxu0
        %v3006 = vadd.f32 %v2845, %v3005
        %v3007 = vpop.f32.mrb[0].mxu0
        %v3008 = vpop.f32.mrb[0].mxu0
        %v3009 = vadd.f32 %v2848, %v3008
        %v3010 = vpop.f32.mrb[0].mxu0
        %3011 = vmatprep.mubr.bf16.mxu0 0
        %3012 = vmatmul.mubr.bf16.gmra.mrb[0].mxu0 %v2554
        %v3013 = vpop.f32.mrb[0].mxu0
        %v3014 = vadd.f32 %v2853, %v3013
        %v3015 = vpop.f32.mrb[0].mxu0
        %v3016 = vpop.f32.mrb[0].mxu0
        %v3017 = vadd.f32 %v2856, %v3016
        %v3018 = vpop.f32.mrb[0].mxu0
        %3019 = vmatprep.mubr.bf16.mxu0 0
        %3020 = vmatmul.mubr.bf16.gmra.mrb[0].mxu0 %v2555
        %v3021 = vpop.f32.mrb[0].mxu0
        %v3022 = vadd.f32 %v2861, %v3021
        %v3023 = vpop.f32.mrb[0].mxu0
        %v3024 = vpop.f32.mrb[0].mxu0
        %v3025 = vadd.f32 %v2864, %v3024
        %v3026 = vpop.f32.mrb[0].mxu0
        %3027 = vmatprep.mubr.bf16.mxu0 0
        %3028 = vmatmul.mubr.bf16.gmra.mrb[0].mxu0 %v2556
        %v3029 = vpop.f32.mrb[0].mxu0
        %v3030 = vadd.f32 %v2869, %v3029
        %v3031 = vpop.f32.mrb[0].mxu0
        %v3032 = vpop.f32.mrb[0].mxu0
        %v3033 = vadd.f32 %v2872, %v3032
        %v3034 = vpop.f32.mrb[0].mxu0
        %3035 = vmatprep.mubr.bf16.mxu0 0
        %3036 = vmatmul.mubr.bf16.gmra.mrb[0].mxu0 %v2557
        %v3037 = vpop.f32.mrb[0].mxu0
        %v3038 = vadd.f32 %v2877, %v3037
        %v3039 = vpop.f32.mrb[0].mxu0
        %v3040 = vpop.f32.mrb[0].mxu0
        %v3041 = vadd.f32 %v2880, %v3040
        %v3042 = vpop.f32.mrb[0].mxu0
        %3043 = vmatprep.mubr.bf16.mxu0 0
        %3044 = vmatmul.mubr.bf16.gmra.mrb[0].mxu0 %v2558
        %v3045 = vpop.f32.mrb[0].mxu0
        %v3046 = vadd.f32 %v2885, %v3045
        %v3047 = vpop.f32.mrb[0].mxu0
        %v3048 = vpop.f32.mrb[0].mxu0
        %v3049 = vadd.f32 %v2888, %v3048
        %v3050 = vpop.f32.mrb[0].mxu0
        %3051 = vmatprep.mubr.bf16.mxu0 0
        %3052 = vmatmul.mubr.bf16.gmra.mrb[0].mxu0 %v2559
        %v3053 = vpop.f32.mrb[0].mxu0
        %v3054 = vadd.f32 %v2893, %v3053
        %v3055 = vpop.f32.mrb[0].mxu0
        %v3056 = vpop.f32.mrb[0].mxu0
        %v3057 = vadd.f32 %v2896, %v3056
        %v3058 = vpop.f32.mrb[0].mxu0
        %3059 = vmatprep.mubr.bf16.mxu0 0
        %3060 = vmatmul.mubr.bf16.gmra.mrb[0].mxu0 %v2560
        %v3061 = vpop.f32.mrb[0].mxu0
        %v3062 = vadd.f32 %v2901, %v3061
        %v3063 = vpop.f32.mrb[0].mxu0
        %v3064 = vpop.f32.mrb[0].mxu0
        %v3065 = vadd.f32 %v2904, %v3064
        %v3066 = vpop.f32.mrb[0].mxu0
        %3067 = vmatprep.mubr.bf16.mxu0 0
        %3068 = vmatmul.mubr.bf16.gmra.mrb[0].mxu0 %v2561
        %v3069 = vpop.f32.mrb[0].mxu0
        %v3070 = vadd.f32 %v2909, %v3069
        %v3071 = vpop.f32.mrb[0].mxu0
        %v3072 = vpop.f32.mrb[0].mxu0
        %v3073 = vadd.f32 %v2912, %v3072
        %v3074 = vpop.f32.mrb[0].mxu0
        %3075 = vmatprep.mubr.bf16.mxu0 0
        %3076 = vmatmul.mubr.bf16.gmra.mrb[0].mxu0 %v2562
        %v3077 = vpop.f32.mrb[0].mxu0
        %v3078 = vadd.f32 %v2917, %v3077
        %v3079 = vpop.f32.mrb[0].mxu0
        %v3080 = vpop.f32.mrb[0].mxu0
        %v3081 = vadd.f32 %v2920, %v3080
        %v3082 = vpop.f32.mrb[0].mxu0
        %3083 = vmatprep.mubr.bf16.mxu0 0
        %3084 = vmatmul.mubr.bf16.gmra.mrb[0].mxu0 %v2563
        %v3085 = vpop.f32.mrb[0].mxu0
        %v3086 = vadd.f32 %v2925, %v3085
        %v3087 = vpop.f32.mrb[0].mxu0
        %v3088 = vpop.f32.mrb[0].mxu0
        %v3089 = vadd.f32 %v2928, %v3088
        %v3090 = vpop.f32.mrb[0].mxu0
        %3091 = vmatprep.mubr.bf16.mxu0 0
        %3092 = vmatmul.mubr.bf16.gmra.mrb[0].mxu0 %v2564
        %v3093 = vpop.f32.mrb[0].mxu0
        %v3094 = vadd.f32 %v2933, %v3093
        %v3095 = vpop.f32.mrb[0].mxu0
        %v3096 = vpop.f32.mrb[0].mxu0
        %v3097 = vadd.f32 %v2936, %v3096
        %v3098 = vpop.f32.mrb[0].mxu0
        %3099 = vmatprep.mubr.bf16.mxu0 0
        %3100 = vmatmul.mubr.bf16.gmra.mrb[0].mxu0 %v2565
        %v3101 = vpop.f32.mrb[0].mxu0
        %v3102 = vadd.f32 %v2941, %v3101
        %v3103 = vpop.f32.mrb[0].mxu0
        %v3104 = vpop.f32.mrb[0].mxu0
        %v3105 = vadd.f32 %v2944, %v3104
        %v3106 = vpop.f32.mrb[0].mxu0
        %3107 = vmatprep.mubr.bf16.mxu0 0
        %3108 = vmatmul.mubr.bf16.gmra.mrb[0].mxu0 %v2566
        %v3109 = vpop.f32.mrb[0].mxu0
        %v3110 = vadd.f32 %v2949, %v3109
        %v3111 = vpop.f32.mrb[0].mxu0
        %v3112 = vpop.f32.mrb[0].mxu0
        %v3113 = vadd.f32 %v2952, %v3112
        %v3114 = vpop.f32.mrb[0].mxu0
        %3115 = vmatprep.mubr.bf16.mxu0 0
        %3116 = vmatmul.mubr.bf16.gmra.mrb[0].mxu0 %v2567
        %v3117 = vpop.f32.mrb[0].mxu0
        %v3118 = vadd.f32 %v2957, %v3117
        %v3119 = vpop.f32.mrb[0].mxu0
        %v3120 = vpop.f32.mrb[0].mxu0
        %v3121 = vadd.f32 %v2960, %v3120
        %v3122 = vpop.f32.mrb[0].mxu0
        %3123 = vmatprep.mubr.bf16.mxu0 0
        %3124 = vmatmul.mubr.bf16.gmra.mrb[0].mxu0 %v2568
        %v3125 = vpop.f32.mrb[0].mxu0
        %v3126 = vadd.f32 %v2965, %v3125
        %v3127 = vpop.f32.mrb[0].mxu0
        %v3128 = vpop.f32.mrb[0].mxu0
        %v3129 = vadd.f32 %v2968, %v3128
        %v3130 = vpop.f32.mrb[0].mxu0
        %3131 = vdwg.mxu0
        %v3180 = vunpack.c.l.b16 %v2569
        %v3181 = vunpack.c.l.b16 %v2570
        %v3182 = vunpack.c.l.b16 %v2571
        %v3183 = vunpack.c.l.b16 %v2572
        %v3184 = vunpack.c.l.b16 %v2573
        %v3185 = vunpack.c.l.b16 %v2574
        %v3186 = vunpack.c.l.b16 %v2575
        %v3187 = vunpack.c.l.b16 %v2576
        %v3188 = vunpack.c.l.b16 %v2577
        %v3189 = vunpack.c.l.b16 %v2578
        %v3190 = vunpack.c.l.b16 %v2579
        %v3191 = vunpack.c.l.b16 %v2580
        %v3192 = vunpack.c.l.b16 %v2581
        %v3193 = vunpack.c.l.b16 %v2582
        %v3194 = vunpack.c.l.b16 %v2583
        %v3195 = vunpack.c.l.b16 %v2584
        %v3196 = vunpack.c.l.b16 %v2585
        %v3197 = vunpack.c.l.b16 %v2586
        %v3198 = vunpack.c.l.b16 %v2587
        %v3199 = vunpack.c.l.b16 %v2588
        %v3200 = vunpack.c.l.b16 %v2589
        %v3201 = vunpack.c.l.b16 %v2590
        %v3202 = vunpack.c.l.b16 %v2591
        %v3203 = vunpack.c.l.b16 %v2592
        %v3204 = vunpack.c.l.b16 %v2593
        %v3205 = vunpack.c.l.b16 %v2594
        %v3206 = vunpack.c.l.b16 %v2595
        %v3207 = vunpack.c.l.b16 %v2596
        %v3208 = vunpack.c.l.b16 %v2597
        %v3209 = vunpack.c.l.b16 %v2598
        %v3210 = vunpack.c.l.b16 %v2599
        %v3211 = vunpack.c.l.b16 %v2600
        %v3212 = vunpack.c.l.b16 %v2601
        %v3213 = vunpack.c.l.b16 %v2602
        %v3214 = vunpack.c.l.b16 %v2603
        %v3215 = vunpack.c.l.b16 %v2604
        %v3216 = vunpack.c.l.b16 %v2605
        %v3217 = vunpack.c.l.b16 %v2606
        %v3218 = vunpack.c.l.b16 %v2607
        %v3219 = vunpack.c.l.b16 %v2608
        %v3220 = vunpack.c.l.b16 %v2609
        %v3221 = vunpack.c.l.b16 %v2610
        %v3222 = vunpack.c.l.b16 %v2611
        %v3223 = vunpack.c.l.b16 %v2612
        %v3224 = vunpack.c.l.b16 %v2613
        %v3225 = vunpack.c.l.b16 %v2614
        %v3226 = vunpack.c.l.b16 %v2615
        %v3227 = vunpack.c.l.b16 %v2616
        %v3228 = vpack.c.b16 %v3181, %v3180
        %v3229 = vpack.c.b16 %v3183, %v3182
        %v3230 = vpack.c.b16 %v3185, %v3184
        %v3231 = vpack.c.b16 %v3187, %v3186
        %v3232 = vpack.c.b16 %v3189, %v3188
        %v3233 = vpack.c.b16 %v3191, %v3190
        %v3234 = vpack.c.b16 %v3193, %v3192
        %v3235 = vpack.c.b16 %v3195, %v3194
        %v3236 = vpack.c.b16 %v3197, %v3196
        %v3237 = vpack.c.b16 %v3199, %v3198
        %v3238 = vpack.c.b16 %v3201, %v3200
        %v3239 = vpack.c.b16 %v3203, %v3202
        %v3240 = vpack.c.b16 %v3205, %v3204
        %v3241 = vpack.c.b16 %v3207, %v3206
        %v3242 = vpack.c.b16 %v3209, %v3208
        %v3243 = vpack.c.b16 %v3211, %v3210
        %v3244 = vpack.c.b16 %v3213, %v3212
        %v3245 = vpack.c.b16 %v3215, %v3214
        %v3246 = vpack.c.b16 %v3217, %v3216
        %v3247 = vpack.c.b16 %v3219, %v3218
        %v3248 = vpack.c.b16 %v3221, %v3220
        %v3249 = vpack.c.b16 %v3223, %v3222
        %v3250 = vpack.c.b16 %v3225, %v3224
        %v3251 = vpack.c.b16 %v3227, %v3226
        %3276 = vmatprep.subr.bf16.mxu0 0
        %3277 = vmatpush1.bf16.msra.mxu0 %v3228
        %3278 = vmatprep.subr.bf16.mxu0 0
        %3279 = vmatpush1.bf16.msra.mxu0 %v3229
        %3280 = vmatprep.subr.bf16.mxu0 0
        %3281 = vmatpush1.bf16.msra.mxu0 %v3230
        %3282 = vmatprep.subr.bf16.mxu0 0
        %3283 = vmatpush1.bf16.msra.mxu0 %v3231
        %3284 = vmatprep.subr.bf16.mxu0 0
        %3285 = vmatpush1.bf16.msra.mxu0 %v3232
        %3286 = vmatprep.subr.bf16.mxu0 0
        %3287 = vmatpush1.bf16.msra.mxu0 %v3233
        %3288 = vmatprep.subr.bf16.mxu0 0
        %3289 = vmatpush1.bf16.msra.mxu0 %v3234
        %3290 = vmatprep.subr.bf16.mxu0 0
        %3291 = vmatpush1.bf16.msra.mxu0 %v3235
        %3292 = vmatprep.subr.bf16.mxu0 0
        %3293 = vmatpush1.bf16.msra.mxu0 %v3236
        %3294 = vmatprep.subr.bf16.mxu0 0
        %3295 = vmatpush1.bf16.msra.mxu0 %v3237
        %3296 = vmatprep.subr.bf16.mxu0 0
        %3297 = vmatpush1.bf16.msra.mxu0 %v3238
        %3298 = vmatprep.subr.bf16.mxu0 0
        %3299 = vmatpush1.bf16.msra.mxu0 %v3239
        %3300 = vmatprep.subr.bf16.mxu0 0
        %3301 = vmatpush1.bf16.msra.mxu0 %v3240
        %3302 = vmatprep.subr.bf16.mxu0 0
        %3303 = vmatpush1.bf16.msra.mxu0 %v3241
        %3304 = vmatprep.subr.bf16.mxu0 0
        %3305 = vmatpush1.bf16.msra.mxu0 %v3242
        %3306 = vmatprep.subr.bf16.mxu0 0
        %3307 = vmatpush1.bf16.msra.mxu0 %v3243
        %3308 = vmatprep.mubr.bf16.mxu0 0
        %3309 = vmatmul.mubr.bf16.gmra.mrb[0].mxu0 0
        %v3310 = vpop.f32.mrb[0].mxu0
        %v3311 = vadd.f32 %v3006, %v3310
        %v3312 = vpop.f32.mrb[0].mxu0
        %v3313 = vpop.f32.mrb[0].mxu0
        %v3314 = vadd.f32 %v3009, %v3313
        %v3315 = vpop.f32.mrb[0].mxu0
        %3316 = vmatprep.mubr.bf16.mxu0 %v2297
        %3317 = vmatmul.mubr.bf16.gmra.mrb[0].mxu0 %v2441
        %v3318 = vpop.f32.mrb[0].mxu0
        %v3319 = vadd.f32 %v3014, %v3318
        %v3320 = vpop.f32.mrb[0].mxu0
        %v3321 = vpop.f32.mrb[0].mxu0
        %v3322 = vadd.f32 %v3017, %v3321
        %v3323 = vpop.f32.mrb[0].mxu0
        %3324 = vmatprep.mubr.bf16.mxu0 %v2298
        %3325 = vmatmul.mubr.bf16.gmra.mrb[0].mxu0 %v2442
        %v3326 = vpop.f32.mrb[0].mxu0
        %v3327 = vadd.f32 %v3022, %v3326
        %v3328 = vpop.f32.mrb[0].mxu0
        %v3329 = vpop.f32.mrb[0].mxu0
        %v3330 = vadd.f32 %v3025, %v3329
        %v3331 = vpop.f32.mrb[0].mxu0
        %3332 = vmatprep.mubr.bf16.mxu0 %v2299
        %3333 = vmatmul.mubr.bf16.gmra.mrb[0].mxu0 %v2443
        %v3334 = vpop.f32.mrb[0].mxu0
        %v3335 = vadd.f32 %v3030, %v3334
        %v3336 = vpop.f32.mrb[0].mxu0
        %v3337 = vpop.f32.mrb[0].mxu0
        %v3338 = vadd.f32 %v3033, %v3337
        %v3339 = vpop.f32.mrb[0].mxu0
        %3340 = vmatprep.mubr.bf16.mxu0 %v2300
        %3341 = vmatmul.mubr.bf16.gmra.mrb[0].mxu0 %v2444
        %v3342 = vpop.f32.mrb[0].mxu0
        %v3343 = vadd.f32 %v3038, %v3342
        %v3344 = vpop.f32.mrb[0].mxu0
        %v3345 = vpop.f32.mrb[0].mxu0
        %v3346 = vadd.f32 %v3041, %v3345
        %v3347 = vpop.f32.mrb[0].mxu0
        %3348 = vmatprep.mubr.bf16.mxu0 %v2301
        %3349 = vmatmul.mubr.bf16.gmra.mrb[0].mxu0 %v2445
        %v3350 = vpop.f32.mrb[0].mxu0
        %v3351 = vadd.f32 %v3046, %v3350
        %v3352 = vpop.f32.mrb[0].mxu0
        %v3353 = vpop.f32.mrb[0].mxu0
        %v3354 = vadd.f32 %v3049, %v3353
        %v3355 = vpop.f32.mrb[0].mxu0
        %3356 = vmatprep.mubr.bf16.mxu0 %v2302
        %3357 = vmatmul.mubr.bf16.gmra.mrb[0].mxu0 %v2446
        %v3358 = vpop.f32.mrb[0].mxu0
        %v3359 = vadd.f32 %v3054, %v3358
        %v3360 = vpop.f32.mrb[0].mxu0
        %v3361 = vpop.f32.mrb[0].mxu0
        %v3362 = vadd.f32 %v3057, %v3361
        %v3363 = vpop.f32.mrb[0].mxu0
        %3364 = vmatprep.mubr.bf16.mxu0 %v2303
        %3365 = vmatmul.mubr.bf16.gmra.mrb[0].mxu0 %v2447
        %v3366 = vpop.f32.mrb[0].mxu0
        %v3367 = vadd.f32 %v3062, %v3366
        %v3368 = vpop.f32.mrb[0].mxu0
        %v3369 = vpop.f32.mrb[0].mxu0
        %v3370 = vadd.f32 %v3065, %v3369
        %v3371 = vpop.f32.mrb[0].mxu0
        %3372 = vmatprep.mubr.bf16.mxu0 %v2304
        %3373 = vmatmul.mubr.bf16.gmra.mrb[0].mxu0 %v2448
        %v3374 = vpop.f32.mrb[0].mxu0
        %v3375 = vadd.f32 %v3070, %v3374
        %v3376 = vpop.f32.mrb[0].mxu0
        %v3377 = vpop.f32.mrb[0].mxu0
        %v3378 = vadd.f32 %v3073, %v3377
        %v3379 = vpop.f32.mrb[0].mxu0
        %3380 = vmatprep.mubr.bf16.mxu0 %v2305
        %3381 = vmatmul.mubr.bf16.gmra.mrb[0].mxu0 %v2449
        %v3382 = vpop.f32.mrb[0].mxu0
        %v3383 = vadd.f32 %v3078, %v3382
        %v3384 = vpop.f32.mrb[0].mxu0
        %v3385 = vpop.f32.mrb[0].mxu0
        %v3386 = vadd.f32 %v3081, %v3385
        %v3387 = vpop.f32.mrb[0].mxu0
        %3388 = vmatprep.mubr.bf16.mxu0 %v2306
        %3389 = vmatmul.mubr.bf16.gmra.mrb[0].mxu0 %v2450
        %v3390 = vpop.f32.mrb[0].mxu0
        %v3391 = vadd.f32 %v3086, %v3390
        %v3392 = vpop.f32.mrb[0].mxu0
        %v3393 = vpop.f32.mrb[0].mxu0
        %v3394 = vadd.f32 %v3089, %v3393
        %v3395 = vpop.f32.mrb[0].mxu0
        %3396 = vmatprep.mubr.bf16.mxu0 %v2307
        %3397 = vmatmul.mubr.bf16.gmra.mrb[0].mxu0 %v2451
        %v3398 = vpop.f32.mrb[0].mxu0
        %v3399 = vadd.f32 %v3094, %v3398
        %v3400 = vpop.f32.mrb[0].mxu0
        %v3401 = vpop.f32.mrb[0].mxu0
        %v3402 = vadd.f32 %v3097, %v3401
        %v3403 = vpop.f32.mrb[0].mxu0
        %3404 = vmatprep.mubr.bf16.mxu0 %v2308
        %3405 = vmatmul.mubr.bf16.gmra.mrb[0].mxu0 %v2452
        %v3406 = vpop.f32.mrb[0].mxu0
        %v3407 = vadd.f32 %v3102, %v3406
        %v3408 = vpop.f32.mrb[0].mxu0
        %v3409 = vpop.f32.mrb[0].mxu0
        %v3410 = vadd.f32 %v3105, %v3409
        %v3411 = vpop.f32.mrb[0].mxu0
        %3412 = vmatprep.mubr.bf16.mxu0 %v2309
        %3413 = vmatmul.mubr.bf16.gmra.mrb[0].mxu0 %v2453
        %v3414 = vpop.f32.mrb[0].mxu0
        %v3415 = vadd.f32 %v3110, %v3414
        %v3416 = vpop.f32.mrb[0].mxu0
        %v3417 = vpop.f32.mrb[0].mxu0
        %v3418 = vadd.f32 %v3113, %v3417
        %v3419 = vpop.f32.mrb[0].mxu0
        %3420 = vmatprep.mubr.bf16.mxu0 %v2310
        %3421 = vmatmul.mubr.bf16.gmra.mrb[0].mxu0 %v2454
        %v3422 = vpop.f32.mrb[0].mxu0
        %v3423 = vadd.f32 %v3118, %v3422
        %v3424 = vpop.f32.mrb[0].mxu0
        %v3425 = vpop.f32.mrb[0].mxu0
        %v3426 = vadd.f32 %v3121, %v3425
        %v3427 = vpop.f32.mrb[0].mxu0
        %3428 = vmatprep.mubr.bf16.mxu0 %v2311
        %3429 = vmatmul.mubr.bf16.gmra.mrb[0].mxu0 %v2455
        %v3430 = vpop.f32.mrb[0].mxu0
        %v3431 = vadd.f32 %v3126, %v3430
        %v3432 = vpop.f32.mrb[0].mxu0
        %v3433 = vpop.f32.mrb[0].mxu0
        %v3434 = vadd.f32 %v3129, %v3433
        %v3435 = vpop.f32.mrb[0].mxu0
        %3436 = vdwg.mxu0
        %3437 = vmatprep.subr.bf16.mxu0 0
        %3438 = vmatpush1.bf16.msra.mxu0 %v3244
        %3439 = vmatprep.subr.bf16.mxu0 0
        %3440 = vmatpush1.bf16.msra.mxu0 %v3245
        %3441 = vmatprep.subr.bf16.mxu0 0
        %3442 = vmatpush1.bf16.msra.mxu0 %v3246
        %3443 = vmatprep.subr.bf16.mxu0 0
        %3444 = vmatpush1.bf16.msra.mxu0 %v3247
        %3445 = vmatprep.subr.bf16.mxu0 0
        %3446 = vmatpush1.bf16.msra.mxu0 %v3248
        %3447 = vmatprep.subr.bf16.mxu0 0
        %3448 = vmatpush1.bf16.msra.mxu0 %v3249
        %3449 = vmatprep.subr.bf16.mxu0 0
        %3450 = vmatpush1.bf16.msra.mxu0 %v3250
        %3451 = vmatprep.subr.bf16.mxu0 0
        %3452 = vmatpush1.bf16.msra.mxu0 %v3251
        %3453 = vmatprep.subr.bf16.mxu0 0
        %3454 = vmatpush1.bf16.msra.mxu0 0
        %3455 = vmatprep.subr.bf16.mxu0 0
        %3456 = vmatpush1.bf16.msra.mxu0 0
        %3457 = vmatprep.subr.bf16.mxu0 0
        %3458 = vmatpush1.bf16.msra.mxu0 0
        %3459 = vmatprep.subr.bf16.mxu0 0
        %3460 = vmatpush1.bf16.msra.mxu0 0
        %3461 = vmatprep.subr.bf16.mxu0 0
        %3462 = vmatpush1.bf16.msra.mxu0 0
        %3463 = vmatprep.subr.bf16.mxu0 0
        %3464 = vmatpush1.bf16.msra.mxu0 0
        %3465 = vmatprep.subr.bf16.mxu0 0
        %3466 = vmatpush1.bf16.msra.mxu0 0
        %3467 = vmatprep.subr.bf16.mxu0 0
        %3468 = vmatpush1.bf16.msra.mxu0 0
        %3469 = vmatprep.mubr.bf16.mxu0 0
        %3470 = vmatmul.mubr.bf16.gmra.mrb[0].mxu0 0
        %v3471 = vpop.f32.mrb[0].mxu0
        %v3472 = vadd.f32 %v3311, %v3471
        %v3473 = vpop.f32.mrb[0].mxu0
        %v3474 = vpop.f32.mrb[0].mxu0
        %v3475 = vadd.f32 %v3314, %v3474
        %v3476 = vpop.f32.mrb[0].mxu0
        %3477 = vmatprep.mubr.bf16.mxu0 0
        %3478 = vmatmul.mubr.bf16.gmra.mrb[0].mxu0 %v2553
        %v3479 = vpop.f32.mrb[0].mxu0
        %v3480 = vadd.f32 %v3319, %v3479
        %v3481 = vpop.f32.mrb[0].mxu0
        %v3482 = vpop.f32.mrb[0].mxu0
        %v3483 = vadd.f32 %v3322, %v3482
        %v3484 = vpop.f32.mrb[0].mxu0
        %3485 = vmatprep.mubr.bf16.mxu0 0
        %3486 = vmatmul.mubr.bf16.gmra.mrb[0].mxu0 %v2554
        %v3487 = vpop.f32.mrb[0].mxu0
        %v3488 = vadd.f32 %v3327, %v3487
        %v3489 = vpop.f32.mrb[0].mxu0
        %v3490 = vpop.f32.mrb[0].mxu0
        %v3491 = vadd.f32 %v3330, %v3490
        %v3492 = vpop.f32.mrb[0].mxu0
        %3493 = vmatprep.mubr.bf16.mxu0 0
        %3494 = vmatmul.mubr.bf16.gmra.mrb[0].mxu0 %v2555
        %v3495 = vpop.f32.mrb[0].mxu0
        %v3496 = vadd.f32 %v3335, %v3495
        %v3497 = vpop.f32.mrb[0].mxu0
        %v3498 = vpop.f32.mrb[0].mxu0
        %v3499 = vadd.f32 %v3338, %v3498
        %v3500 = vpop.f32.mrb[0].mxu0
        %3501 = vmatprep.mubr.bf16.mxu0 0
        %3502 = vmatmul.mubr.bf16.gmra.mrb[0].mxu0 %v2556
        %v3503 = vpop.f32.mrb[0].mxu0
        %v3504 = vadd.f32 %v3343, %v3503
        %v3505 = vpop.f32.mrb[0].mxu0
        %v3506 = vpop.f32.mrb[0].mxu0
        %v3507 = vadd.f32 %v3346, %v3506
        %v3508 = vpop.f32.mrb[0].mxu0
        %3509 = vmatprep.mubr.bf16.mxu0 0
        %3510 = vmatmul.mubr.bf16.gmra.mrb[0].mxu0 %v2557
        %v3511 = vpop.f32.mrb[0].mxu0
        %v3512 = vadd.f32 %v3351, %v3511
        %v3513 = vpop.f32.mrb[0].mxu0
        %v3514 = vpop.f32.mrb[0].mxu0
        %v3515 = vadd.f32 %v3354, %v3514
        %v3516 = vpop.f32.mrb[0].mxu0
        %3517 = vmatprep.mubr.bf16.mxu0 0
        %3518 = vmatmul.mubr.bf16.gmra.mrb[0].mxu0 %v2558
        %v3519 = vpop.f32.mrb[0].mxu0
        %v3520 = vadd.f32 %v3359, %v3519
        %v3521 = vpop.f32.mrb[0].mxu0
        %v3522 = vpop.f32.mrb[0].mxu0
        %v3523 = vadd.f32 %v3362, %v3522
        %v3524 = vpop.f32.mrb[0].mxu0
        %3525 = vmatprep.mubr.bf16.mxu0 0
        %3526 = vmatmul.mubr.bf16.gmra.mrb[0].mxu0 %v2559
        %v3527 = vpop.f32.mrb[0].mxu0
        %v3528 = vadd.f32 %v3367, %v3527
        %v3529 = vpop.f32.mrb[0].mxu0
        %v3530 = vpop.f32.mrb[0].mxu0
        %v3531 = vadd.f32 %v3370, %v3530
        %v3532 = vpop.f32.mrb[0].mxu0
        %3533 = vmatprep.mubr.bf16.mxu0 0
        %3534 = vmatmul.mubr.bf16.gmra.mrb[0].mxu0 %v2560
        %v3535 = vpop.f32.mrb[0].mxu0
        %v3536 = vadd.f32 %v3375, %v3535
        %v3537 = vpop.f32.mrb[0].mxu0
        %v3538 = vpop.f32.mrb[0].mxu0
        %v3539 = vadd.f32 %v3378, %v3538
        %v3540 = vpop.f32.mrb[0].mxu0
        %3541 = vmatprep.mubr.bf16.mxu0 0
        %3542 = vmatmul.mubr.bf16.gmra.mrb[0].mxu0 %v2561
        %v3543 = vpop.f32.mrb[0].mxu0
        %v3544 = vadd.f32 %v3383, %v3543
        %v3545 = vpop.f32.mrb[0].mxu0
        %v3546 = vpop.f32.mrb[0].mxu0
        %v3547 = vadd.f32 %v3386, %v3546
        %v3548 = vpop.f32.mrb[0].mxu0
        %3549 = vmatprep.mubr.bf16.mxu0 0
        %3550 = vmatmul.mubr.bf16.gmra.mrb[0].mxu0 %v2562
        %v3551 = vpop.f32.mrb[0].mxu0
        %v3552 = vadd.f32 %v3391, %v3551
        %v3553 = vpop.f32.mrb[0].mxu0
        %v3554 = vpop.f32.mrb[0].mxu0
        %v3555 = vadd.f32 %v3394, %v3554
        %v3556 = vpop.f32.mrb[0].mxu0
        %3557 = vmatprep.mubr.bf16.mxu0 0
        %3558 = vmatmul.mubr.bf16.gmra.mrb[0].mxu0 %v2563
        %v3559 = vpop.f32.mrb[0].mxu0
        %v3560 = vadd.f32 %v3399, %v3559
        %v3561 = vpop.f32.mrb[0].mxu0
        %v3562 = vpop.f32.mrb[0].mxu0
        %v3563 = vadd.f32 %v3402, %v3562
        %v3564 = vpop.f32.mrb[0].mxu0
        %3565 = vmatprep.mubr.bf16.mxu0 0
        %3566 = vmatmul.mubr.bf16.gmra.mrb[0].mxu0 %v2564
        %v3567 = vpop.f32.mrb[0].mxu0
        %v3568 = vadd.f32 %v3407, %v3567
        %v3569 = vpop.f32.mrb[0].mxu0
        %v3570 = vpop.f32.mrb[0].mxu0
        %v3571 = vadd.f32 %v3410, %v3570
        %v3572 = vpop.f32.mrb[0].mxu0
        %3573 = vmatprep.mubr.bf16.mxu0 0
        %3574 = vmatmul.mubr.bf16.gmra.mrb[0].mxu0 %v2565
        %v3575 = vpop.f32.mrb[0].mxu0
        %v3576 = vadd.f32 %v3415, %v3575
        %v3577 = vpop.f32.mrb[0].mxu0
        %v3578 = vpop.f32.mrb[0].mxu0
        %v3579 = vadd.f32 %v3418, %v3578
        %v3580 = vpop.f32.mrb[0].mxu0
        %3581 = vmatprep.mubr.bf16.mxu0 0
        %3582 = vmatmul.mubr.bf16.gmra.mrb[0].mxu0 %v2566
        %v3583 = vpop.f32.mrb[0].mxu0
        %v3584 = vadd.f32 %v3423, %v3583
        %v3585 = vpop.f32.mrb[0].mxu0
        %v3586 = vpop.f32.mrb[0].mxu0
        %v3587 = vadd.f32 %v3426, %v3586
        %v3588 = vpop.f32.mrb[0].mxu0
        %3589 = vmatprep.mubr.bf16.mxu0 0
        %3590 = vmatmul.mubr.bf16.gmra.mrb[0].mxu0 %v2567
        %v3591 = vpop.f32.mrb[0].mxu0
        %v3592 = vadd.f32 %v3431, %v3591
        %v3593 = vpop.f32.mrb[0].mxu0
        %v3594 = vpop.f32.mrb[0].mxu0
        %v3595 = vadd.f32 %v3434, %v3594
        %v3596 = vpop.f32.mrb[0].mxu0
        %3597 = vdwg.mxu0
        %s3598 = scalar_lea.vmem [#allocation7], 384
        %v3599 = vld [vmem:[%s3598] sm:$0xf]
        %v3600 = vld [vmem:[%s3598 + $0x4] sm:$0xf]
        %v3601 = vld [vmem:[%s3598 + $0x8] sm:$0xf]
        %v3602 = vld [vmem:[%s3598 + $0xc] sm:$0xf]
        %v3603 = vld [vmem:[%s3598 + $0x10] sm:$0xf]
        %v3604 = vld [vmem:[%s3598 + $0x14] sm:$0xf]
        %v3605 = vld [vmem:[%s3598 + $0x18] sm:$0xf]
        %v3606 = vld [vmem:[%s3598 + $0x1c] sm:$0xf]
        %v3607 = vld [vmem:[%s3598 + $0x20] sm:$0xf]
        %v3608 = vld [vmem:[%s3598 + $0x24] sm:$0xf]
        %v3609 = vld [vmem:[%s3598 + $0x28] sm:$0xf]
        %v3610 = vld [vmem:[%s3598 + $0x2c] sm:$0xf]
        %v3611 = vld [vmem:[%s3598 + $0x30] sm:$0xf]
        %v3612 = vld [vmem:[%s3598 + $0x34] sm:$0xf]
        %v3613 = vld [vmem:[%s3598 + $0x38] sm:$0xf]
        %v3614 = vld [vmem:[%s3598 + $0x3c] sm:$0xf]
        %v3615 = vld [vmem:[%s3598 + $0x40] sm:$0xf]
        %v3616 = vld [vmem:[%s3598 + $0x44] sm:$0xf]
        %v3617 = vld [vmem:[%s3598 + $0x48] sm:$0xf]
        %v3618 = vld [vmem:[%s3598 + $0x4c] sm:$0xf]
        %v3619 = vld [vmem:[%s3598 + $0x50] sm:$0xf]
        %v3620 = vld [vmem:[%s3598 + $0x54] sm:$0xf]
        %v3621 = vld [vmem:[%s3598 + $0x58] sm:$0xf]
        %v3622 = vld [vmem:[%s3598 + $0x5c] sm:$0xf]
        %v3623 = vld [vmem:[%s3598 + $0x60] sm:$0xf]
        %v3624 = vld [vmem:[%s3598 + $0x64] sm:$0xf]
        %v3625 = vld [vmem:[%s3598 + $0x68] sm:$0xf]
        %v3626 = vld [vmem:[%s3598 + $0x6c] sm:$0xf]
        %v3627 = vld [vmem:[%s3598 + $0x70] sm:$0xf]
        %v3628 = vld [vmem:[%s3598 + $0x74] sm:$0xf]
        %v3629 = vld [vmem:[%s3598 + $0x78] sm:$0xf]
        %v3630 = vld [vmem:[%s3598 + $0x7c] sm:$0xf]
        %v3631 = vld [vmem:[%s3598 + $0x80] sm:$0xf]
        %v3632 = vld [vmem:[%s3598 + $0x84] sm:$0xf]
        %v3633 = vld [vmem:[%s3598 + $0x88] sm:$0xf]
        %v3634 = vld [vmem:[%s3598 + $0x8c] sm:$0xf]
        %v3635 = vld [vmem:[%s3598 + $0x90] sm:$0xf]
        %v3636 = vld [vmem:[%s3598 + $0x94] sm:$0xf]
        %v3637 = vld [vmem:[%s3598 + $0x98] sm:$0xf]
        %v3638 = vld [vmem:[%s3598 + $0x9c] sm:$0xf]
        %v3639 = vld [vmem:[%s3598 + $0xa0] sm:$0xf]
        %v3640 = vld [vmem:[%s3598 + $0xa4] sm:$0xf]
        %v3641 = vld [vmem:[%s3598 + $0xa8] sm:$0xf]
        %v3642 = vld [vmem:[%s3598 + $0xac] sm:$0xf]
        %v3643 = vld [vmem:[%s3598 + $0xb0] sm:$0xf]
        %v3644 = vld [vmem:[%s3598 + $0xb4] sm:$0xf]
        %v3645 = vld [vmem:[%s3598 + $0xb8] sm:$0xf]
        %v3646 = vld [vmem:[%s3598 + $0xbc] sm:$0xf]
        %v3695 = vunpack.c.l.b16 %v3599
        %v3696 = vunpack.c.l.b16 %v3600
        %v3697 = vunpack.c.l.b16 %v3601
        %v3698 = vunpack.c.l.b16 %v3602
        %v3699 = vunpack.c.l.b16 %v3603
        %v3700 = vunpack.c.l.b16 %v3604
        %v3701 = vunpack.c.l.b16 %v3605
        %v3702 = vunpack.c.l.b16 %v3606
        %v3703 = vunpack.c.l.b16 %v3607
        %v3704 = vunpack.c.l.b16 %v3608
        %v3705 = vunpack.c.l.b16 %v3609
        %v3706 = vunpack.c.l.b16 %v3610
        %v3707 = vunpack.c.l.b16 %v3611
        %v3708 = vunpack.c.l.b16 %v3612
        %v3709 = vunpack.c.l.b16 %v3613
        %v3710 = vunpack.c.l.b16 %v3614
        %v3711 = vunpack.c.l.b16 %v3615
        %v3712 = vunpack.c.l.b16 %v3616
        %v3713 = vunpack.c.l.b16 %v3617
        %v3714 = vunpack.c.l.b16 %v3618
        %v3715 = vunpack.c.l.b16 %v3619
        %v3716 = vunpack.c.l.b16 %v3620
        %v3717 = vunpack.c.l.b16 %v3621
        %v3718 = vunpack.c.l.b16 %v3622
        %v3719 = vunpack.c.l.b16 %v3623
        %v3720 = vunpack.c.l.b16 %v3624
        %v3721 = vunpack.c.l.b16 %v3625
        %v3722 = vunpack.c.l.b16 %v3626
        %v3723 = vunpack.c.l.b16 %v3627
        %v3724 = vunpack.c.l.b16 %v3628
        %v3725 = vunpack.c.l.b16 %v3629
        %v3726 = vunpack.c.l.b16 %v3630
        %v3727 = vunpack.c.l.b16 %v3631
        %v3728 = vunpack.c.l.b16 %v3632
        %v3729 = vunpack.c.l.b16 %v3633
        %v3730 = vunpack.c.l.b16 %v3634
        %v3731 = vunpack.c.l.b16 %v3635
        %v3732 = vunpack.c.l.b16 %v3636
        %v3733 = vunpack.c.l.b16 %v3637
        %v3734 = vunpack.c.l.b16 %v3638
        %v3735 = vunpack.c.l.b16 %v3639
        %v3736 = vunpack.c.l.b16 %v3640
        %v3737 = vunpack.c.l.b16 %v3641
        %v3738 = vunpack.c.l.b16 %v3642
        %v3739 = vunpack.c.l.b16 %v3643
        %v3740 = vunpack.c.l.b16 %v3644
        %v3741 = vunpack.c.l.b16 %v3645
        %v3742 = vunpack.c.l.b16 %v3646
        %v3743 = vpack.c.b16 %v3696, %v3695
        %v3744 = vpack.c.b16 %v3698, %v3697
        %v3745 = vpack.c.b16 %v3700, %v3699
        %v3746 = vpack.c.b16 %v3702, %v3701
        %v3747 = vpack.c.b16 %v3704, %v3703
        %v3748 = vpack.c.b16 %v3706, %v3705
        %v3749 = vpack.c.b16 %v3708, %v3707
        %v3750 = vpack.c.b16 %v3710, %v3709
        %v3751 = vpack.c.b16 %v3712, %v3711
        %v3752 = vpack.c.b16 %v3714, %v3713
        %v3753 = vpack.c.b16 %v3716, %v3715
        %v3754 = vpack.c.b16 %v3718, %v3717
        %v3755 = vpack.c.b16 %v3720, %v3719
        %v3756 = vpack.c.b16 %v3722, %v3721
        %v3757 = vpack.c.b16 %v3724, %v3723
        %v3758 = vpack.c.b16 %v3726, %v3725
        %v3759 = vpack.c.b16 %v3728, %v3727
        %v3760 = vpack.c.b16 %v3730, %v3729
        %v3761 = vpack.c.b16 %v3732, %v3731
        %v3762 = vpack.c.b16 %v3734, %v3733
        %v3763 = vpack.c.b16 %v3736, %v3735
        %v3764 = vpack.c.b16 %v3738, %v3737
        %v3765 = vpack.c.b16 %v3740, %v3739
        %v3766 = vpack.c.b16 %v3742, %v3741
        %3791 = vmatprep.subr.bf16.mxu0 0
        %3792 = vmatpush1.bf16.msra.mxu0 %v3743
        %3793 = vmatprep.subr.bf16.mxu0 0
        %3794 = vmatpush1.bf16.msra.mxu0 %v3744
        %3795 = vmatprep.subr.bf16.mxu0 0
        %3796 = vmatpush1.bf16.msra.mxu0 %v3745
        %3797 = vmatprep.subr.bf16.mxu0 0
        %3798 = vmatpush1.bf16.msra.mxu0 %v3746
        %3799 = vmatprep.subr.bf16.mxu0 0
        %3800 = vmatpush1.bf16.msra.mxu0 %v3747
        %3801 = vmatprep.subr.bf16.mxu0 0
        %3802 = vmatpush1.bf16.msra.mxu0 %v3748
        %3803 = vmatprep.subr.bf16.mxu0 0
        %3804 = vmatpush1.bf16.msra.mxu0 %v3749
        %3805 = vmatprep.subr.bf16.mxu0 0
        %3806 = vmatpush1.bf16.msra.mxu0 %v3750
        %3807 = vmatprep.subr.bf16.mxu0 0
        %3808 = vmatpush1.bf16.msra.mxu0 %v3751
        %3809 = vmatprep.subr.bf16.mxu0 0
        %3810 = vmatpush1.bf16.msra.mxu0 %v3752
        %3811 = vmatprep.subr.bf16.mxu0 0
        %3812 = vmatpush1.bf16.msra.mxu0 %v3753
        %3813 = vmatprep.subr.bf16.mxu0 0
        %3814 = vmatpush1.bf16.msra.mxu0 %v3754
        %3815 = vmatprep.subr.bf16.mxu0 0
        %3816 = vmatpush1.bf16.msra.mxu0 %v3755
        %3817 = vmatprep.subr.bf16.mxu0 0
        %3818 = vmatpush1.bf16.msra.mxu0 %v3756
        %3819 = vmatprep.subr.bf16.mxu0 0
        %3820 = vmatpush1.bf16.msra.mxu0 %v3757
        %3821 = vmatprep.subr.bf16.mxu0 0
        %3822 = vmatpush1.bf16.msra.mxu0 %v3758
        %3823 = vmatprep.mubr.bf16.mxu0 %v2298
        %3824 = vmatmul.mubr.bf16.gmra.mrb[0].mxu0 %v2442
        %v3825 = vpop.f32.mrb[0].mxu0
        %v3826 = vadd.f32 0.0, %v3825
        %v3827 = vpop.f32.mrb[0].mxu0
        %v3828 = vpop.f32.mrb[0].mxu0
        %v3829 = vadd.f32 0.0, %v3828
        %v3830 = vpop.f32.mrb[0].mxu0
        %3831 = vmatprep.mubr.bf16.mxu0 %v2299
        %3832 = vmatmul.mubr.bf16.gmra.mrb[0].mxu0 %v2443
        %v3833 = vpop.f32.mrb[0].mxu0
        %v3834 = vadd.f32 0.0, %v3833
        %v3835 = vpop.f32.mrb[0].mxu0
        %v3836 = vpop.f32.mrb[0].mxu0
        %v3837 = vadd.f32 0.0, %v3836
        %v3838 = vpop.f32.mrb[0].mxu0
        %3839 = vmatprep.mubr.bf16.mxu0 %v2300
        %3840 = vmatmul.mubr.bf16.gmra.mrb[0].mxu0 %v2444
        %v3841 = vpop.f32.mrb[0].mxu0
        %v3842 = vadd.f32 0.0, %v3841
        %v3843 = vpop.f32.mrb[0].mxu0
        %v3844 = vpop.f32.mrb[0].mxu0
        %v3845 = vadd.f32 0.0, %v3844
        %v3846 = vpop.f32.mrb[0].mxu0
        %3847 = vmatprep.mubr.bf16.mxu0 %v2301
        %3848 = vmatmul.mubr.bf16.gmra.mrb[0].mxu0 %v2445
        %v3849 = vpop.f32.mrb[0].mxu0
        %v3850 = vadd.f32 0.0, %v3849
        %v3851 = vpop.f32.mrb[0].mxu0
        %v3852 = vpop.f32.mrb[0].mxu0
        %v3853 = vadd.f32 0.0, %v3852
        %v3854 = vpop.f32.mrb[0].mxu0
        %3855 = vmatprep.mubr.bf16.mxu0 %v2302
        %3856 = vmatmul.mubr.bf16.gmra.mrb[0].mxu0 %v2446
        %v3857 = vpop.f32.mrb[0].mxu0
        %v3858 = vadd.f32 0.0, %v3857
        %v3859 = vpop.f32.mrb[0].mxu0
        %v3860 = vpop.f32.mrb[0].mxu0
        %v3861 = vadd.f32 0.0, %v3860
        %v3862 = vpop.f32.mrb[0].mxu0
        %3863 = vmatprep.mubr.bf16.mxu0 %v2303
        %3864 = vmatmul.mubr.bf16.gmra.mrb[0].mxu0 %v2447
        %v3865 = vpop.f32.mrb[0].mxu0
        %v3866 = vadd.f32 0.0, %v3865
        %v3867 = vpop.f32.mrb[0].mxu0
        %v3868 = vpop.f32.mrb[0].mxu0
        %v3869 = vadd.f32 0.0, %v3868
        %v3870 = vpop.f32.mrb[0].mxu0
        %3871 = vmatprep.mubr.bf16.mxu0 %v2304
        %3872 = vmatmul.mubr.bf16.gmra.mrb[0].mxu0 %v2448
        %v3873 = vpop.f32.mrb[0].mxu0
        %v3874 = vadd.f32 0.0, %v3873
        %v3875 = vpop.f32.mrb[0].mxu0
        %v3876 = vpop.f32.mrb[0].mxu0
        %v3877 = vadd.f32 0.0, %v3876
        %v3878 = vpop.f32.mrb[0].mxu0
        %3879 = vmatprep.mubr.bf16.mxu0 %v2305
        %3880 = vmatmul.mubr.bf16.gmra.mrb[0].mxu0 %v2449
        %v3881 = vpop.f32.mrb[0].mxu0
        %v3882 = vadd.f32 0.0, %v3881
        %v3883 = vpop.f32.mrb[0].mxu0
        %v3884 = vpop.f32.mrb[0].mxu0
        %v3885 = vadd.f32 0.0, %v3884
        %v3886 = vpop.f32.mrb[0].mxu0
        %3887 = vmatprep.mubr.bf16.mxu0 %v2306
        %3888 = vmatmul.mubr.bf16.gmra.mrb[0].mxu0 %v2450
        %v3889 = vpop.f32.mrb[0].mxu0
        %v3890 = vadd.f32 0.0, %v3889
        %v3891 = vpop.f32.mrb[0].mxu0
        %v3892 = vpop.f32.mrb[0].mxu0
        %v3893 = vadd.f32 0.0, %v3892
        %v3894 = vpop.f32.mrb[0].mxu0
        %3895 = vmatprep.mubr.bf16.mxu0 %v2307
        %3896 = vmatmul.mubr.bf16.gmra.mrb[0].mxu0 %v2451
        %v3897 = vpop.f32.mrb[0].mxu0
        %v3898 = vadd.f32 0.0, %v3897
        %v3899 = vpop.f32.mrb[0].mxu0
        %v3900 = vpop.f32.mrb[0].mxu0
        %v3901 = vadd.f32 0.0, %v3900
        %v3902 = vpop.f32.mrb[0].mxu0
        %3903 = vmatprep.mubr.bf16.mxu0 %v2308
        %3904 = vmatmul.mubr.bf16.gmra.mrb[0].mxu0 %v2452
        %v3905 = vpop.f32.mrb[0].mxu0
        %v3906 = vadd.f32 0.0, %v3905
        %v3907 = vpop.f32.mrb[0].mxu0
        %v3908 = vpop.f32.mrb[0].mxu0
        %v3909 = vadd.f32 0.0, %v3908
        %v3910 = vpop.f32.mrb[0].mxu0
        %3911 = vmatprep.mubr.bf16.mxu0 %v2309
        %3912 = vmatmul.mubr.bf16.gmra.mrb[0].mxu0 %v2453
        %v3913 = vpop.f32.mrb[0].mxu0
        %v3914 = vadd.f32 0.0, %v3913
        %v3915 = vpop.f32.mrb[0].mxu0
        %v3916 = vpop.f32.mrb[0].mxu0
        %v3917 = vadd.f32 0.0, %v3916
        %v3918 = vpop.f32.mrb[0].mxu0
        %3919 = vmatprep.mubr.bf16.mxu0 %v2310
        %3920 = vmatmul.mubr.bf16.gmra.mrb[0].mxu0 %v2454
        %v3921 = vpop.f32.mrb[0].mxu0
        %v3922 = vadd.f32 0.0, %v3921
        %v3923 = vpop.f32.mrb[0].mxu0
        %v3924 = vpop.f32.mrb[0].mxu0
        %v3925 = vadd.f32 0.0, %v3924
        %v3926 = vpop.f32.mrb[0].mxu0
        %3927 = vmatprep.mubr.bf16.mxu0 %v2311
        %3928 = vmatmul.mubr.bf16.gmra.mrb[0].mxu0 %v2455
        %v3929 = vpop.f32.mrb[0].mxu0
        %v3930 = vadd.f32 0.0, %v3929
        %v3931 = vpop.f32.mrb[0].mxu0
        %v3932 = vpop.f32.mrb[0].mxu0
        %v3933 = vadd.f32 0.0, %v3932
        %v3934 = vpop.f32.mrb[0].mxu0
        %3935 = vmatprep.mubr.bf16.mxu0 %v2312
        %3936 = vmatmul.mubr.bf16.gmra.mrb[0].mxu0 %v2456
        %v3937 = vpop.f32.mrb[0].mxu0
        %v3938 = vadd.f32 0.0, %v3937
        %v3939 = vpop.f32.mrb[0].mxu0
        %v3940 = vpop.f32.mrb[0].mxu0
        %v3941 = vadd.f32 0.0, %v3940
        %v3942 = vpop.f32.mrb[0].mxu0
        %3943 = vmatprep.mubr.bf16.mxu0 0
        %3944 = vmatmul.mubr.bf16.gmra.mrb[0].mxu0 0
        %v3945 = vpop.f32.mrb[0].mxu0
        %v3946 = vadd.f32 0.0, %v3945
        %v3947 = vpop.f32.mrb[0].mxu0
        %v3948 = vpop.f32.mrb[0].mxu0
        %v3949 = vadd.f32 0.0, %v3948
        %v3950 = vpop.f32.mrb[0].mxu0
        %3951 = vdwg.mxu0
        %3952 = vmatprep.subr.bf16.mxu0 0
        %3953 = vmatpush1.bf16.msra.mxu0 %v3759
        %3954 = vmatprep.subr.bf16.mxu0 0
        %3955 = vmatpush1.bf16.msra.mxu0 %v3760
        %3956 = vmatprep.subr.bf16.mxu0 0
        %3957 = vmatpush1.bf16.msra.mxu0 %v3761
        %3958 = vmatprep.subr.bf16.mxu0 0
        %3959 = vmatpush1.bf16.msra.mxu0 %v3762
        %3960 = vmatprep.subr.bf16.mxu0 0
        %3961 = vmatpush1.bf16.msra.mxu0 %v3763
        %3962 = vmatprep.subr.bf16.mxu0 0
        %3963 = vmatpush1.bf16.msra.mxu0 %v3764
        %3964 = vmatprep.subr.bf16.mxu0 0
        %3965 = vmatpush1.bf16.msra.mxu0 %v3765
        %3966 = vmatprep.subr.bf16.mxu0 0
        %3967 = vmatpush1.bf16.msra.mxu0 %v3766
        %3968 = vmatprep.subr.bf16.mxu0 0
        %3969 = vmatpush1.bf16.msra.mxu0 0
        %3970 = vmatprep.subr.bf16.mxu0 0
        %3971 = vmatpush1.bf16.msra.mxu0 0
        %3972 = vmatprep.subr.bf16.mxu0 0
        %3973 = vmatpush1.bf16.msra.mxu0 0
        %3974 = vmatprep.subr.bf16.mxu0 0
        %3975 = vmatpush1.bf16.msra.mxu0 0
        %3976 = vmatprep.subr.bf16.mxu0 0
        %3977 = vmatpush1.bf16.msra.mxu0 0
        %3978 = vmatprep.subr.bf16.mxu0 0
        %3979 = vmatpush1.bf16.msra.mxu0 0
        %3980 = vmatprep.subr.bf16.mxu0 0
        %3981 = vmatpush1.bf16.msra.mxu0 0
        %3982 = vmatprep.subr.bf16.mxu0 0
        %3983 = vmatpush1.bf16.msra.mxu0 0
        %3984 = vmatprep.mubr.bf16.mxu0 0
        %3985 = vmatmul.mubr.bf16.gmra.mrb[0].mxu0 %v2554
        %v3986 = vpop.f32.mrb[0].mxu0
        %v3987 = vadd.f32 %v3826, %v3986
        %v3988 = vpop.f32.mrb[0].mxu0
        %v3989 = vpop.f32.mrb[0].mxu0
        %v3990 = vadd.f32 %v3829, %v3989
        %v3991 = vpop.f32.mrb[0].mxu0
        %3992 = vmatprep.mubr.bf16.mxu0 0
        %3993 = vmatmul.mubr.bf16.gmra.mrb[0].mxu0 %v2555
        %v3994 = vpop.f32.mrb[0].mxu0
        %v3995 = vadd.f32 %v3834, %v3994
        %v3996 = vpop.f32.mrb[0].mxu0
        %v3997 = vpop.f32.mrb[0].mxu0
        %v3998 = vadd.f32 %v3837, %v3997
        %v3999 = vpop.f32.mrb[0].mxu0
        %4000 = vmatprep.mubr.bf16.mxu0 0
        %4001 = vmatmul.mubr.bf16.gmra.mrb[0].mxu0 %v2556
        %v4002 = vpop.f32.mrb[0].mxu0
        %v4003 = vadd.f32 %v3842, %v4002
        %v4004 = vpop.f32.mrb[0].mxu0
        %v4005 = vpop.f32.mrb[0].mxu0
        %v4006 = vadd.f32 %v3845, %v4005
        %v4007 = vpop.f32.mrb[0].mxu0
        %4008 = vmatprep.mubr.bf16.mxu0 0
        %4009 = vmatmul.mubr.bf16.gmra.mrb[0].mxu0 %v2557
        %v4010 = vpop.f32.mrb[0].mxu0
        %v4011 = vadd.f32 %v3850, %v4010
        %v4012 = vpop.f32.mrb[0].mxu0
        %v4013 = vpop.f32.mrb[0].mxu0
        %v4014 = vadd.f32 %v3853, %v4013
        %v4015 = vpop.f32.mrb[0].mxu0
        %4016 = vmatprep.mubr.bf16.mxu0 0
        %4017 = vmatmul.mubr.bf16.gmra.mrb[0].mxu0 %v2558
        %v4018 = vpop.f32.mrb[0].mxu0
        %v4019 = vadd.f32 %v3858, %v4018
        %v4020 = vpop.f32.mrb[0].mxu0
        %v4021 = vpop.f32.mrb[0].mxu0
        %v4022 = vadd.f32 %v3861, %v4021
        %v4023 = vpop.f32.mrb[0].mxu0
        %4024 = vmatprep.mubr.bf16.mxu0 0
        %4025 = vmatmul.mubr.bf16.gmra.mrb[0].mxu0 %v2559
        %v4026 = vpop.f32.mrb[0].mxu0
        %v4027 = vadd.f32 %v3866, %v4026
        %v4028 = vpop.f32.mrb[0].mxu0
        %v4029 = vpop.f32.mrb[0].mxu0
        %v4030 = vadd.f32 %v3869, %v4029
        %v4031 = vpop.f32.mrb[0].mxu0
        %4032 = vmatprep.mubr.bf16.mxu0 0
        %4033 = vmatmul.mubr.bf16.gmra.mrb[0].mxu0 %v2560
        %v4034 = vpop.f32.mrb[0].mxu0
        %v4035 = vadd.f32 %v3874, %v4034
        %v4036 = vpop.f32.mrb[0].mxu0
        %v4037 = vpop.f32.mrb[0].mxu0
        %v4038 = vadd.f32 %v3877, %v4037
        %v4039 = vpop.f32.mrb[0].mxu0
        %4040 = vmatprep.mubr.bf16.mxu0 0
        %4041 = vmatmul.mubr.bf16.gmra.mrb[0].mxu0 %v2561
        %v4042 = vpop.f32.mrb[0].mxu0
        %v4043 = vadd.f32 %v3882, %v4042
        %v4044 = vpop.f32.mrb[0].mxu0
        %v4045 = vpop.f32.mrb[0].mxu0
        %v4046 = vadd.f32 %v3885, %v4045
        %v4047 = vpop.f32.mrb[0].mxu0
        %4048 = vmatprep.mubr.bf16.mxu0 0
        %4049 = vmatmul.mubr.bf16.gmra.mrb[0].mxu0 %v2562
        %v4050 = vpop.f32.mrb[0].mxu0
        %v4051 = vadd.f32 %v3890, %v4050
        %v4052 = vpop.f32.mrb[0].mxu0
        %v4053 = vpop.f32.mrb[0].mxu0
        %v4054 = vadd.f32 %v3893, %v4053
        %v4055 = vpop.f32.mrb[0].mxu0
        %4056 = vmatprep.mubr.bf16.mxu0 0
        %4057 = vmatmul.mubr.bf16.gmra.mrb[0].mxu0 %v2563
        %v4058 = vpop.f32.mrb[0].mxu0
        %v4059 = vadd.f32 %v3898, %v4058
        %v4060 = vpop.f32.mrb[0].mxu0
        %v4061 = vpop.f32.mrb[0].mxu0
        %v4062 = vadd.f32 %v3901, %v4061
        %v4063 = vpop.f32.mrb[0].mxu0
        %4064 = vmatprep.mubr.bf16.mxu0 0
        %4065 = vmatmul.mubr.bf16.gmra.mrb[0].mxu0 %v2564
        %v4066 = vpop.f32.mrb[0].mxu0
        %v4067 = vadd.f32 %v3906, %v4066
        %v4068 = vpop.f32.mrb[0].mxu0
        %v4069 = vpop.f32.mrb[0].mxu0
        %v4070 = vadd.f32 %v3909, %v4069
        %v4071 = vpop.f32.mrb[0].mxu0
        %4072 = vmatprep.mubr.bf16.mxu0 0
        %4073 = vmatmul.mubr.bf16.gmra.mrb[0].mxu0 %v2565
        %v4074 = vpop.f32.mrb[0].mxu0
        %v4075 = vadd.f32 %v3914, %v4074
        %v4076 = vpop.f32.mrb[0].mxu0
        %v4077 = vpop.f32.mrb[0].mxu0
        %v4078 = vadd.f32 %v3917, %v4077
        %v4079 = vpop.f32.mrb[0].mxu0
        %4080 = vmatprep.mubr.bf16.mxu0 0
        %4081 = vmatmul.mubr.bf16.gmra.mrb[0].mxu0 %v2566
        %v4082 = vpop.f32.mrb[0].mxu0
        %v4083 = vadd.f32 %v3922, %v4082
        %v4084 = vpop.f32.mrb[0].mxu0
        %v4085 = vpop.f32.mrb[0].mxu0
        %v4086 = vadd.f32 %v3925, %v4085
        %v4087 = vpop.f32.mrb[0].mxu0
        %4088 = vmatprep.mubr.bf16.mxu0 0
        %4089 = vmatmul.mubr.bf16.gmra.mrb[0].mxu0 %v2567
        %v4090 = vpop.f32.mrb[0].mxu0
        %v4091 = vadd.f32 %v3930, %v4090
        %v4092 = vpop.f32.mrb[0].mxu0
        %v4093 = vpop.f32.mrb[0].mxu0
        %v4094 = vadd.f32 %v3933, %v4093
        %v4095 = vpop.f32.mrb[0].mxu0
        %4096 = vmatprep.mubr.bf16.mxu0 0
        %4097 = vmatmul.mubr.bf16.gmra.mrb[0].mxu0 %v2568
        %v4098 = vpop.f32.mrb[0].mxu0
        %v4099 = vadd.f32 %v3938, %v4098
        %v4100 = vpop.f32.mrb[0].mxu0
        %v4101 = vpop.f32.mrb[0].mxu0
        %v4102 = vadd.f32 %v3941, %v4101
        %v4103 = vpop.f32.mrb[0].mxu0
        %4104 = vmatprep.mubr.bf16.mxu0 0
        %4105 = vmatmul.mubr.bf16.gmra.mrb[0].mxu0 0
        %v4106 = vpop.f32.mrb[0].mxu0
        %v4107 = vadd.f32 %v3946, %v4106
        %v4108 = vpop.f32.mrb[0].mxu0
        %v4109 = vpop.f32.mrb[0].mxu0
        %v4110 = vadd.f32 %v3949, %v4109
        %v4111 = vpop.f32.mrb[0].mxu0
        %4112 = vdwg.mxu0
        %v4113 = vadd.f32 %v3472, %v3987
        %v4114 = vadd.f32 %v3475, %v3990
        %v4115 = vadd.f32 %v3480, %v3995
        %v4116 = vadd.f32 %v3483, %v3998
        %v4117 = vadd.f32 %v3488, %v4003
        %v4118 = vadd.f32 %v3491, %v4006
        %v4119 = vadd.f32 %v3496, %v4011
        %v4120 = vadd.f32 %v3499, %v4014
        %v4121 = vadd.f32 %v3504, %v4019
        %v4122 = vadd.f32 %v3507, %v4022
        %v4123 = vadd.f32 %v3512, %v4027
        %v4124 = vadd.f32 %v3515, %v4030
        %v4125 = vadd.f32 %v3520, %v4035
        %v4126 = vadd.f32 %v3523, %v4038
        %v4127 = vadd.f32 %v3528, %v4043
        %v4128 = vadd.f32 %v3531, %v4046
        %v4129 = vadd.f32 %v3536, %v4051
        %v4130 = vadd.f32 %v3539, %v4054
        %v4131 = vadd.f32 %v3544, %v4059
        %v4132 = vadd.f32 %v3547, %v4062
        %v4133 = vadd.f32 %v3552, %v4067
        %v4134 = vadd.f32 %v3555, %v4070
        %v4135 = vadd.f32 %v3560, %v4075
        %v4136 = vadd.f32 %v3563, %v4078
        %v4137 = vadd.f32 %v3568, %v4083
        %v4138 = vadd.f32 %v3571, %v4086
        %v4139 = vadd.f32 %v3576, %v4091
        %v4140 = vadd.f32 %v3579, %v4094
        %v4141 = vadd.f32 %v3584, %v4099
        %v4142 = vadd.f32 %v3587, %v4102
        %v4143 = vadd.f32 %v3592, %v4107
        %v4144 = vadd.f32 %v3595, %v4110
        %v4145 = vld [vmem:[#allocation8] sm:$0xf]
        %v4146 = vld [vmem:[#allocation8 + $0x4] sm:$0xf]
        %v4147 = vld [vmem:[#allocation8 + $0x8] sm:$0xf]
        %v4148 = vld [vmem:[#allocation8 + $0xc] sm:$0xf]
        %v4149 = vld [vmem:[#allocation8 + $0x10] sm:$0xf]
        %v4150 = vld [vmem:[#allocation8 + $0x14] sm:$0xf]
        %v4151 = vld [vmem:[#allocation8 + $0x18] sm:$0xf]
        %v4152 = vld [vmem:[#allocation8 + $0x1c] sm:$0xf]
        %v4153 = vld [vmem:[#allocation8 + $0x20] sm:$0xf]
        %v4154 = vld [vmem:[#allocation8 + $0x24] sm:$0xf]
        %v4155 = vld [vmem:[#allocation8 + $0x28] sm:$0xf]
        %v4156 = vld [vmem:[#allocation8 + $0x2c] sm:$0xf]
        %v4157 = vld [vmem:[#allocation8 + $0x30] sm:$0xf]
        %v4158 = vld [vmem:[#allocation8 + $0x34] sm:$0xf]
        %v4159 = vld [vmem:[#allocation8 + $0x38] sm:$0xf]
        %v4160 = vld [vmem:[#allocation8 + $0x3c] sm:$0xf]
        %v4161 = vld [vmem:[%s4] sm:$0x1]
        %v4163 = vlaneseq
        %v4164 = vshrl.u32 %v4163, 7
        %v4165 = vsub.s32 0, %v4164
        %v4166 = vrot.slane %v4161, %v4165
        %v4184 = vunpack.c.l.b16 %v4145
        %v4185 = vunpack.c.l.b16 %v4146
        %v4186 = vunpack.c.l.b16 %v4147
        %v4187 = vunpack.c.l.b16 %v4148
        %v4188 = vunpack.c.l.b16 %v4149
        %v4189 = vunpack.c.l.b16 %v4150
        %v4190 = vunpack.c.l.b16 %v4151
        %v4191 = vunpack.c.l.b16 %v4152
        %v4192 = vunpack.c.l.b16 %v4153
        %v4193 = vunpack.c.l.b16 %v4154
        %v4194 = vunpack.c.l.b16 %v4155
        %v4195 = vunpack.c.l.b16 %v4156
        %v4196 = vunpack.c.l.b16 %v4157
        %v4197 = vunpack.c.l.b16 %v4158
        %v4198 = vunpack.c.l.b16 %v4159
        %v4199 = vunpack.c.l.b16 %v4160
        %v4200 = vpack.c.b16 %v4185, %v4184
        %v4201 = vpack.c.b16 %v4187, %v4186
        %v4202 = vpack.c.b16 %v4189, %v4188
        %v4203 = vpack.c.b16 %v4191, %v4190
        %v4204 = vpack.c.b16 %v4193, %v4192
        %v4205 = vpack.c.b16 %v4195, %v4194
        %v4206 = vpack.c.b16 %v4197, %v4196
        %v4207 = vpack.c.b16 %v4199, %v4198
        %4216 = vmatprep.subr.bf16.mxu0 0
        %4217 = vmatpush1.bf16.msra.mxu0 %v4200
        %4218 = vmatprep.subr.bf16.mxu0 0
        %4219 = vmatpush1.bf16.msra.mxu0 %v4201
        %4220 = vmatprep.subr.bf16.mxu0 0
        %4221 = vmatpush1.bf16.msra.mxu0 %v4202
        %4222 = vmatprep.subr.bf16.mxu0 0
        %4223 = vmatpush1.bf16.msra.mxu0 %v4203
        %4224 = vmatprep.subr.bf16.mxu0 0
        %4225 = vmatpush1.bf16.msra.mxu0 %v4204
        %4226 = vmatprep.subr.bf16.mxu0 0
        %4227 = vmatpush1.bf16.msra.mxu0 %v4205
        %4228 = vmatprep.subr.bf16.mxu0 0
        %4229 = vmatpush1.bf16.msra.mxu0 %v4206
        %4230 = vmatprep.subr.bf16.mxu0 0
        %4231 = vmatpush1.bf16.msra.mxu0 %v4207
        %4232 = vmatprep.subr.bf16.mxu0 0
        %4233 = vmatpush1.bf16.msra.mxu0 0
        %4234 = vmatprep.subr.bf16.mxu0 0
        %4235 = vmatpush1.bf16.msra.mxu0 0
        %4236 = vmatprep.subr.bf16.mxu0 0
        %4237 = vmatpush1.bf16.msra.mxu0 0
        %4238 = vmatprep.subr.bf16.mxu0 0
        %4239 = vmatpush1.bf16.msra.mxu0 0
        %4240 = vmatprep.subr.bf16.mxu0 0
        %4241 = vmatpush1.bf16.msra.mxu0 0
        %4242 = vmatprep.subr.bf16.mxu0 0
        %4243 = vmatpush1.bf16.msra.mxu0 0
        %4244 = vmatprep.subr.bf16.mxu0 0
        %4245 = vmatpush1.bf16.msra.mxu0 0
        %4246 = vmatprep.subr.bf16.mxu0 0
        %4247 = vmatpush1.bf16.msra.mxu0 0
        %4248 = vmatprep.mubr.bf16.mxu0 0
        %4249 = vmatmul.mubr.bf16.gmra.mrb[0].mxu0 %v657
        %v4250 = vpop.f32.mrb[0].mxu0
        %v4251 = vadd.f32 %v4166, %v4250
        %v4252 = vpop.f32.mrb[0].mxu0
        %v4253 = vpop.f32.mrb[0].mxu0
        %v4254 = vadd.f32 %v4166, %v4253
        %v4255 = vpop.f32.mrb[0].mxu0
        %4256 = vmatprep.mubr.bf16.mxu0 0
        %4257 = vmatmul.mubr.bf16.gmra.mrb[0].mxu0 %v658
        %v4258 = vpop.f32.mrb[0].mxu0
        %v4259 = vadd.f32 %v4166, %v4258
        %v4260 = vpop.f32.mrb[0].mxu0
        %v4261 = vpop.f32.mrb[0].mxu0
        %v4262 = vadd.f32 %v4166, %v4261
        %v4263 = vpop.f32.mrb[0].mxu0
        %4264 = vmatprep.mubr.bf16.mxu0 0
        %4265 = vmatmul.mubr.bf16.gmra.mrb[0].mxu0 %v659
        %v4266 = vpop.f32.mrb[0].mxu0
        %v4267 = vadd.f32 %v4166, %v4266
        %v4268 = vpop.f32.mrb[0].mxu0
        %v4269 = vpop.f32.mrb[0].mxu0
        %v4270 = vadd.f32 %v4166, %v4269
        %v4271 = vpop.f32.mrb[0].mxu0
        %4272 = vmatprep.mubr.bf16.mxu0 0
        %4273 = vmatmul.mubr.bf16.gmra.mrb[0].mxu0 %v660
        %v4274 = vpop.f32.mrb[0].mxu0
        %v4275 = vadd.f32 %v4166, %v4274
        %v4276 = vpop.f32.mrb[0].mxu0
        %v4277 = vpop.f32.mrb[0].mxu0
        %v4278 = vadd.f32 %v4166, %v4277
        %v4279 = vpop.f32.mrb[0].mxu0
        %4280 = vmatprep.mubr.bf16.mxu0 0
        %4281 = vmatmul.mubr.bf16.gmra.mrb[0].mxu0 %v661
        %v4282 = vpop.f32.mrb[0].mxu0
        %v4283 = vadd.f32 %v4166, %v4282
        %v4284 = vpop.f32.mrb[0].mxu0
        %v4285 = vpop.f32.mrb[0].mxu0
        %v4286 = vadd.f32 %v4166, %v4285
        %v4287 = vpop.f32.mrb[0].mxu0
        %4288 = vmatprep.mubr.bf16.mxu0 0
        %4289 = vmatmul.mubr.bf16.gmra.mrb[0].mxu0 %v662
        %v4290 = vpop.f32.mrb[0].mxu0
        %v4291 = vadd.f32 %v4166, %v4290
        %v4292 = vpop.f32.mrb[0].mxu0
        %v4293 = vpop.f32.mrb[0].mxu0
        %v4294 = vadd.f32 %v4166, %v4293
        %v4295 = vpop.f32.mrb[0].mxu0
        %4296 = vmatprep.mubr.bf16.mxu0 0
        %4297 = vmatmul.mubr.bf16.gmra.mrb[0].mxu0 %v663
        %v4298 = vpop.f32.mrb[0].mxu0
        %v4299 = vadd.f32 %v4166, %v4298
        %v4300 = vpop.f32.mrb[0].mxu0
        %v4301 = vpop.f32.mrb[0].mxu0
        %v4302 = vadd.f32 %v4166, %v4301
        %v4303 = vpop.f32.mrb[0].mxu0
        %4304 = vmatprep.mubr.bf16.mxu0 0
        %4305 = vmatmul.mubr.bf16.gmra.mrb[0].mxu0 %v664
        %v4306 = vpop.f32.mrb[0].mxu0
        %v4307 = vadd.f32 %v4166, %v4306
        %v4308 = vpop.f32.mrb[0].mxu0
        %v4309 = vpop.f32.mrb[0].mxu0
        %v4310 = vadd.f32 %v4166, %v4309
        %v4311 = vpop.f32.mrb[0].mxu0
        %4312 = vmatprep.mubr.bf16.mxu0 0
        %4313 = vmatmul.mubr.bf16.gmra.mrb[0].mxu0 %v665
        %v4314 = vpop.f32.mrb[0].mxu0
        %v4315 = vadd.f32 %v4166, %v4314
        %v4316 = vpop.f32.mrb[0].mxu0
        %v4317 = vpop.f32.mrb[0].mxu0
        %v4318 = vadd.f32 %v4166, %v4317
        %v4319 = vpop.f32.mrb[0].mxu0
        %4320 = vmatprep.mubr.bf16.mxu0 0
        %4321 = vmatmul.mubr.bf16.gmra.mrb[0].mxu0 %v666
        %v4322 = vpop.f32.mrb[0].mxu0
        %v4323 = vadd.f32 %v4166, %v4322
        %v4324 = vpop.f32.mrb[0].mxu0
        %v4325 = vpop.f32.mrb[0].mxu0
        %v4326 = vadd.f32 %v4166, %v4325
        %v4327 = vpop.f32.mrb[0].mxu0
        %4328 = vmatprep.mubr.bf16.mxu0 0
        %4329 = vmatmul.mubr.bf16.gmra.mrb[0].mxu0 %v667
        %v4330 = vpop.f32.mrb[0].mxu0
        %v4331 = vadd.f32 %v4166, %v4330
        %v4332 = vpop.f32.mrb[0].mxu0
        %v4333 = vpop.f32.mrb[0].mxu0
        %v4334 = vadd.f32 %v4166, %v4333
        %v4335 = vpop.f32.mrb[0].mxu0
        %4336 = vmatprep.mubr.bf16.mxu0 0
        %4337 = vmatmul.mubr.bf16.gmra.mrb[0].mxu0 %v668
        %v4338 = vpop.f32.mrb[0].mxu0
        %v4339 = vadd.f32 %v4166, %v4338
        %v4340 = vpop.f32.mrb[0].mxu0
        %v4341 = vpop.f32.mrb[0].mxu0
        %v4342 = vadd.f32 %v4166, %v4341
        %v4343 = vpop.f32.mrb[0].mxu0
        %4344 = vmatprep.mubr.bf16.mxu0 0
        %4345 = vmatmul.mubr.bf16.gmra.mrb[0].mxu0 %v669
        %v4346 = vpop.f32.mrb[0].mxu0
        %v4347 = vadd.f32 %v4166, %v4346
        %v4348 = vpop.f32.mrb[0].mxu0
        %v4349 = vpop.f32.mrb[0].mxu0
        %v4350 = vadd.f32 %v4166, %v4349
        %v4351 = vpop.f32.mrb[0].mxu0
        %4352 = vmatprep.mubr.bf16.mxu0 0
        %4353 = vmatmul.mubr.bf16.gmra.mrb[0].mxu0 %v670
        %v4354 = vpop.f32.mrb[0].mxu0
        %v4355 = vadd.f32 %v4166, %v4354
        %v4356 = vpop.f32.mrb[0].mxu0
        %v4357 = vpop.f32.mrb[0].mxu0
        %v4358 = vadd.f32 %v4166, %v4357
        %v4359 = vpop.f32.mrb[0].mxu0
        %4360 = vmatprep.mubr.bf16.mxu0 0
        %4361 = vmatmul.mubr.bf16.gmra.mrb[0].mxu0 %v671
        %v4362 = vpop.f32.mrb[0].mxu0
        %v4363 = vadd.f32 %v4166, %v4362
        %v4364 = vpop.f32.mrb[0].mxu0
        %v4365 = vpop.f32.mrb[0].mxu0
        %v4366 = vadd.f32 %v4166, %v4365
        %v4367 = vpop.f32.mrb[0].mxu0
        %4368 = vmatprep.mubr.bf16.mxu0 0
        %4369 = vmatmul.mubr.bf16.gmra.mrb[0].mxu0 %v672
        %v4370 = vpop.f32.mrb[0].mxu0
        %v4371 = vadd.f32 %v4166, %v4370
        %v4372 = vpop.f32.mrb[0].mxu0
        %v4373 = vpop.f32.mrb[0].mxu0
        %v4374 = vadd.f32 %v4166, %v4373
        %v4375 = vpop.f32.mrb[0].mxu0
        %4376 = vdwg.mxu0
        %v4377 = vadd.f32 %v4113, %v4251
        %v4378 = vadd.f32 %v4114, %v4254
        %v4379 = vadd.f32 %v4115, %v4259
        %v4380 = vadd.f32 %v4116, %v4262
        %v4381 = vadd.f32 %v4117, %v4267
        %v4382 = vadd.f32 %v4118, %v4270
        %v4383 = vadd.f32 %v4119, %v4275
        %v4384 = vadd.f32 %v4120, %v4278
        %v4385 = vadd.f32 %v4121, %v4283
        %v4386 = vadd.f32 %v4122, %v4286
        %v4387 = vadd.f32 %v4123, %v4291
        %v4388 = vadd.f32 %v4124, %v4294
        %v4389 = vadd.f32 %v4125, %v4299
        %v4390 = vadd.f32 %v4126, %v4302
        %v4391 = vadd.f32 %v4127, %v4307
        %v4392 = vadd.f32 %v4128, %v4310
        %v4393 = vadd.f32 %v4129, %v4315
        %v4394 = vadd.f32 %v4130, %v4318
        %v4395 = vadd.f32 %v4131, %v4323
        %v4396 = vadd.f32 %v4132, %v4326
        %v4397 = vadd.f32 %v4133, %v4331
        %v4398 = vadd.f32 %v4134, %v4334
        %v4399 = vadd.f32 %v4135, %v4339
        %v4400 = vadd.f32 %v4136, %v4342
        %v4401 = vadd.f32 %v4137, %v4347
        %v4402 = vadd.f32 %v4138, %v4350
        %v4403 = vadd.f32 %v4139, %v4355
        %v4404 = vadd.f32 %v4140, %v4358
        %v4405 = vadd.f32 %v4141, %v4363
        %v4406 = vadd.f32 %v4142, %v4366
        %v4407 = vadd.f32 %v4143, %v4371
        %v4408 = vadd.f32 %v4144, %v4374
        %v4409 = vmax.f32 %v4377, 0.0
        %v4410 = vmax.f32 %v4378, 0.0
        %v4411 = vmax.f32 %v4379, 0.0
        %v4412 = vmax.f32 %v4380, 0.0
        %v4413 = vmax.f32 %v4381, 0.0
        %v4414 = vmax.f32 %v4382, 0.0
        %v4415 = vmax.f32 %v4383, 0.0
        %v4416 = vmax.f32 %v4384, 0.0
        %v4417 = vmax.f32 %v4385, 0.0
        %v4418 = vmax.f32 %v4386, 0.0
        %v4419 = vmax.f32 %v4387, 0.0
        %v4420 = vmax.f32 %v4388, 0.0
        %v4421 = vmax.f32 %v4389, 0.0
        %v4422 = vmax.f32 %v4390, 0.0
        %v4423 = vmax.f32 %v4391, 0.0
        %v4424 = vmax.f32 %v4392, 0.0
        %v4425 = vmax.f32 %v4393, 0.0
        %v4426 = vmax.f32 %v4394, 0.0
        %v4427 = vmax.f32 %v4395, 0.0
        %v4428 = vmax.f32 %v4396, 0.0
        %v4429 = vmax.f32 %v4397, 0.0
        %v4430 = vmax.f32 %v4398, 0.0
        %v4431 = vmax.f32 %v4399, 0.0
        %v4432 = vmax.f32 %v4400, 0.0
        %v4433 = vmax.f32 %v4401, 0.0
        %v4434 = vmax.f32 %v4402, 0.0
        %v4435 = vmax.f32 %v4403, 0.0
        %v4436 = vmax.f32 %v4404, 0.0
        %v4437 = vmax.f32 %v4405, 0.0
        %v4438 = vmax.f32 %v4406, 0.0
        %v4439 = vmax.f32 %v4407, 0.0
        %v4440 = vmax.f32 %v4408, 0.0
        %4441 = vst [vmem:[%s286] sm:$0xff] %v4409
        %4442 = vst [vmem:[%s286 + $0x8] sm:$0xff] %v4410
        %4443 = vst [vmem:[%s286 + $0x10] sm:$0xff] %v4411
        %4444 = vst [vmem:[%s286 + $0x18] sm:$0xff] %v4412
        %4445 = vst [vmem:[%s286 + $0x20] sm:$0xff] %v4413
        %4446 = vst [vmem:[%s286 + $0x28] sm:$0xff] %v4414
        %4447 = vst [vmem:[%s286 + $0x30] sm:$0xff] %v4415
        %4448 = vst [vmem:[%s286 + $0x38] sm:$0xff] %v4416
        %4449 = vst [vmem:[%s286 + $0x40] sm:$0xff] %v4417
        %4450 = vst [vmem:[%s286 + $0x48] sm:$0xff] %v4418
        %4451 = vst [vmem:[%s286 + $0x50] sm:$0xff] %v4419
        %4452 = vst [vmem:[%s286 + $0x58] sm:$0xff] %v4420
        %4453 = vst [vmem:[%s286 + $0x60] sm:$0xff] %v4421
        %4454 = vst [vmem:[%s286 + $0x68] sm:$0xff] %v4422
        %4455 = vst [vmem:[%s286 + $0x70] sm:$0xff] %v4423
        %4456 = vst [vmem:[%s286 + $0x78] sm:$0xff] %v4424
        %4457 = vst [vmem:[%s286 + $0x80] sm:$0xff] %v4425
        %4458 = vst [vmem:[%s286 + $0x88] sm:$0xff] %v4426
        %4459 = vst [vmem:[%s286 + $0x90] sm:$0xff] %v4427
        %4460 = vst [vmem:[%s286 + $0x98] sm:$0xff] %v4428
        %4461 = vst [vmem:[%s286 + $0xa0] sm:$0xff] %v4429
        %4462 = vst [vmem:[%s286 + $0xa8] sm:$0xff] %v4430
        %4463 = vst [vmem:[%s286 + $0xb0] sm:$0xff] %v4431
        %4464 = vst [vmem:[%s286 + $0xb8] sm:$0xff] %v4432
        %4465 = vst [vmem:[%s286 + $0xc0] sm:$0xff] %v4433
        %4466 = vst [vmem:[%s286 + $0xc8] sm:$0xff] %v4434
        %4467 = vst [vmem:[%s286 + $0xd0] sm:$0xff] %v4435
        %4468 = vst [vmem:[%s286 + $0xd8] sm:$0xff] %v4436
        %4469 = vst [vmem:[%s286 + $0xe0] sm:$0xff] %v4437
        %4470 = vst [vmem:[%s286 + $0xe8] sm:$0xff] %v4438
        %4471 = vst [vmem:[%s286 + $0xf0] sm:$0xff] %v4439
        %4472 = vst [vmem:[%s286 + $0xf8] sm:$0xff] %v4440
        %s4473 = sand.u32 %s142, 1
        %s4474 = scalar_lea.sflag [#allocation4], %s4473
        %s4475 = sand.u32 %s142, 1
        %s4476 = smul.addr %s4475, 256
        %s4477 = scalar_lea.vmem [#allocation10], %s4476
        // Predicated region
        $region57: #{tpu_custom_call.1} parent=39 // pred_check
          %p4478 = pneg %p152
        $region58: #{tpu_custom_call.1} parent=39 // pred_check_branch
          %4480 = sbr.rel (%p4478) target = $region60
        $region59: #{tpu_custom_call.1} parent=39 // pred_region
          %s4482 = ssub.s32 4096, 4096
          %4483 = vsyncadd %s4474, %s4482
          %s4484 = smul.addr %s24, 32
          %s4485 = smul.addr %s4484, 128
          %s4486 = scalar_lea.hbm %s5, %s4485
          %s4487 = sshll.u32 %s4477, 4
          %s4488 = int_to_ptr.vmem [resolvable:$true] %s4487
          %4493 = dma.vmem_to_hbm [thread:$0]  %s4488, 4096, %s4486, %s4474, 128, 128, 8
        $region60: #{tpu_custom_call.1} parent=39 // pred_fallthru
          _
      $region40: #{tpu_custom_call.1} parent=5 // pred_fallthru
        _
      %p4494 = scmp.le.s32.totalorder 2, %s19
      // Predicated region
      $region61: #{tpu_custom_call.1} parent=5 // pred_check
        %p4495 = pneg %p4494
      $region62: #{tpu_custom_call.1} parent=5 // pred_check_branch
        %4497 = sbr.rel (%p4495) target = $region64
      $region63: #{tpu_custom_call.1} parent=5 // pred_region
        %s4498 = ssub.s32 %s19, 2
        // Predicated region
        $region65: #{tpu_custom_call.1} parent=63 // pred_check
          %p4499 = pneg %p158
        $region66: #{tpu_custom_call.1} parent=63 // pred_check_branch
          %4501 = sbr.rel (%p4499) target = $region68
        $region67: #{tpu_custom_call.1} parent=63 // pred_region
          %s4502 = sand.u32 %s143, 1
          %s4503 = scalar_lea.sflag [#allocation4], %s4502
          %s4504 = sand.u32 %s143, 1
          %s4505 = smul.addr %s4504, 256
          %s4506 = scalar_lea.vmem [#allocation10], %s4505
          %4507 = dma.done %s4503, 4096
        $region68: #{tpu_custom_call.1} parent=63 // pred_fallthru
          _
      $region64: #{tpu_custom_call.1} parent=5 // pred_fallthru
        _
    $region6: #{tpu_custom_call.1} parent=1 // loop_footer
      %s23 = sadd.s32 1, %s19
    $region7: #{tpu_custom_call.1} parent=1 // loop_footer_branch
      %18 = sbr.rel target = $region3
    $region8: #{tpu_custom_call.1} parent=1 // loop_exit
      _
    %4508 = vsyncpa [#allocation3], 1
    %s4509 = scalar_lea.sflag [#allocation3], 1
    %4510 = vsyncpa %s4509, 1
    %4511 = vsyncpa [#allocation6], 1
    %4512 = vsyncpa [#allocation9], 1
    %4513 = vsyncpa [#allocation4], 1
    %s4514 = scalar_lea.sflag [#allocation4], 1
    %4515 = vsyncpa %s4514, 1

</llo_original>
